<compile_context>
chip_gen: v5e
topology: v5e:2x2
jax: 0.10.0
libtpu: 0.0.40
codegen_flags: <defaults>
</compile_context>

<pallas_src>
import functools

import jax
import jax.numpy as jnp
from jax.experimental import pallas as pl
from jax.experimental.pallas import tpu as pltpu

EPS = 1e-5                     # nn.BatchNorm2d default eps
LANE = 128                     # TPU lane width: channel dims padded to this
_VMEM_LIMIT = 32 * 1024 * 1024


# ------------------------- small helpers -------------------------

def _round_up(n, m):
    return ((n + m - 1) // m) * m


def _pad1(v, c, fill):
    return jnp.pad(v, (0, c - v.shape[0]), constant_values=fill)


def _pad2(a, r, c):
    return jnp.pad(a, ((0, r - a.shape[0]), (0, c - a.shape[1])))


def _pick_row_tile(m, cap):
    """Largest multiple-of-8 divisor of m that is <= cap (so BN stats see no
    padded rows)."""
    if m <= cap:
        return m
    for t in range(cap - cap % 8, 7, -8):
        if m % t == 0:
            return t
    return m  # TODO(synk): mask tail rows instead of falling back to one tile


def _cparams(n_axes):
    return pltpu.CompilerParams(
        dimension_semantics=("parallel",) * n_axes,
        vmem_limit_bytes=_VMEM_LIMIT)


def _bn_affine(stats, count, gamma_p, beta_p):
    """Fold batch stats into per-channel scale/shift: y*scale + shift."""
    s = jnp.sum(stats, axis=0)                       # (2, C): [sum, sumsq]
    mean = s[0] / count
    var = jnp.maximum(s[1] / count - mean * mean, 0.0)   # biased variance
    scale = gamma_p * jax.lax.rsqrt(var + EPS)
    shift = beta_p - mean * scale
    return jnp.stack([scale, shift], axis=0).astype(jnp.float32)   # (2, C)


# ------------------------- Pallas kernels -------------------------

def _matmul_stats_kernel(x_ref, w_ref, y_ref, s_ref):
    # 1x1 conv tile: (tm, K)bf16 @ (K, D)bf16 -> f32 acc, per-tile BN partials.
    y = jnp.dot(x_ref[...], w_ref[...], preferred_element_type=jnp.float32)
    y_ref[...] = y.astype(y_ref.dtype)
    s_ref[0, 0:1, :] = jnp.sum(y, axis=0, keepdims=True)
    s_ref[0, 1:2, :] = jnp.sum(y * y, axis=0, keepdims=True)


def _bn1_conv3x3_stats_kernel(H, W, y1_ref, aff_ref, w_ref, y_ref, s_ref,
                              buf_ref):
    # One image per grid step.  BN1 affine + ReLU applied in-kernel, zero-pad
    # into a VMEM halo scratch, then the 9-tap reduction on the MXU.
    C = buf_ref.shape[-1]
    D = y_ref.shape[-1]
    # Re-zero the whole padded scratch every step (cheap; megacore-safe).
    buf_ref[...] = jnp.zeros_like(buf_ref)
    a = jnp.maximum(
        y1_ref[0].astype(jnp.float32) * aff_ref[0:1, :] + aff_ref[1:2, :], 0.0)
    buf_ref[1:H + 1, 1:W + 1, :] = a
    acc = jnp.zeros((H * W, D), jnp.float32)
    for kh in range(3):
        for kw in range(3):
            patch = buf_ref[kh:kh + H, kw:kw + W, :].reshape(H * W, C)
            acc = acc + jnp.dot(patch.astype(jnp.bfloat16), w_ref[kh * 3 + kw],
                                preferred_element_type=jnp.float32)
    y_ref[0] = acc.astype(y_ref.dtype)
    s_ref[0, 0:1, :] = jnp.sum(acc, axis=0, keepdims=True)
    s_ref[0, 1:2, :] = jnp.sum(acc * acc, axis=0, keepdims=True)


def _bn_relu_matmul_stats_kernel(y2_ref, aff_ref, w_ref, y_ref, s_ref):
    # BN2 apply + ReLU fused into the conv3 (1x1) matmul, plus BN3 partials.
    a = jnp.maximum(
        y2_ref[...].astype(jnp.float32) * aff_ref[0:1, :] + aff_ref[1:2, :],
        0.0)
    y = jnp.dot(a.astype(jnp.bfloat16), w_ref[...],
                preferred_element_type=jnp.float32)
    y_ref[...] = y.astype(y_ref.dtype)
    s_ref[0, 0:1, :] = jnp.sum(y, axis=0, keepdims=True)
    s_ref[0, 1:2, :] = jnp.sum(y * y, axis=0, keepdims=True)


def _bn_add_relu_kernel(y_ref, aff_ref, res_ref, o_ref):
    # BN3 apply + residual add + ReLU (all f32).
    y = y_ref[...] * aff_ref[0:1, :] + aff_ref[1:2, :]
    o_ref[...] = jnp.maximum(y + res_ref[...], 0.0)


# ------------------------- pallas_call wrappers -------------------------

def conv1x1_stats(x_bf, w_bf, tm, out_dtype=jnp.bfloat16):
    M, K = x_bf.shape
    D = w_bf.shape[1]
    nt = M // tm
    return pl.pallas_call(
        _matmul_stats_kernel,
        out_shape=(jax.ShapeDtypeStruct((M, D), out_dtype),
                   jax.ShapeDtypeStruct((nt, 2, D), jnp.float32)),
        grid_spec=pltpu.PrefetchScalarGridSpec(
            num_scalar_prefetch=0, grid=(nt,),
            in_specs=[pl.BlockSpec((tm, K), lambda i: (i, 0)),
                      pl.BlockSpec((K, D), lambda i: (0, 0))],     # resident
            out_specs=(pl.BlockSpec((tm, D), lambda i: (i, 0)),
                       pl.BlockSpec((1, 2, D), lambda i: (i, 0, 0)))),
        compiler_params=_cparams(1),
    )(x_bf, w_bf)


def bn1_conv3x3_stats(y1_nhwc, aff1, w_taps_bf, out_dtype=jnp.bfloat16):
    N, H, W, C = y1_nhwc.shape
    D = w_taps_bf.shape[-1]
    kernel = functools.partial(_bn1_conv3x3_stats_kernel, H, W)
    return pl.pallas_call(
        kernel,
        out_shape=(jax.ShapeDtypeStruct((N, H * W, D), out_dtype),
                   jax.ShapeDtypeStruct((N, 2, D), jnp.float32)),
        grid_spec=pltpu.PrefetchScalarGridSpec(
            num_scalar_prefetch=0, grid=(N,),
            in_specs=[pl.BlockSpec((1, H, W, C), lambda n: (n, 0, 0, 0)),
                      pl.BlockSpec((2, C), lambda n: (0, 0)),        # resident
                      pl.BlockSpec((9, C, D), lambda n: (0, 0, 0))],  # resident
            out_specs=(pl.BlockSpec((1, H * W, D), lambda n: (n, 0, 0)),
                       pl.BlockSpec((1, 2, D), lambda n: (n, 0, 0))),
            scratch_shapes=[pltpu.VMEM((H + 2, W + 2, C), jnp.float32)]),
        compiler_params=_cparams(1),
    )(y1_nhwc, aff1, w_taps_bf)


def bn_relu_matmul_stats(y2, aff2, w_bf, tm):
    M, K = y2.shape
    D = w_bf.shape[1]
    nt = M // tm
    return pl.pallas_call(
        _bn_relu_matmul_stats_kernel,
        out_shape=(jax.ShapeDtypeStruct((M, D), jnp.float32),
                   jax.ShapeDtypeStruct((nt, 2, D), jnp.float32)),
        grid_spec=pltpu.PrefetchScalarGridSpec(
            num_scalar_prefetch=0, grid=(nt,),
            in_specs=[pl.BlockSpec((tm, K), lambda i: (i, 0)),
                      pl.BlockSpec((2, K), lambda i: (0, 0)),
                      pl.BlockSpec((K, D), lambda i: (0, 0))],
            out_specs=(pl.BlockSpec((tm, D), lambda i: (i, 0)),
                       pl.BlockSpec((1, 2, D), lambda i: (i, 0, 0)))),
        compiler_params=_cparams(1),
    )(y2, aff2, w_bf)


def bn_add_relu(y, aff, res, tm):
    M, C = y.shape
    nt = M // tm
    return pl.pallas_call(
        _bn_add_relu_kernel,
        out_shape=jax.ShapeDtypeStruct((M, C), jnp.float32),
        grid_spec=pltpu.PrefetchScalarGridSpec(
            num_scalar_prefetch=0, grid=(nt,),
            in_specs=[pl.BlockSpec((tm, C), lambda i: (i, 0)),
                      pl.BlockSpec((2, C), lambda i: (0, 0)),
                      pl.BlockSpec((tm, C), lambda i: (i, 0))],
            out_specs=pl.BlockSpec((tm, C), lambda i: (i, 0))),
        compiler_params=_cparams(1),
    )(y, aff, res)


# ------------------------- block forward -------------------------

def block_forward(x_nchw, p, row_tile_cap=512):
    """Bottleneck block forward. x_nchw: (N, Cin, H, W), Cin == 4*Cm."""
    N, Cin, H, W = x_nchw.shape
    Cm = p["w1"].shape[1]
    Cout = p["w3"].shape[1]
    assert Cout == Cin, "identity path requires in_channels == 4*intermediate"

    Cin_p = _round_up(Cin, LANE)
    Cm_p = _round_up(Cm, LANE)
    Cout_p = _round_up(Cout, LANE)

    M = N * H * W
    tm = _pick_row_tile(M, row_tile_cap)

    # layout: NCHW -> NHWC -> (M, C), channel-pad to lane width
    x_nhwc = jnp.transpose(x_nchw, (0, 2, 3, 1))
    x2d = jnp.pad(x_nhwc.reshape(M, Cin), ((0, 0), (0, Cin_p - Cin)))  # f32 res
    x2d_bf = x2d.astype(jnp.bfloat16)

    # weights / BN params, channel-padded; matmul weights in bf16
    w1 = _pad2(p["w1"], Cin_p, Cm_p).astype(jnp.bfloat16)
    w2 = jnp.pad(p["w2"], ((0, 0), (0, 0), (0, Cm_p - Cm), (0, Cm_p - Cm)))
    w2 = w2.reshape(9, Cm_p, Cm_p).astype(jnp.bfloat16)       # tap-major (kh*3+kw)
    w3 = _pad2(p["w3"], Cm_p, Cout_p).astype(jnp.bfloat16)
    g1 = _pad1(p["g1"], Cm_p, 1.0)
    b1 = _pad1(p["b1"], Cm_p, 0.0)
    g2 = _pad1(p["g2"], Cm_p, 1.0)
    b2 = _pad1(p["b2"], Cm_p, 0.0)
    g3 = _pad1(p["g3"], Cout_p, 1.0)
    b3 = _pad1(p["b3"], Cout_p, 0.0)

    # stage 1: 1x1 conv + BN1 batch-stat partials (single fused pass)
    y1_raw, s1 = conv1x1_stats(x2d_bf, w1, tm)                # (M, Cm_p) bf16
    aff1 = _bn_affine(s1, M, g1, b1)

    # stage 2: BN1 apply + ReLU + zero-pad + 3x3 conv + BN2 stat partials,
    # one fused per-image kernel (no padded HBM copy, no extra activation pass)
    y2_raw, s2 = bn1_conv3x3_stats(y1_raw.reshape(N, H, W, Cm_p), aff1, w2)
    aff2 = _bn_affine(s2, M, g2, b2)

    # stage 3: BN2 apply + ReLU fused into 1x1 conv, BN3 stat partials
    y3_raw, s3 = bn_relu_matmul_stats(y2_raw.reshape(M, Cm_p), aff2, w3, tm)
    aff3 = _bn_affine(s3, M, g3, b3)

    # stage 4: BN3 apply + residual add + ReLU
    out2d = bn_add_relu(y3_raw, aff3, x2d, tm)                # (M, Cout_p) f32

    out = out2d[:, :Cout].reshape(N, H, W, Cout)
    return jnp.transpose(out, (0, 3, 1, 2))                   # back to NCHW


# ------------------------- pure-JAX reference -------------------------

def reference_forward(x_nchw, p):
    x = jnp.transpose(x_nchw, (0, 2, 3, 1))

    def conv(v, w_hwio, pad):
        return jax.lax.conv_general_dilated(
            v, w_hwio, (1, 1), pad,
            dimension_numbers=("NHWC", "HWIO", "NHWC"),
            precision=jax.lax.Precision.HIGHEST)

    def bn(v, g, b):
        mean = jnp.mean(v, axis=(0, 1, 2), keepdims=True)
        var = jnp.mean((v - mean) ** 2, axis=(0, 1, 2), keepdims=True)
        return (v - mean) * jax.lax.rsqrt(var + EPS) * g.reshape(1, 1, 1, -1) \
            + b.reshape(1, 1, 1, -1)

    y = jax.nn.relu(bn(conv(x, p["w1"][None, None], [(0, 0), (0, 0)]),
                       p["g1"], p["b1"]))
    y = jax.nn.relu(bn(conv(y, p["w2"], [(1, 1), (1, 1)]), p["g2"], p["b2"]))
    y = bn(conv(y, p["w3"][None, None], [(0, 0), (0, 0)]), p["g3"], p["b3"])
    y = jax.nn.relu(y + x)
    return jnp.transpose(y, (0, 3, 1, 2))


# ------------------------- main -------------------------

if __name__ == "__main__":
    # Small shapes consistent with the module: expansion=4 so Cin = 4 * Cm.
    N, H, W = 2, 16, 16
    Cm = 8
    Cin = 4 * Cm      # 32
    Cout = 4 * Cm     # 32

    key = jax.random.PRNGKey(0)
    ks = jax.random.split(key, 10)

    params = {
        "w1": 0.1 * jax.random.normal(ks[0], (Cin, Cm), jnp.float32),
        "w2": 0.1 * jax.random.normal(ks[1], (3, 3, Cm, Cm), jnp.float32),
        "w3": 0.1 * jax.random.normal(ks[2], (Cm, Cout), jnp.float32),
        "g1": 1.0 + 0.1 * jax.random.normal(ks[3], (Cm,), jnp.float32),
        "b1": 0.1 * jax.random.normal(ks[4], (Cm,), jnp.float32),
        "g2": 1.0 + 0.1 * jax.random.normal(ks[5], (Cm,), jnp.float32),
        "b2": 0.1 * jax.random.normal(ks[6], (Cm,), jnp.float32),
        "g3": 1.0 + 0.1 * jax.random.normal(ks[7], (Cout,), jnp.float32),
        "b3": 0.1 * jax.random.normal(ks[8], (Cout,), jnp.float32),
    }
    x = jax.random.normal(ks[9], (N, Cin, H, W), jnp.float32)

    out = jax.block_until_ready(jax.jit(block_forward)(x, params))
    ref = jax.block_until_ready(reference_forward(x, params))

    assert out.shape == (N, Cout, H, W), out.shape
    max_err = float(jnp.max(jnp.abs(out - ref)))
    assert jnp.allclose(out, ref, rtol=3e-2, atol=3e-2), max_err
    print("KERNEL_OK")
</pallas_src>

<mosaic_0001>
module attributes {stable_mosaic.version = 11 : i64} {
  func.func @_matmul_stats_kernel(%arg0: i32, %arg1: memref<512x128xbf16, #tpu.memory_space<vmem>>, %arg2: memref<128x128xbf16, #tpu.memory_space<vmem>>, %arg3: memref<512x128xbf16, #tpu.memory_space<vmem>>, %arg4: memref<1x2x128xf32, #tpu.memory_space<vmem>>) attributes {dimension_semantics = [#tpu.dimension_semantics<parallel>], iteration_bounds = array<i64: 1>, scalar_prefetch = 0 : i64, scratch_operands = 0 : i64, tpu.core_type = #tpu.core_type<tc>, window_params = [{transform_indices = @transform_0, window_bounds = array<i64: 512, 128>}, {pipeline_mode = #tpu.pipeline_mode<synchronous>, transform_indices = @transform_1, window_bounds = array<i64: 128, 128>}, {transform_indices = @transform_2, window_bounds = array<i64: 512, 128>}, {transform_indices = @transform_3, window_bounds = array<i64: 1, 2, 128>}]} {
    %c0 = arith.constant 0 : index
    %c0_0 = arith.constant 0 : index
    %0 = vector.load %arg1[%c0, %c0_0] : memref<512x128xbf16, #tpu.memory_space<vmem>>, vector<512x128xbf16>
    %c0_1 = arith.constant 0 : index
    %c0_2 = arith.constant 0 : index
    %1 = vector.load %arg2[%c0_1, %c0_2] : memref<128x128xbf16, #tpu.memory_space<vmem>>, vector<128x128xbf16>
    %cst = arith.constant dense<0.000000e+00> : vector<512x128xf32>
    %2 = tpu.matmul %0, %1, %cst {dimension_numbers = #tpu.dot_dimension_numbers<[1], [0], [0], [1], [0, 0, 1, 1], [], []>} : vector<512x128xbf16>, vector<128x128xbf16>, vector<512x128xf32> -> vector<512x128xf32>
    %3 = arith.truncf %2 : vector<512x128xf32> to vector<512x128xbf16>
    %c0_3 = arith.constant 0 : index
    %c0_4 = arith.constant 0 : index
    %4 = vector.load %arg3[%c0_3, %c0_4] : memref<512x128xbf16, #tpu.memory_space<vmem>>, vector<512x128xbf16>
    tpu.vector_store %arg3[%c0_3, %c0_4], %3 {strides = array<i32>} : memref<512x128xbf16, #tpu.memory_space<vmem>>, vector<512x128xbf16>,
    %cst_5 = arith.constant dense<0.000000e+00> : vector<128xf32>
    %5 = vector.multi_reduction <add>, %2, %cst_5 [0] : vector<512x128xf32> to vector<128xf32>
    %6 = vector.shape_cast %5 : vector<128xf32> to vector<1x128xf32>
    %c0_6 = arith.constant 0 : index
    %c0_7 = arith.constant 0 : index
    %c0_8 = arith.constant 0 : index
    %7 = vector.load %arg4[%c0_6, %c0_7, %c0_8] : memref<1x2x128xf32, #tpu.memory_space<vmem>>, vector<1x1x128xf32>
    %8 = vector.shape_cast %7 : vector<1x1x128xf32> to vector<1x128xf32>
    %9 = vector.shape_cast %6 : vector<1x128xf32> to vector<1x1x128xf32>
    tpu.vector_store %arg4[%c0_6, %c0_7, %c0_8], %9 {strides = array<i32>} : memref<1x2x128xf32, #tpu.memory_space<vmem>>, vector<1x1x128xf32>,
    %10 = arith.mulf %2, %2 : vector<512x128xf32>
    %cst_9 = arith.constant dense<0.000000e+00> : vector<128xf32>
    %11 = vector.multi_reduction <add>, %10, %cst_9 [0] : vector<512x128xf32> to vector<128xf32>
    %12 = vector.shape_cast %11 : vector<128xf32> to vector<1x128xf32>
    %c0_10 = arith.constant 0 : index
    %c1 = arith.constant 1 : index
    %c0_11 = arith.constant 0 : index
    %13 = vector.load %arg4[%c0_10, %c1, %c0_11] : memref<1x2x128xf32, #tpu.memory_space<vmem>>, vector<1x1x128xf32>
    %14 = vector.shape_cast %13 : vector<1x1x128xf32> to vector<1x128xf32>
    %15 = vector.shape_cast %12 : vector<1x128xf32> to vector<1x1x128xf32>
    tpu.vector_store %arg4[%c0_10, %c1, %c0_11], %15 {strides = array<i32>} : memref<1x2x128xf32, #tpu.memory_space<vmem>>, vector<1x1x128xf32>,
    return
  }
  func.func @transform_0(%arg0: i32) -> (i32, i32) {
    %c0_i32 = arith.constant 0 : i32
    %c0_i32_0 = arith.constant 0 : i32
    return %arg0, %c0_i32 : i32, i32
  }
  func.func @transform_1(%arg0: i32) -> (i32, i32) {
    %c0_i32 = arith.constant 0 : i32
    %c0_i32_0 = arith.constant 0 : i32
    %c0_i32_1 = arith.constant 0 : i32
    return %c0_i32, %c0_i32_0 : i32, i32
  }
  func.func @transform_2(%arg0: i32) -> (i32, i32) {
    %c0_i32 = arith.constant 0 : i32
    %c0_i32_0 = arith.constant 0 : i32
    return %arg0, %c0_i32 : i32, i32
  }
  func.func @transform_3(%arg0: i32) -> (i32, i32, i32) {
    %c0_i32 = arith.constant 0 : i32
    %c0_i32_0 = arith.constant 0 : i32
    %c0_i32_1 = arith.constant 0 : i32
    return %arg0, %c0_i32, %c0_i32_0 : i32, i32, i32
  }
}

module attributes {stable_mosaic.version = 11 : i64} {
  func.func @_bn_relu_matmul_stats_kernel(%arg0: i32, %arg1: memref<512x128xbf16, #tpu.memory_space<vmem>>, %arg2: memref<2x128xf32, #tpu.memory_space<vmem>>, %arg3: memref<128x128xbf16, #tpu.memory_space<vmem>>, %arg4: memref<512x128xf32, #tpu.memory_space<vmem>>, %arg5: memref<1x2x128xf32, #tpu.memory_space<vmem>>) attributes {dimension_semantics = [#tpu.dimension_semantics<parallel>], iteration_bounds = array<i64: 1>, scalar_prefetch = 0 : i64, scratch_operands = 0 : i64, tpu.core_type = #tpu.core_type<tc>, window_params = [{transform_indices = @transform_0, window_bounds = array<i64: 512, 128>}, {pipeline_mode = #tpu.pipeline_mode<synchronous>, transform_indices = @transform_1, window_bounds = array<i64: 2, 128>}, {pipeline_mode = #tpu.pipeline_mode<synchronous>, transform_indices = @transform_2, window_bounds = array<i64: 128, 128>}, {transform_indices = @transform_3, window_bounds = array<i64: 512, 128>}, {transform_indices = @transform_4, window_bounds = array<i64: 1, 2, 128>}]} {
    %c0 = arith.constant 0 : index
    %c0_0 = arith.constant 0 : index
    %0 = vector.load %arg1[%c0, %c0_0] : memref<512x128xbf16, #tpu.memory_space<vmem>>, vector<512x128xbf16>
    %1 = arith.extf %0 : vector<512x128xbf16> to vector<512x128xf32>
    %c0_1 = arith.constant 0 : index
    %c0_2 = arith.constant 0 : index
    %2 = vector.load %arg2[%c0_1, %c0_2] : memref<2x128xf32, #tpu.memory_space<vmem>>, vector<1x128xf32>
    %3 = vector.broadcast %2 : vector<1x128xf32> to vector<512x128xf32>
    %4 = arith.mulf %1, %3 : vector<512x128xf32>
    %c1 = arith.constant 1 : index
    %c0_3 = arith.constant 0 : index
    %5 = vector.load %arg2[%c1, %c0_3] : memref<2x128xf32, #tpu.memory_space<vmem>>, vector<1x128xf32>
    %6 = vector.broadcast %5 : vector<1x128xf32> to vector<512x128xf32>
    %7 = arith.addf %4, %6 : vector<512x128xf32>
    %cst = arith.constant 0.000000e+00 : f32
    %8 = vector.broadcast %cst : f32 to vector<512x128xf32>
    %9 = arith.maximumf %7, %8 : vector<512x128xf32>
    %10 = arith.truncf %9 : vector<512x128xf32> to vector<512x128xbf16>
    %c0_4 = arith.constant 0 : index
    %c0_5 = arith.constant 0 : index
    %11 = vector.load %arg3[%c0_4, %c0_5] : memref<128x128xbf16, #tpu.memory_space<vmem>>, vector<128x128xbf16>
    %cst_6 = arith.constant dense<0.000000e+00> : vector<512x128xf32>
    %12 = tpu.matmul %10, %11, %cst_6 {dimension_numbers = #tpu.dot_dimension_numbers<[1], [0], [0], [1], [0, 0, 1, 1], [], []>} : vector<512x128xbf16>, vector<128x128xbf16>, vector<512x128xf32> -> vector<512x128xf32>
    %c0_7 = arith.constant 0 : index
    %c0_8 = arith.constant 0 : index
    %13 = vector.load %arg4[%c0_7, %c0_8] : memref<512x128xf32, #tpu.memory_space<vmem>>, vector<512x128xf32>
    tpu.vector_store %arg4[%c0_7, %c0_8], %12 {strides = array<i32>} : memref<512x128xf32, #tpu.memory_space<vmem>>, vector<512x128xf32>,
    %cst_9 = arith.constant dense<0.000000e+00> : vector<128xf32>
    %14 = vector.multi_reduction <add>, %12, %cst_9 [0] : vector<512x128xf32> to vector<128xf32>
    %15 = vector.shape_cast %14 : vector<128xf32> to vector<1x128xf32>
    %c0_10 = arith.constant 0 : index
    %c0_11 = arith.constant 0 : index
    %c0_12 = arith.constant 0 : index
    %16 = vector.load %arg5[%c0_10, %c0_11, %c0_12] : memref<1x2x128xf32, #tpu.memory_space<vmem>>, vector<1x1x128xf32>
    %17 = vector.shape_cast %16 : vector<1x1x128xf32> to vector<1x128xf32>
    %18 = vector.shape_cast %15 : vector<1x128xf32> to vector<1x1x128xf32>
    tpu.vector_store %arg5[%c0_10, %c0_11, %c0_12], %18 {strides = array<i32>} : memref<1x2x128xf32, #tpu.memory_space<vmem>>, vector<1x1x128xf32>,
    %19 = arith.mulf %12, %12 : vector<512x128xf32>
    %cst_13 = arith.constant dense<0.000000e+00> : vector<128xf32>
    %20 = vector.multi_reduction <add>, %19, %cst_13 [0] : vector<512x128xf32> to vector<128xf32>
    %21 = vector.shape_cast %20 : vector<128xf32> to vector<1x128xf32>
    %c0_14 = arith.constant 0 : index
    %c1_15 = arith.constant 1 : index
    %c0_16 = arith.constant 0 : index
    %22 = vector.load %arg5[%c0_14, %c1_15, %c0_16] : memref<1x2x128xf32, #tpu.memory_space<vmem>>, vector<1x1x128xf32>
    %23 = vector.shape_cast %22 : vector<1x1x128xf32> to vector<1x128xf32>
    %24 = vector.shape_cast %21 : vector<1x128xf32> to vector<1x1x128xf32>
    tpu.vector_store %arg5[%c0_14, %c1_15, %c0_16], %24 {strides = array<i32>} : memref<1x2x128xf32, #tpu.memory_space<vmem>>, vector<1x1x128xf32>,
    return
  }
  func.func @transform_0(%arg0: i32) -> (i32, i32) {
    %c0_i32 = arith.constant 0 : i32
    %c0_i32_0 = arith.constant 0 : i32
    return %arg0, %c0_i32 : i32, i32
  }
  func.func @transform_1(%arg0: i32) -> (i32, i32) {
    %c0_i32 = arith.constant 0 : i32
    %c0_i32_0 = arith.constant 0 : i32
    %c0_i32_1 = arith.constant 0 : i32
    return %c0_i32, %c0_i32_0 : i32, i32
  }
  func.func @transform_2(%arg0: i32) -> (i32, i32) {
    %c0_i32 = arith.constant 0 : i32
    %c0_i32_0 = arith.constant 0 : i32
    %c0_i32_1 = arith.constant 0 : i32
    return %c0_i32, %c0_i32_0 : i32, i32
  }
  func.func @transform_3(%arg0: i32) -> (i32, i32) {
    %c0_i32 = arith.constant 0 : i32
    %c0_i32_0 = arith.constant 0 : i32
    return %arg0, %c0_i32 : i32, i32
  }
  func.func @transform_4(%arg0: i32) -> (i32, i32, i32) {
    %c0_i32 = arith.constant 0 : i32
    %c0_i32_0 = arith.constant 0 : i32
    %c0_i32_1 = arith.constant 0 : i32
    return %arg0, %c0_i32, %c0_i32_0 : i32, i32, i32
  }
}

module attributes {stable_mosaic.version = 11 : i64} {
  func.func @_bn1_conv3x3_stats_kernel(%arg0: i32, %arg1: memref<1x16x16x128xbf16, #tpu.memory_space<vmem>>, %arg2: memref<2x128xf32, #tpu.memory_space<vmem>>, %arg3: memref<9x128x128xbf16, #tpu.memory_space<vmem>>, %arg4: memref<1x256x128xbf16, #tpu.memory_space<vmem>>, %arg5: memref<1x2x128xf32, #tpu.memory_space<vmem>>, %arg6: memref<18x18x128xf32, #tpu.memory_space<vmem>>) attributes {dimension_semantics = [#tpu.dimension_semantics<parallel>], iteration_bounds = array<i64: 2>, scalar_prefetch = 0 : i64, scratch_operands = 1 : i64, tpu.core_type = #tpu.core_type<tc>, window_params = [{transform_indices = @transform_0, window_bounds = array<i64: 1, 16, 16, 128>}, {pipeline_mode = #tpu.pipeline_mode<synchronous>, transform_indices = @transform_1, window_bounds = array<i64: 2, 128>}, {pipeline_mode = #tpu.pipeline_mode<synchronous>, transform_indices = @transform_2, window_bounds = array<i64: 9, 128, 128>}, {transform_indices = @transform_3, window_bounds = array<i64: 1, 256, 128>}, {transform_indices = @transform_4, window_bounds = array<i64: 1, 2, 128>}]} {
    %cst = arith.constant 0.000000e+00 : f32
    %0 = vector.broadcast %cst : f32 to vector<18x18x128xf32>
    %c0 = arith.constant 0 : index
    %c0_0 = arith.constant 0 : index
    %c0_1 = arith.constant 0 : index
    %1 = vector.load %arg6[%c0, %c0_0, %c0_1] : memref<18x18x128xf32, #tpu.memory_space<vmem>>, vector<18x18x128xf32>
    tpu.vector_store %arg6[%c0, %c0_0, %c0_1], %0 {strides = array<i32>} : memref<18x18x128xf32, #tpu.memory_space<vmem>>, vector<18x18x128xf32>,
    %c0_2 = arith.constant 0 : index
    %c0_3 = arith.constant 0 : index
    %c0_4 = arith.constant 0 : index
    %c0_5 = arith.constant 0 : index
    %2 = vector.load %arg1[%c0_2, %c0_3, %c0_4, %c0_5] : memref<1x16x16x128xbf16, #tpu.memory_space<vmem>>, vector<1x16x16x128xbf16>
    %3 = vector.shape_cast %2 : vector<1x16x16x128xbf16> to vector<16x16x128xbf16>
    %4 = arith.extf %3 : vector<16x16x128xbf16> to vector<16x16x128xf32>
    %c0_6 = arith.constant 0 : index
    %c0_7 = arith.constant 0 : index
    %5 = vector.load %arg2[%c0_6, %c0_7] : memref<2x128xf32, #tpu.memory_space<vmem>>, vector<1x128xf32>
    %6 = vector.shape_cast %5 : vector<1x128xf32> to vector<1x1x128xf32>
    %7 = vector.broadcast %6 : vector<1x1x128xf32> to vector<16x16x128xf32>
    %8 = arith.mulf %4, %7 : vector<16x16x128xf32>
    %c1 = arith.constant 1 : index
    %c0_8 = arith.constant 0 : index
    %9 = vector.load %arg2[%c1, %c0_8] : memref<2x128xf32, #tpu.memory_space<vmem>>, vector<1x128xf32>
    %10 = vector.shape_cast %9 : vector<1x128xf32> to vector<1x1x128xf32>
    %11 = vector.broadcast %10 : vector<1x1x128xf32> to vector<16x16x128xf32>
    %12 = arith.addf %8, %11 : vector<16x16x128xf32>
    %cst_9 = arith.constant 0.000000e+00 : f32
    %13 = vector.broadcast %cst_9 : f32 to vector<16x16x128xf32>
    %14 = arith.maximumf %12, %13 : vector<16x16x128xf32>
    %c1_10 = arith.constant 1 : index
    %c1_11 = arith.constant 1 : index
    %c0_12 = arith.constant 0 : index
    %15 = vector.load %arg6[%c1_10, %c1_11, %c0_12] : memref<18x18x128xf32, #tpu.memory_space<vmem>>, vector<16x16x128xf32>
    tpu.vector_store %arg6[%c1_10, %c1_11, %c0_12], %14 {strides = array<i32>} : memref<18x18x128xf32, #tpu.memory_space<vmem>>, vector<16x16x128xf32>,
    %cst_13 = arith.constant 0.000000e+00 : f32
    %16 = vector.broadcast %cst_13 : f32 to vector<256x128xf32>
    %c0_14 = arith.constant 0 : index
    %c0_15 = arith.constant 0 : index
    %c0_16 = arith.constant 0 : index
    %17 = vector.load %arg6[%c0_14, %c0_15, %c0_16] : memref<18x18x128xf32, #tpu.memory_space<vmem>>, vector<16x16x128xf32>
    %18 = vector.shape_cast %17 : vector<16x16x128xf32> to vector<256x128xf32>
    %19 = arith.truncf %18 : vector<256x128xf32> to vector<256x128xbf16>
    %c0_17 = arith.constant 0 : index
    %c0_18 = arith.constant 0 : index
    %c0_19 = arith.constant 0 : index
    %20 = vector.load %arg3[%c0_17, %c0_18, %c0_19] : memref<9x128x128xbf16, #tpu.memory_space<vmem>>, vector<1x128x128xbf16>
    %21 = vector.shape_cast %20 : vector<1x128x128xbf16> to vector<128x128xbf16>
    %cst_20 = arith.constant dense<0.000000e+00> : vector<256x128xf32>
    %22 = tpu.matmul %19, %21, %cst_20 {dimension_numbers = #tpu.dot_dimension_numbers<[1], [0], [0], [1], [0, 0, 1, 1], [], []>} : vector<256x128xbf16>, vector<128x128xbf16>, vector<256x128xf32> -> vector<256x128xf32>
    %23 = arith.addf %16, %22 : vector<256x128xf32>
    %c0_21 = arith.constant 0 : index
    %c1_22 = arith.constant 1 : index
    %c0_23 = arith.constant 0 : index
    %24 = vector.load %arg6[%c0_21, %c1_22, %c0_23] : memref<18x18x128xf32, #tpu.memory_space<vmem>>, vector<16x16x128xf32>
    %25 = vector.shape_cast %24 : vector<16x16x128xf32> to vector<256x128xf32>
    %26 = arith.truncf %25 : vector<256x128xf32> to vector<256x128xbf16>
    %c1_24 = arith.constant 1 : index
    %c0_25 = arith.constant 0 : index
    %c0_26 = arith.constant 0 : index
    %27 = vector.load %arg3[%c1_24, %c0_25, %c0_26] : memref<9x128x128xbf16, #tpu.memory_space<vmem>>, vector<1x128x128xbf16>
    %28 = vector.shape_cast %27 : vector<1x128x128xbf16> to vector<128x128xbf16>
    %cst_27 = arith.constant dense<0.000000e+00> : vector<256x128xf32>
    %29 = tpu.matmul %26, %28, %cst_27 {dimension_numbers = #tpu.dot_dimension_numbers<[1], [0], [0], [1], [0, 0, 1, 1], [], []>} : vector<256x128xbf16>, vector<128x128xbf16>, vector<256x128xf32> -> vector<256x128xf32>
    %30 = arith.addf %23, %29 : vector<256x128xf32>
    %c0_28 = arith.constant 0 : index
    %c2 = arith.constant 2 : index
    %c0_29 = arith.constant 0 : index
    %31 = vector.load %arg6[%c0_28, %c2, %c0_29] : memref<18x18x128xf32, #tpu.memory_space<vmem>>, vector<16x16x128xf32>
    %32 = vector.shape_cast %31 : vector<16x16x128xf32> to vector<256x128xf32>
    %33 = arith.truncf %32 : vector<256x128xf32> to vector<256x128xbf16>
    %c2_30 = arith.constant 2 : index
    %c0_31 = arith.constant 0 : index
    %c0_32 = arith.constant 0 : index
    %34 = vector.load %arg3[%c2_30, %c0_31, %c0_32] : memref<9x128x128xbf16, #tpu.memory_space<vmem>>, vector<1x128x128xbf16>
    %35 = vector.shape_cast %34 : vector<1x128x128xbf16> to vector<128x128xbf16>
    %cst_33 = arith.constant dense<0.000000e+00> : vector<256x128xf32>
    %36 = tpu.matmul %33, %35, %cst_33 {dimension_numbers = #tpu.dot_dimension_numbers<[1], [0], [0], [1], [0, 0, 1, 1], [], []>} : vector<256x128xbf16>, vector<128x128xbf16>, vector<256x128xf32> -> vector<256x128xf32>
    %37 = arith.addf %30, %36 : vector<256x128xf32>
    %c1_34 = arith.constant 1 : index
    %c0_35 = arith.constant 0 : index
    %c0_36 = arith.constant 0 : index
    %38 = vector.load %arg6[%c1_34, %c0_35, %c0_36] : memref<18x18x128xf32, #tpu.memory_space<vmem>>, vector<16x16x128xf32>
    %39 = vector.shape_cast %38 : vector<16x16x128xf32> to vector<256x128xf32>
    %40 = arith.truncf %39 : vector<256x128xf32> to vector<256x128xbf16>
    %c3 = arith.constant 3 : index
    %c0_37 = arith.constant 0 : index
    %c0_38 = arith.constant 0 : index
    %41 = vector.load %arg3[%c3, %c0_37, %c0_38] : memref<9x128x128xbf16, #tpu.memory_space<vmem>>, vector<1x128x128xbf16>
    %42 = vector.shape_cast %41 : vector<1x128x128xbf16> to vector<128x128xbf16>
    %cst_39 = arith.constant dense<0.000000e+00> : vector<256x128xf32>
    %43 = tpu.matmul %40, %42, %cst_39 {dimension_numbers = #tpu.dot_dimension_numbers<[1], [0], [0], [1], [0, 0, 1, 1], [], []>} : vector<256x128xbf16>, vector<128x128xbf16>, vector<256x128xf32> -> vector<256x128xf32>
    %44 = arith.addf %37, %43 : vector<256x128xf32>
    %c1_40 = arith.constant 1 : index
    %c1_41 = arith.constant 1 : index
    %c0_42 = arith.constant 0 : index
    %45 = vector.load %arg6[%c1_40, %c1_41, %c0_42] : memref<18x18x128xf32, #tpu.memory_space<vmem>>, vector<16x16x128xf32>
    %46 = vector.shape_cast %45 : vector<16x16x128xf32> to vector<256x128xf32>
    %47 = arith.truncf %46 : vector<256x128xf32> to vector<256x128xbf16>
    %c4 = arith.constant 4 : index
    %c0_43 = arith.constant 0 : index
    %c0_44 = arith.constant 0 : index
    %48 = vector.load %arg3[%c4, %c0_43, %c0_44] : memref<9x128x128xbf16, #tpu.memory_space<vmem>>, vector<1x128x128xbf16>
    %49 = vector.shape_cast %48 : vector<1x128x128xbf16> to vector<128x128xbf16>
    %cst_45 = arith.constant dense<0.000000e+00> : vector<256x128xf32>
    %50 = tpu.matmul %47, %49, %cst_45 {dimension_numbers = #tpu.dot_dimension_numbers<[1], [0], [0], [1], [0, 0, 1, 1], [], []>} : vector<256x128xbf16>, vector<128x128xbf16>, vector<256x128xf32> -> vector<256x128xf32>
    %51 = arith.addf %44, %50 : vector<256x128xf32>
    %c1_46 = arith.constant 1 : index
    %c2_47 = arith.constant 2 : index
    %c0_48 = arith.constant 0 : index
    %52 = vector.load %arg6[%c1_46, %c2_47, %c0_48] : memref<18x18x128xf32, #tpu.memory_space<vmem>>, vector<16x16x128xf32>
    %53 = vector.shape_cast %52 : vector<16x16x128xf32> to vector<256x128xf32>
    %54 = arith.truncf %53 : vector<256x128xf32> to vector<256x128xbf16>
    %c5 = arith.constant 5 : index
    %c0_49 = arith.constant 0 : index
    %c0_50 = arith.constant 0 : index
    %55 = vector.load %arg3[%c5, %c0_49, %c0_50] : memref<9x128x128xbf16, #tpu.memory_space<vmem>>, vector<1x128x128xbf16>
    %56 = vector.shape_cast %55 : vector<1x128x128xbf16> to vector<128x128xbf16>
    %cst_51 = arith.constant dense<0.000000e+00> : vector<256x128xf32>
    %57 = tpu.matmul %54, %56, %cst_51 {dimension_numbers = #tpu.dot_dimension_numbers<[1], [0], [0], [1], [0, 0, 1, 1], [], []>} : vector<256x128xbf16>, vector<128x128xbf16>, vector<256x128xf32> -> vector<256x128xf32>
    %58 = arith.addf %51, %57 : vector<256x128xf32>
    %c2_52 = arith.constant 2 : index
    %c0_53 = arith.constant 0 : index
    %c0_54 = arith.constant 0 : index
    %59 = vector.load %arg6[%c2_52, %c0_53, %c0_54] : memref<18x18x128xf32, #tpu.memory_space<vmem>>, vector<16x16x128xf32>
    %60 = vector.shape_cast %59 : vector<16x16x128xf32> to vector<256x128xf32>
    %61 = arith.truncf %60 : vector<256x128xf32> to vector<256x128xbf16>
    %c6 = arith.constant 6 : index
    %c0_55 = arith.constant 0 : index
    %c0_56 = arith.constant 0 : index
    %62 = vector.load %arg3[%c6, %c0_55, %c0_56] : memref<9x128x128xbf16, #tpu.memory_space<vmem>>, vector<1x128x128xbf16>
    %63 = vector.shape_cast %62 : vector<1x128x128xbf16> to vector<128x128xbf16>
    %cst_57 = arith.constant dense<0.000000e+00> : vector<256x128xf32>
    %64 = tpu.matmul %61, %63, %cst_57 {dimension_numbers = #tpu.dot_dimension_numbers<[1], [0], [0], [1], [0, 0, 1, 1], [], []>} : vector<256x128xbf16>, vector<128x128xbf16>, vector<256x128xf32> -> vector<256x128xf32>
    %65 = arith.addf %58, %64 : vector<256x128xf32>
    %c2_58 = arith.constant 2 : index
    %c1_59 = arith.constant 1 : index
    %c0_60 = arith.constant 0 : index
    %66 = vector.load %arg6[%c2_58, %c1_59, %c0_60] : memref<18x18x128xf32, #tpu.memory_space<vmem>>, vector<16x16x128xf32>
    %67 = vector.shape_cast %66 : vector<16x16x128xf32> to vector<256x128xf32>
    %68 = arith.truncf %67 : vector<256x128xf32> to vector<256x128xbf16>
    %c7 = arith.constant 7 : index
    %c0_61 = arith.constant 0 : index
    %c0_62 = arith.constant 0 : index
    %69 = vector.load %arg3[%c7, %c0_61, %c0_62] : memref<9x128x128xbf16, #tpu.memory_space<vmem>>, vector<1x128x128xbf16>
    %70 = vector.shape_cast %69 : vector<1x128x128xbf16> to vector<128x128xbf16>
    %cst_63 = arith.constant dense<0.000000e+00> : vector<256x128xf32>
    %71 = tpu.matmul %68, %70, %cst_63 {dimension_numbers = #tpu.dot_dimension_numbers<[1], [0], [0], [1], [0, 0, 1, 1], [], []>} : vector<256x128xbf16>, vector<128x128xbf16>, vector<256x128xf32> -> vector<256x128xf32>
    %72 = arith.addf %65, %71 : vector<256x128xf32>
    %c2_64 = arith.constant 2 : index
    %c2_65 = arith.constant 2 : index
    %c0_66 = arith.constant 0 : index
    %73 = vector.load %arg6[%c2_64, %c2_65, %c0_66] : memref<18x18x128xf32, #tpu.memory_space<vmem>>, vector<16x16x128xf32>
    %74 = vector.shape_cast %73 : vector<16x16x128xf32> to vector<256x128xf32>
    %75 = arith.truncf %74 : vector<256x128xf32> to vector<256x128xbf16>
    %c8 = arith.constant 8 : index
    %c0_67 = arith.constant 0 : index
    %c0_68 = arith.constant 0 : index
    %76 = vector.load %arg3[%c8, %c0_67, %c0_68] : memref<9x128x128xbf16, #tpu.memory_space<vmem>>, vector<1x128x128xbf16>
    %77 = vector.shape_cast %76 : vector<1x128x128xbf16> to vector<128x128xbf16>
    %cst_69 = arith.constant dense<0.000000e+00> : vector<256x128xf32>
    %78 = tpu.matmul %75, %77, %cst_69 {dimension_numbers = #tpu.dot_dimension_numbers<[1], [0], [0], [1], [0, 0, 1, 1], [], []>} : vector<256x128xbf16>, vector<128x128xbf16>, vector<256x128xf32> -> vector<256x128xf32>
    %79 = arith.addf %72, %78 : vector<256x128xf32>
    %80 = arith.truncf %79 : vector<256x128xf32> to vector<256x128xbf16>
    %c0_70 = arith.constant 0 : index
    %c0_71 = arith.constant 0 : index
    %c0_72 = arith.constant 0 : index
    %81 = vector.load %arg4[%c0_70, %c0_71, %c0_72] : memref<1x256x128xbf16, #tpu.memory_space<vmem>>, vector<1x256x128xbf16>
    %82 = vector.shape_cast %81 : vector<1x256x128xbf16> to vector<256x128xbf16>
    %83 = vector.shape_cast %80 : vector<256x128xbf16> to vector<1x256x128xbf16>
    tpu.vector_store %arg4[%c0_70, %c0_71, %c0_72], %83 {strides = array<i32>} : memref<1x256x128xbf16, #tpu.memory_space<vmem>>, vector<1x256x128xbf16>,
    %cst_73 = arith.constant dense<0.000000e+00> : vector<128xf32>
    %84 = vector.multi_reduction <add>, %79, %cst_73 [0] : vector<256x128xf32> to vector<128xf32>
    %85 = vector.shape_cast %84 : vector<128xf32> to vector<1x128xf32>
    %c0_74 = arith.constant 0 : index
    %c0_75 = arith.constant 0 : index
    %c0_76 = arith.constant 0 : index
    %86 = vector.load %arg5[%c0_74, %c0_75, %c0_76] : memref<1x2x128xf32, #tpu.memory_space<vmem>>, vector<1x1x128xf32>
    %87 = vector.shape_cast %86 : vector<1x1x128xf32> to vector<1x128xf32>
    %88 = vector.shape_cast %85 : vector<1x128xf32> to vector<1x1x128xf32>
    tpu.vector_store %arg5[%c0_74, %c0_75, %c0_76], %88 {strides = array<i32>} : memref<1x2x128xf32, #tpu.memory_space<vmem>>, vector<1x1x128xf32>,
    %89 = arith.mulf %79, %79 : vector<256x128xf32>
    %cst_77 = arith.constant dense<0.000000e+00> : vector<128xf32>
    %90 = vector.multi_reduction <add>, %89, %cst_77 [0] : vector<256x128xf32> to vector<128xf32>
    %91 = vector.shape_cast %90 : vector<128xf32> to vector<1x128xf32>
    %c0_78 = arith.constant 0 : index
    %c1_79 = arith.constant 1 : index
    %c0_80 = arith.constant 0 : index
    %92 = vector.load %arg5[%c0_78, %c1_79, %c0_80] : memref<1x2x128xf32, #tpu.memory_space<vmem>>, vector<1x1x128xf32>
    %93 = vector.shape_cast %92 : vector<1x1x128xf32> to vector<1x128xf32>
    %94 = vector.shape_cast %91 : vector<1x128xf32> to vector<1x1x128xf32>
    tpu.vector_store %arg5[%c0_78, %c1_79, %c0_80], %94 {strides = array<i32>} : memref<1x2x128xf32, #tpu.memory_space<vmem>>, vector<1x1x128xf32>,
    return
  }
  func.func @transform_0(%arg0: i32) -> (i32, i32, i32, i32) {
    %c0_i32 = arith.constant 0 : i32
    %c0_i32_0 = arith.constant 0 : i32
    %c0_i32_1 = arith.constant 0 : i32
    %c0_i32_2 = arith.constant 0 : i32
    return %arg0, %c0_i32, %c0_i32_0, %c0_i32_1 : i32, i32, i32, i32
  }
  func.func @transform_1(%arg0: i32) -> (i32, i32) {
    %c0_i32 = arith.constant 0 : i32
    %c0_i32_0 = arith.constant 0 : i32
    %c0_i32_1 = arith.constant 0 : i32
    return %c0_i32, %c0_i32_0 : i32, i32
  }
  func.func @transform_2(%arg0: i32) -> (i32, i32, i32) {
    %c0_i32 = arith.constant 0 : i32
    %c0_i32_0 = arith.constant 0 : i32
    %c0_i32_1 = arith.constant 0 : i32
    %c0_i32_2 = arith.constant 0 : i32
    return %c0_i32, %c0_i32_0, %c0_i32_1 : i32, i32, i32
  }
  func.func @transform_3(%arg0: i32) -> (i32, i32, i32) {
    %c0_i32 = arith.constant 0 : i32
    %c0_i32_0 = arith.constant 0 : i32
    %c0_i32_1 = arith.constant 0 : i32
    return %arg0, %c0_i32, %c0_i32_0 : i32, i32, i32
  }
  func.func @transform_4(%arg0: i32) -> (i32, i32, i32) {
    %c0_i32 = arith.constant 0 : i32
    %c0_i32_0 = arith.constant 0 : i32
    %c0_i32_1 = arith.constant 0 : i32
    return %arg0, %c0_i32, %c0_i32_0 : i32, i32, i32
  }
}

module attributes {stable_mosaic.version = 11 : i64} {
  func.func @_bn_add_relu_kernel(%arg0: i32, %arg1: memref<512x128xf32, #tpu.memory_space<vmem>>, %arg2: memref<2x128xf32, #tpu.memory_space<vmem>>, %arg3: memref<512x128xf32, #tpu.memory_space<vmem>>, %arg4: memref<512x128xf32, #tpu.memory_space<vmem>>) attributes {dimension_semantics = [#tpu.dimension_semantics<parallel>], iteration_bounds = array<i64: 1>, scalar_prefetch = 0 : i64, scratch_operands = 0 : i64, tpu.core_type = #tpu.core_type<tc>, window_params = [{transform_indices = @transform_0, window_bounds = array<i64: 512, 128>}, {pipeline_mode = #tpu.pipeline_mode<synchronous>, transform_indices = @transform_1, window_bounds = array<i64: 2, 128>}, {transform_indices = @transform_2, window_bounds = array<i64: 512, 128>}, {transform_indices = @transform_3, window_bounds = array<i64: 512, 128>}]} {
    %c0 = arith.constant 0 : index
    %c0_0 = arith.constant 0 : index
    %0 = vector.load %arg1[%c0, %c0_0] : memref<512x128xf32, #tpu.memory_space<vmem>>, vector<512x128xf32>
    %c0_1 = arith.constant 0 : index
    %c0_2 = arith.constant 0 : index
    %1 = vector.load %arg2[%c0_1, %c0_2] : memref<2x128xf32, #tpu.memory_space<vmem>>, vector<1x128xf32>
    %2 = vector.broadcast %1 : vector<1x128xf32> to vector<512x128xf32>
    %3 = arith.mulf %0, %2 : vector<512x128xf32>
    %c1 = arith.constant 1 : index
    %c0_3 = arith.constant 0 : index
    %4 = vector.load %arg2[%c1, %c0_3] : memref<2x128xf32, #tpu.memory_space<vmem>>, vector<1x128xf32>
    %5 = vector.broadcast %4 : vector<1x128xf32> to vector<512x128xf32>
    %6 = arith.addf %3, %5 : vector<512x128xf32>
    %c0_4 = arith.constant 0 : index
    %c0_5 = arith.constant 0 : index
    %7 = vector.load %arg3[%c0_4, %c0_5] : memref<512x128xf32, #tpu.memory_space<vmem>>, vector<512x128xf32>
    %8 = arith.addf %6, %7 : vector<512x128xf32>
    %cst = arith.constant 0.000000e+00 : f32
    %9 = vector.broadcast %cst : f32 to vector<512x128xf32>
    %10 = arith.maximumf %8, %9 : vector<512x128xf32>
    %c0_6 = arith.constant 0 : index
    %c0_7 = arith.constant 0 : index
    %11 = vector.load %arg4[%c0_6, %c0_7] : memref<512x128xf32, #tpu.memory_space<vmem>>, vector<512x128xf32>
    tpu.vector_store %arg4[%c0_6, %c0_7], %10 {strides = array<i32>} : memref<512x128xf32, #tpu.memory_space<vmem>>, vector<512x128xf32>,
    return
  }
  func.func @transform_0(%arg0: i32) -> (i32, i32) {
    %c0_i32 = arith.constant 0 : i32
    %c0_i32_0 = arith.constant 0 : i32
    return %arg0, %c0_i32 : i32, i32
  }
  func.func @transform_1(%arg0: i32) -> (i32, i32) {
    %c0_i32 = arith.constant 0 : i32
    %c0_i32_0 = arith.constant 0 : i32
    %c0_i32_1 = arith.constant 0 : i32
    return %c0_i32, %c0_i32_0 : i32, i32
  }
  func.func @transform_2(%arg0: i32) -> (i32, i32) {
    %c0_i32 = arith.constant 0 : i32
    %c0_i32_0 = arith.constant 0 : i32
    return %arg0, %c0_i32 : i32, i32
  }
  func.func @transform_3(%arg0: i32) -> (i32, i32) {
    %c0_i32 = arith.constant 0 : i32
    %c0_i32_0 = arith.constant 0 : i32
    return %arg0, %c0_i32 : i32, i32
  }
}

</mosaic_0001>

<llo_original>
// kernel: block_forward.4
$region0: #{block_forward.4}
  #allocation0 [shape = 'u32[]', space=smem, size = 0x4, offset = 0x4, fixed_abs, tag = 'smem constant byte address 0x4 - core index']
  #allocation1 [shape = 'u32[72,128]{1,0:T(1,128)}', space=vmem, size = 0x9000, scoped, tag = 'internal scratch']
  %s0 = inlined_call_operand.vmem [shape: bf16[512,128], index: 0, kind: input, shape index: {}]
  %s1 = inlined_call_operand.vmem [shape: bf16[128,128], index: 1, kind: input, shape index: {}]
  %s2 = inlined_call_operand.vmem [shape: bf16[512,128], index: 2, kind: output, shape index: {0}]
  %s3 = inlined_call_operand.vmem [shape: f32[1,2,128], index: 3, kind: output, shape index: {1}]
  %4 = xla_tuple %s2, %s3
  %s5 = sld [smem:[#allocation0]]
  $region26: #{block_forward.4} parent=0
    _
  %s7 = ssub.s32 1, %s5
  %s8 = scalar_select 0, %s7, %s5
  // Predicated region
  $region2: #{block_forward.4} parent=0 // pred_check
    _
  $region3: #{block_forward.4} parent=0 // pred_check_branch
    %10 = sbr.rel (0) target = $region5
  $region4: #{block_forward.4} parent=0 // pred_region
    _
  $region5: #{block_forward.4} parent=0 // pred_fallthru
    _
  // Predicated region
  $region6: #{block_forward.4} parent=0 // pred_check
    _
  $region7: #{block_forward.4} parent=0 // pred_check_branch
    %12 = sbr.rel (0) target = $region9
  $region8: #{block_forward.4} parent=0 // pred_region
    _
  $region9: #{block_forward.4} parent=0 // pred_fallthru
    _
  %v13 = vld [vmem:[%s0] sm:$0xf]
  %v14 = vld [vmem:[%s0 + $0x4] sm:$0xf]
  %v15 = vld [vmem:[%s0 + $0x8] sm:$0xf]
  %v16 = vld [vmem:[%s0 + $0xc] sm:$0xf]
  %v17 = vld [vmem:[%s0 + $0x10] sm:$0xf]
  %v18 = vld [vmem:[%s0 + $0x14] sm:$0xf]
  %v19 = vld [vmem:[%s0 + $0x18] sm:$0xf]
  %v20 = vld [vmem:[%s0 + $0x1c] sm:$0xf]
  %v21 = vld [vmem:[%s0 + $0x20] sm:$0xf]
  %v22 = vld [vmem:[%s0 + $0x24] sm:$0xf]
  %v23 = vld [vmem:[%s0 + $0x28] sm:$0xf]
  %v24 = vld [vmem:[%s0 + $0x2c] sm:$0xf]
  %v25 = vld [vmem:[%s0 + $0x30] sm:$0xf]
  %v26 = vld [vmem:[%s0 + $0x34] sm:$0xf]
  %v27 = vld [vmem:[%s0 + $0x38] sm:$0xf]
  %v28 = vld [vmem:[%s0 + $0x3c] sm:$0xf]
  %v29 = vld [vmem:[%s0 + $0x40] sm:$0xf]
  %v30 = vld [vmem:[%s0 + $0x44] sm:$0xf]
  %v31 = vld [vmem:[%s0 + $0x48] sm:$0xf]
  %v32 = vld [vmem:[%s0 + $0x4c] sm:$0xf]
  %v33 = vld [vmem:[%s0 + $0x50] sm:$0xf]
  %v34 = vld [vmem:[%s0 + $0x54] sm:$0xf]
  %v35 = vld [vmem:[%s0 + $0x58] sm:$0xf]
  %v36 = vld [vmem:[%s0 + $0x5c] sm:$0xf]
  %v37 = vld [vmem:[%s0 + $0x60] sm:$0xf]
  %v38 = vld [vmem:[%s0 + $0x64] sm:$0xf]
  %v39 = vld [vmem:[%s0 + $0x68] sm:$0xf]
  %v40 = vld [vmem:[%s0 + $0x6c] sm:$0xf]
  %v41 = vld [vmem:[%s0 + $0x70] sm:$0xf]
  %v42 = vld [vmem:[%s0 + $0x74] sm:$0xf]
  %v43 = vld [vmem:[%s0 + $0x78] sm:$0xf]
  %v44 = vld [vmem:[%s0 + $0x7c] sm:$0xf]
  %v45 = vld [vmem:[%s0 + $0x80] sm:$0xf]
  %v46 = vld [vmem:[%s0 + $0x84] sm:$0xf]
  %v47 = vld [vmem:[%s0 + $0x88] sm:$0xf]
  %v48 = vld [vmem:[%s0 + $0x8c] sm:$0xf]
  %v49 = vld [vmem:[%s0 + $0x90] sm:$0xf]
  %v50 = vld [vmem:[%s0 + $0x94] sm:$0xf]
  %v51 = vld [vmem:[%s0 + $0x98] sm:$0xf]
  %v52 = vld [vmem:[%s0 + $0x9c] sm:$0xf]
  %v53 = vld [vmem:[%s0 + $0xa0] sm:$0xf]
  %v54 = vld [vmem:[%s0 + $0xa4] sm:$0xf]
  %v55 = vld [vmem:[%s0 + $0xa8] sm:$0xf]
  %v56 = vld [vmem:[%s0 + $0xac] sm:$0xf]
  %v57 = vld [vmem:[%s0 + $0xb0] sm:$0xf]
  %v58 = vld [vmem:[%s0 + $0xb4] sm:$0xf]
  %v59 = vld [vmem:[%s0 + $0xb8] sm:$0xf]
  %v60 = vld [vmem:[%s0 + $0xbc] sm:$0xf]
  %v61 = vld [vmem:[%s0 + $0xc0] sm:$0xf]
  %v62 = vld [vmem:[%s0 + $0xc4] sm:$0xf]
  %v63 = vld [vmem:[%s0 + $0xc8] sm:$0xf]
  %v64 = vld [vmem:[%s0 + $0xcc] sm:$0xf]
  %v65 = vld [vmem:[%s0 + $0xd0] sm:$0xf]
  %v66 = vld [vmem:[%s0 + $0xd4] sm:$0xf]
  %v67 = vld [vmem:[%s0 + $0xd8] sm:$0xf]
  %v68 = vld [vmem:[%s0 + $0xdc] sm:$0xf]
  %v69 = vld [vmem:[%s0 + $0xe0] sm:$0xf]
  %v70 = vld [vmem:[%s0 + $0xe4] sm:$0xf]
  %v71 = vld [vmem:[%s0 + $0xe8] sm:$0xf]
  %v72 = vld [vmem:[%s0 + $0xec] sm:$0xf]
  %v73 = vld [vmem:[%s0 + $0xf0] sm:$0xf]
  %v74 = vld [vmem:[%s0 + $0xf4] sm:$0xf]
  %v75 = vld [vmem:[%s0 + $0xf8] sm:$0xf]
  %v76 = vld [vmem:[%s0 + $0xfc] sm:$0xf]
  %v77 = vld [vmem:[%s1] sm:$0xf]
  %v78 = vld [vmem:[%s1 + $0x4] sm:$0xf]
  %v79 = vld [vmem:[%s1 + $0x8] sm:$0xf]
  %v80 = vld [vmem:[%s1 + $0xc] sm:$0xf]
  %v81 = vld [vmem:[%s1 + $0x10] sm:$0xf]
  %v82 = vld [vmem:[%s1 + $0x14] sm:$0xf]
  %v83 = vld [vmem:[%s1 + $0x18] sm:$0xf]
  %v84 = vld [vmem:[%s1 + $0x1c] sm:$0xf]
  %v85 = vld [vmem:[%s1 + $0x20] sm:$0xf]
  %v86 = vld [vmem:[%s1 + $0x24] sm:$0xf]
  %v87 = vld [vmem:[%s1 + $0x28] sm:$0xf]
  %v88 = vld [vmem:[%s1 + $0x2c] sm:$0xf]
  %v89 = vld [vmem:[%s1 + $0x30] sm:$0xf]
  %v90 = vld [vmem:[%s1 + $0x34] sm:$0xf]
  %v91 = vld [vmem:[%s1 + $0x38] sm:$0xf]
  %v92 = vld [vmem:[%s1 + $0x3c] sm:$0xf]
  %v157 = vunpack.c.l.b16 %v13
  %v158 = vunpack.c.l.b16 %v14
  %v159 = vunpack.c.l.b16 %v15
  %v160 = vunpack.c.l.b16 %v16
  %v161 = vunpack.c.l.b16 %v17
  %v162 = vunpack.c.l.b16 %v18
  %v163 = vunpack.c.l.b16 %v19
  %v164 = vunpack.c.l.b16 %v20
  %v165 = vunpack.c.l.b16 %v21
  %v166 = vunpack.c.l.b16 %v22
  %v167 = vunpack.c.l.b16 %v23
  %v168 = vunpack.c.l.b16 %v24
  %v169 = vunpack.c.l.b16 %v25
  %v170 = vunpack.c.l.b16 %v26
  %v171 = vunpack.c.l.b16 %v27
  %v172 = vunpack.c.l.b16 %v28
  %v173 = vunpack.c.l.b16 %v29
  %v174 = vunpack.c.l.b16 %v30
  %v175 = vunpack.c.l.b16 %v31
  %v176 = vunpack.c.l.b16 %v32
  %v177 = vunpack.c.l.b16 %v33
  %v178 = vunpack.c.l.b16 %v34
  %v179 = vunpack.c.l.b16 %v35
  %v180 = vunpack.c.l.b16 %v36
  %v181 = vunpack.c.l.b16 %v37
  %v182 = vunpack.c.l.b16 %v38
  %v183 = vunpack.c.l.b16 %v39
  %v184 = vunpack.c.l.b16 %v40
  %v185 = vunpack.c.l.b16 %v41
  %v186 = vunpack.c.l.b16 %v42
  %v187 = vunpack.c.l.b16 %v43
  %v188 = vunpack.c.l.b16 %v44
  %v189 = vunpack.c.l.b16 %v45
  %v190 = vunpack.c.l.b16 %v46
  %v191 = vunpack.c.l.b16 %v47
  %v192 = vunpack.c.l.b16 %v48
  %v193 = vunpack.c.l.b16 %v49
  %v194 = vunpack.c.l.b16 %v50
  %v195 = vunpack.c.l.b16 %v51
  %v196 = vunpack.c.l.b16 %v52
  %v197 = vunpack.c.l.b16 %v53
  %v198 = vunpack.c.l.b16 %v54
  %v199 = vunpack.c.l.b16 %v55
  %v200 = vunpack.c.l.b16 %v56
  %v201 = vunpack.c.l.b16 %v57
  %v202 = vunpack.c.l.b16 %v58
  %v203 = vunpack.c.l.b16 %v59
  %v204 = vunpack.c.l.b16 %v60
  %v205 = vunpack.c.l.b16 %v61
  %v206 = vunpack.c.l.b16 %v62
  %v207 = vunpack.c.l.b16 %v63
  %v208 = vunpack.c.l.b16 %v64
  %v209 = vunpack.c.l.b16 %v65
  %v210 = vunpack.c.l.b16 %v66
  %v211 = vunpack.c.l.b16 %v67
  %v212 = vunpack.c.l.b16 %v68
  %v213 = vunpack.c.l.b16 %v69
  %v214 = vunpack.c.l.b16 %v70
  %v215 = vunpack.c.l.b16 %v71
  %v216 = vunpack.c.l.b16 %v72
  %v217 = vunpack.c.l.b16 %v73
  %v218 = vunpack.c.l.b16 %v74
  %v219 = vunpack.c.l.b16 %v75
  %v220 = vunpack.c.l.b16 %v76
  %v221 = vpack.c.b16 %v158, %v157
  %v222 = vpack.c.b16 %v160, %v159
  %v223 = vpack.c.b16 %v162, %v161
  %v224 = vpack.c.b16 %v164, %v163
  %v225 = vpack.c.b16 %v166, %v165
  %v226 = vpack.c.b16 %v168, %v167
  %v227 = vpack.c.b16 %v170, %v169
  %v228 = vpack.c.b16 %v172, %v171
  %v229 = vpack.c.b16 %v174, %v173
  %v230 = vpack.c.b16 %v176, %v175
  %v231 = vpack.c.b16 %v178, %v177
  %v232 = vpack.c.b16 %v180, %v179
  %v233 = vpack.c.b16 %v182, %v181
  %v234 = vpack.c.b16 %v184, %v183
  %v235 = vpack.c.b16 %v186, %v185
  %v236 = vpack.c.b16 %v188, %v187
  %v237 = vpack.c.b16 %v190, %v189
  %v238 = vpack.c.b16 %v192, %v191
  %v239 = vpack.c.b16 %v194, %v193
  %v240 = vpack.c.b16 %v196, %v195
  %v241 = vpack.c.b16 %v198, %v197
  %v242 = vpack.c.b16 %v200, %v199
  %v243 = vpack.c.b16 %v202, %v201
  %v244 = vpack.c.b16 %v204, %v203
  %v245 = vpack.c.b16 %v206, %v205
  %v246 = vpack.c.b16 %v208, %v207
  %v247 = vpack.c.b16 %v210, %v209
  %v248 = vpack.c.b16 %v212, %v211
  %v249 = vpack.c.b16 %v214, %v213
  %v250 = vpack.c.b16 %v216, %v215
  %v251 = vpack.c.b16 %v218, %v217
  %v252 = vpack.c.b16 %v220, %v219
  %v301 = vunpack.c.l.b16 %v77
  %v302 = vunpack.c.l.b16 %v78
  %v303 = vunpack.c.l.b16 %v79
  %v304 = vunpack.c.l.b16 %v80
  %v305 = vunpack.c.l.b16 %v81
  %v306 = vunpack.c.l.b16 %v82
  %v307 = vunpack.c.l.b16 %v83
  %v308 = vunpack.c.l.b16 %v84
  %v309 = vunpack.c.l.b16 %v85
  %v310 = vunpack.c.l.b16 %v86
  %v311 = vunpack.c.l.b16 %v87
  %v312 = vunpack.c.l.b16 %v88
  %v313 = vunpack.c.l.b16 %v89
  %v314 = vunpack.c.l.b16 %v90
  %v315 = vunpack.c.l.b16 %v91
  %v316 = vunpack.c.l.b16 %v92
  %v317 = vpack.c.b16 %v302, %v301
  %v318 = vpack.c.b16 %v304, %v303
  %v319 = vpack.c.b16 %v306, %v305
  %v320 = vpack.c.b16 %v308, %v307
  %v321 = vpack.c.b16 %v310, %v309
  %v322 = vpack.c.b16 %v312, %v311
  %v323 = vpack.c.b16 %v314, %v313
  %v324 = vpack.c.b16 %v316, %v315
  %333 = vmatpush.bf16.msra.mxu0 %v324
  %334 = vmatpush.bf16.msra.mxu0 %v323
  %335 = vmatpush.bf16.msra.mxu0 %v322
  %336 = vmatpush.bf16.msra.mxu0 %v321
  %337 = vmatpush.bf16.msra.mxu0 %v320
  %338 = vmatpush.bf16.msra.mxu0 %v319
  %339 = vmatpush.bf16.msra.mxu0 %v318
  %340 = vmatpush.bf16.msra.mxu0 %v317
  %341 = vmatmul.bf16.gmra.mxu0 %v221
  %v342 = vpop.f32.mrf.mxu0
  %v343 = vadd.f32 0.0, %v342
  %v344 = vpop.f32.mrf.mxu0
  %v345 = vadd.f32 0.0, %v344
  %346 = vmatmul.bf16.gmra.mxu0 %v222
  %v347 = vpop.f32.mrf.mxu0
  %v348 = vadd.f32 0.0, %v347
  %v349 = vpop.f32.mrf.mxu0
  %v350 = vadd.f32 0.0, %v349
  %351 = vmatmul.bf16.gmra.mxu0 %v223
  %v352 = vpop.f32.mrf.mxu0
  %v353 = vadd.f32 0.0, %v352
  %v354 = vpop.f32.mrf.mxu0
  %v355 = vadd.f32 0.0, %v354
  %356 = vmatmul.bf16.gmra.mxu0 %v224
  %v357 = vpop.f32.mrf.mxu0
  %v358 = vadd.f32 0.0, %v357
  %v359 = vpop.f32.mrf.mxu0
  %v360 = vadd.f32 0.0, %v359
  %361 = vmatmul.bf16.gmra.mxu0 %v225
  %v362 = vpop.f32.mrf.mxu0
  %v363 = vadd.f32 0.0, %v362
  %v364 = vpop.f32.mrf.mxu0
  %v365 = vadd.f32 0.0, %v364
  %366 = vmatmul.bf16.gmra.mxu0 %v226
  %v367 = vpop.f32.mrf.mxu0
  %v368 = vadd.f32 0.0, %v367
  %v369 = vpop.f32.mrf.mxu0
  %v370 = vadd.f32 0.0, %v369
  %371 = vmatmul.bf16.gmra.mxu0 %v227
  %v372 = vpop.f32.mrf.mxu0
  %v373 = vadd.f32 0.0, %v372
  %v374 = vpop.f32.mrf.mxu0
  %v375 = vadd.f32 0.0, %v374
  %376 = vmatmul.bf16.gmra.mxu0 %v228
  %v377 = vpop.f32.mrf.mxu0
  %v378 = vadd.f32 0.0, %v377
  %v379 = vpop.f32.mrf.mxu0
  %v380 = vadd.f32 0.0, %v379
  %381 = vmatmul.bf16.gmra.mxu0 %v229
  %v382 = vpop.f32.mrf.mxu0
  %v383 = vadd.f32 0.0, %v382
  %v384 = vpop.f32.mrf.mxu0
  %v385 = vadd.f32 0.0, %v384
  %386 = vmatmul.bf16.gmra.mxu0 %v230
  %v387 = vpop.f32.mrf.mxu0
  %v388 = vadd.f32 0.0, %v387
  %v389 = vpop.f32.mrf.mxu0
  %v390 = vadd.f32 0.0, %v389
  %391 = vmatmul.bf16.gmra.mxu0 %v231
  %v392 = vpop.f32.mrf.mxu0
  %v393 = vadd.f32 0.0, %v392
  %v394 = vpop.f32.mrf.mxu0
  %v395 = vadd.f32 0.0, %v394
  %396 = vmatmul.bf16.gmra.mxu0 %v232
  %v397 = vpop.f32.mrf.mxu0
  %v398 = vadd.f32 0.0, %v397
  %v399 = vpop.f32.mrf.mxu0
  %v400 = vadd.f32 0.0, %v399
  %401 = vmatmul.bf16.gmra.mxu0 %v233
  %v402 = vpop.f32.mrf.mxu0
  %v403 = vadd.f32 0.0, %v402
  %v404 = vpop.f32.mrf.mxu0
  %v405 = vadd.f32 0.0, %v404
  %406 = vmatmul.bf16.gmra.mxu0 %v234
  %v407 = vpop.f32.mrf.mxu0
  %v408 = vadd.f32 0.0, %v407
  %v409 = vpop.f32.mrf.mxu0
  %v410 = vadd.f32 0.0, %v409
  %411 = vmatmul.bf16.gmra.mxu0 %v235
  %v412 = vpop.f32.mrf.mxu0
  %v413 = vadd.f32 0.0, %v412
  %v414 = vpop.f32.mrf.mxu0
  %v415 = vadd.f32 0.0, %v414
  %416 = vmatmul.bf16.gmra.mxu0 %v236
  %v417 = vpop.f32.mrf.mxu0
  %v418 = vadd.f32 0.0, %v417
  %v419 = vpop.f32.mrf.mxu0
  %v420 = vadd.f32 0.0, %v419
  %421 = vmatmul.bf16.gmra.mxu0 %v237
  %v422 = vpop.f32.mrf.mxu0
  %v423 = vadd.f32 0.0, %v422
  %v424 = vpop.f32.mrf.mxu0
  %v425 = vadd.f32 0.0, %v424
  %426 = vmatmul.bf16.gmra.mxu0 %v238
  %v427 = vpop.f32.mrf.mxu0
  %v428 = vadd.f32 0.0, %v427
  %v429 = vpop.f32.mrf.mxu0
  %v430 = vadd.f32 0.0, %v429
  %431 = vmatmul.bf16.gmra.mxu0 %v239
  %v432 = vpop.f32.mrf.mxu0
  %v433 = vadd.f32 0.0, %v432
  %v434 = vpop.f32.mrf.mxu0
  %v435 = vadd.f32 0.0, %v434
  %436 = vmatmul.bf16.gmra.mxu0 %v240
  %v437 = vpop.f32.mrf.mxu0
  %v438 = vadd.f32 0.0, %v437
  %v439 = vpop.f32.mrf.mxu0
  %v440 = vadd.f32 0.0, %v439
  %441 = vmatmul.bf16.gmra.mxu0 %v241
  %v442 = vpop.f32.mrf.mxu0
  %v443 = vadd.f32 0.0, %v442
  %v444 = vpop.f32.mrf.mxu0
  %v445 = vadd.f32 0.0, %v444
  %446 = vmatmul.bf16.gmra.mxu0 %v242
  %v447 = vpop.f32.mrf.mxu0
  %v448 = vadd.f32 0.0, %v447
  %v449 = vpop.f32.mrf.mxu0
  %v450 = vadd.f32 0.0, %v449
  %451 = vmatmul.bf16.gmra.mxu0 %v243
  %v452 = vpop.f32.mrf.mxu0
  %v453 = vadd.f32 0.0, %v452
  %v454 = vpop.f32.mrf.mxu0
  %v455 = vadd.f32 0.0, %v454
  %456 = vmatmul.bf16.gmra.mxu0 %v244
  %v457 = vpop.f32.mrf.mxu0
  %v458 = vadd.f32 0.0, %v457
  %v459 = vpop.f32.mrf.mxu0
  %v460 = vadd.f32 0.0, %v459
  %461 = vmatmul.bf16.gmra.mxu0 %v245
  %v462 = vpop.f32.mrf.mxu0
  %v463 = vadd.f32 0.0, %v462
  %v464 = vpop.f32.mrf.mxu0
  %v465 = vadd.f32 0.0, %v464
  %466 = vmatmul.bf16.gmra.mxu0 %v246
  %v467 = vpop.f32.mrf.mxu0
  %v468 = vadd.f32 0.0, %v467
  %v469 = vpop.f32.mrf.mxu0
  %v470 = vadd.f32 0.0, %v469
  %471 = vmatmul.bf16.gmra.mxu0 %v247
  %v472 = vpop.f32.mrf.mxu0
  %v473 = vadd.f32 0.0, %v472
  %v474 = vpop.f32.mrf.mxu0
  %v475 = vadd.f32 0.0, %v474
  %476 = vmatmul.bf16.gmra.mxu0 %v248
  %v477 = vpop.f32.mrf.mxu0
  %v478 = vadd.f32 0.0, %v477
  %v479 = vpop.f32.mrf.mxu0
  %v480 = vadd.f32 0.0, %v479
  %481 = vmatmul.bf16.gmra.mxu0 %v249
  %v482 = vpop.f32.mrf.mxu0
  %v483 = vadd.f32 0.0, %v482
  %v484 = vpop.f32.mrf.mxu0
  %v485 = vadd.f32 0.0, %v484
  %486 = vmatmul.bf16.gmra.mxu0 %v250
  %v487 = vpop.f32.mrf.mxu0
  %v488 = vadd.f32 0.0, %v487
  %v489 = vpop.f32.mrf.mxu0
  %v490 = vadd.f32 0.0, %v489
  %491 = vmatmul.bf16.gmra.mxu0 %v251
  %v492 = vpop.f32.mrf.mxu0
  %v493 = vadd.f32 0.0, %v492
  %v494 = vpop.f32.mrf.mxu0
  %v495 = vadd.f32 0.0, %v494
  %496 = vmatmul.bf16.gmra.mxu0 %v252
  %v497 = vpop.f32.mrf.mxu0
  %v498 = vadd.f32 0.0, %v497
  %v499 = vpop.f32.mrf.mxu0
  %v500 = vadd.f32 0.0, %v499
  %501 = vdwg.mxu0
  %v502 = vpack.c.bf16 %v343, %v343
  %v503 = vpack.c.bf16 %v345, %v345
  %v504 = vpack.c.bf16 %v348, %v348
  %v505 = vpack.c.bf16 %v350, %v350
  %v506 = vpack.c.bf16 %v353, %v353
  %v507 = vpack.c.bf16 %v355, %v355
  %v508 = vpack.c.bf16 %v358, %v358
  %v509 = vpack.c.bf16 %v360, %v360
  %v510 = vpack.c.bf16 %v363, %v363
  %v511 = vpack.c.bf16 %v365, %v365
  %v512 = vpack.c.bf16 %v368, %v368
  %v513 = vpack.c.bf16 %v370, %v370
  %v514 = vpack.c.bf16 %v373, %v373
  %v515 = vpack.c.bf16 %v375, %v375
  %v516 = vpack.c.bf16 %v378, %v378
  %v517 = vpack.c.bf16 %v380, %v380
  %v518 = vpack.c.bf16 %v383, %v383
  %v519 = vpack.c.bf16 %v385, %v385
  %v520 = vpack.c.bf16 %v388, %v388
  %v521 = vpack.c.bf16 %v390, %v390
  %v522 = vpack.c.bf16 %v393, %v393
  %v523 = vpack.c.bf16 %v395, %v395
  %v524 = vpack.c.bf16 %v398, %v398
  %v525 = vpack.c.bf16 %v400, %v400
  %v526 = vpack.c.bf16 %v403, %v403
  %v527 = vpack.c.bf16 %v405, %v405
  %v528 = vpack.c.bf16 %v408, %v408
  %v529 = vpack.c.bf16 %v410, %v410
  %v530 = vpack.c.bf16 %v413, %v413
  %v531 = vpack.c.bf16 %v415, %v415
  %v532 = vpack.c.bf16 %v418, %v418
  %v533 = vpack.c.bf16 %v420, %v420
  %v534 = vpack.c.bf16 %v423, %v423
  %v535 = vpack.c.bf16 %v425, %v425
  %v536 = vpack.c.bf16 %v428, %v428
  %v537 = vpack.c.bf16 %v430, %v430
  %v538 = vpack.c.bf16 %v433, %v433
  %v539 = vpack.c.bf16 %v435, %v435
  %v540 = vpack.c.bf16 %v438, %v438
  %v541 = vpack.c.bf16 %v440, %v440
  %v542 = vpack.c.bf16 %v443, %v443
  %v543 = vpack.c.bf16 %v445, %v445
  %v544 = vpack.c.bf16 %v448, %v448
  %v545 = vpack.c.bf16 %v450, %v450
  %v546 = vpack.c.bf16 %v453, %v453
  %v547 = vpack.c.bf16 %v455, %v455
  %v548 = vpack.c.bf16 %v458, %v458
  %v549 = vpack.c.bf16 %v460, %v460
  %v550 = vpack.c.bf16 %v463, %v463
  %v551 = vpack.c.bf16 %v465, %v465
  %v552 = vpack.c.bf16 %v468, %v468
  %v553 = vpack.c.bf16 %v470, %v470
  %v554 = vpack.c.bf16 %v473, %v473
  %v555 = vpack.c.bf16 %v475, %v475
  %v556 = vpack.c.bf16 %v478, %v478
  %v557 = vpack.c.bf16 %v480, %v480
  %v558 = vpack.c.bf16 %v483, %v483
  %v559 = vpack.c.bf16 %v485, %v485
  %v560 = vpack.c.bf16 %v488, %v488
  %v561 = vpack.c.bf16 %v490, %v490
  %v562 = vpack.c.bf16 %v493, %v493
  %v563 = vpack.c.bf16 %v495, %v495
  %v564 = vpack.c.bf16 %v498, %v498
  %v565 = vpack.c.bf16 %v500, %v500
  %566 = vst [vmem:[%s2] sm:$0xf] %v502
  %567 = vst [vmem:[%s2 + $0x4] sm:$0xf] %v503
  %568 = vst [vmem:[%s2 + $0x8] sm:$0xf] %v504
  %569 = vst [vmem:[%s2 + $0xc] sm:$0xf] %v505
  %570 = vst [vmem:[%s2 + $0x10] sm:$0xf] %v506
  %571 = vst [vmem:[%s2 + $0x14] sm:$0xf] %v507
  %572 = vst [vmem:[%s2 + $0x18] sm:$0xf] %v508
  %573 = vst [vmem:[%s2 + $0x1c] sm:$0xf] %v509
  %574 = vst [vmem:[%s2 + $0x20] sm:$0xf] %v510
  %575 = vst [vmem:[%s2 + $0x24] sm:$0xf] %v511
  %576 = vst [vmem:[%s2 + $0x28] sm:$0xf] %v512
  %577 = vst [vmem:[%s2 + $0x2c] sm:$0xf] %v513
  %578 = vst [vmem:[%s2 + $0x30] sm:$0xf] %v514
  %579 = vst [vmem:[%s2 + $0x34] sm:$0xf] %v515
  %580 = vst [vmem:[%s2 + $0x38] sm:$0xf] %v516
  %581 = vst [vmem:[%s2 + $0x3c] sm:$0xf] %v517
  %582 = vst [vmem:[%s2 + $0x40] sm:$0xf] %v518
  %583 = vst [vmem:[%s2 + $0x44] sm:$0xf] %v519
  %584 = vst [vmem:[%s2 + $0x48] sm:$0xf] %v520
  %585 = vst [vmem:[%s2 + $0x4c] sm:$0xf] %v521
  %586 = vst [vmem:[%s2 + $0x50] sm:$0xf] %v522
  %587 = vst [vmem:[%s2 + $0x54] sm:$0xf] %v523
  %588 = vst [vmem:[%s2 + $0x58] sm:$0xf] %v524
  %589 = vst [vmem:[%s2 + $0x5c] sm:$0xf] %v525
  %590 = vst [vmem:[%s2 + $0x60] sm:$0xf] %v526
  %591 = vst [vmem:[%s2 + $0x64] sm:$0xf] %v527
  %592 = vst [vmem:[%s2 + $0x68] sm:$0xf] %v528
  %593 = vst [vmem:[%s2 + $0x6c] sm:$0xf] %v529
  %594 = vst [vmem:[%s2 + $0x70] sm:$0xf] %v530
  %595 = vst [vmem:[%s2 + $0x74] sm:$0xf] %v531
  %596 = vst [vmem:[%s2 + $0x78] sm:$0xf] %v532
  %597 = vst [vmem:[%s2 + $0x7c] sm:$0xf] %v533
  %598 = vst [vmem:[%s2 + $0x80] sm:$0xf] %v534
  %599 = vst [vmem:[%s2 + $0x84] sm:$0xf] %v535
  %600 = vst [vmem:[%s2 + $0x88] sm:$0xf] %v536
  %601 = vst [vmem:[%s2 + $0x8c] sm:$0xf] %v537
  %602 = vst [vmem:[%s2 + $0x90] sm:$0xf] %v538
  %603 = vst [vmem:[%s2 + $0x94] sm:$0xf] %v539
  %604 = vst [vmem:[%s2 + $0x98] sm:$0xf] %v540
  %605 = vst [vmem:[%s2 + $0x9c] sm:$0xf] %v541
  %606 = vst [vmem:[%s2 + $0xa0] sm:$0xf] %v542
  %607 = vst [vmem:[%s2 + $0xa4] sm:$0xf] %v543
  %608 = vst [vmem:[%s2 + $0xa8] sm:$0xf] %v544
  %609 = vst [vmem:[%s2 + $0xac] sm:$0xf] %v545
  %610 = vst [vmem:[%s2 + $0xb0] sm:$0xf] %v546
  %611 = vst [vmem:[%s2 + $0xb4] sm:$0xf] %v547
  %612 = vst [vmem:[%s2 + $0xb8] sm:$0xf] %v548
  %613 = vst [vmem:[%s2 + $0xbc] sm:$0xf] %v549
  %614 = vst [vmem:[%s2 + $0xc0] sm:$0xf] %v550
  %615 = vst [vmem:[%s2 + $0xc4] sm:$0xf] %v551
  %616 = vst [vmem:[%s2 + $0xc8] sm:$0xf] %v552
  %617 = vst [vmem:[%s2 + $0xcc] sm:$0xf] %v553
  %618 = vst [vmem:[%s2 + $0xd0] sm:$0xf] %v554
  %619 = vst [vmem:[%s2 + $0xd4] sm:$0xf] %v555
  %620 = vst [vmem:[%s2 + $0xd8] sm:$0xf] %v556
  %621 = vst [vmem:[%s2 + $0xdc] sm:$0xf] %v557
  %622 = vst [vmem:[%s2 + $0xe0] sm:$0xf] %v558
  %623 = vst [vmem:[%s2 + $0xe4] sm:$0xf] %v559
  %624 = vst [vmem:[%s2 + $0xe8] sm:$0xf] %v560
  %625 = vst [vmem:[%s2 + $0xec] sm:$0xf] %v561
  %626 = vst [vmem:[%s2 + $0xf0] sm:$0xf] %v562
  %627 = vst [vmem:[%s2 + $0xf4] sm:$0xf] %v563
  %628 = vst [vmem:[%s2 + $0xf8] sm:$0xf] %v564
  %629 = vst [vmem:[%s2 + $0xfc] sm:$0xf] %v565
  %v630 = vadd.f32 %v343, %v345
  %v631 = vadd.f32 %v630, %v348
  %v632 = vadd.f32 %v631, %v350
  %v633 = vadd.f32 %v632, %v353
  %v634 = vadd.f32 %v633, %v355
  %v635 = vadd.f32 %v634, %v358
  %v636 = vadd.f32 %v635, %v360
  %v637 = vadd.f32 %v636, %v363
  %v638 = vadd.f32 %v637, %v365
  %v639 = vadd.f32 %v638, %v368
  %v640 = vadd.f32 %v639, %v370
  %v641 = vadd.f32 %v640, %v373
  %v642 = vadd.f32 %v641, %v375
  %v643 = vadd.f32 %v642, %v378
  %v644 = vadd.f32 %v643, %v380
  %v645 = vadd.f32 %v644, %v383
  %v646 = vadd.f32 %v645, %v385
  %v647 = vadd.f32 %v646, %v388
  %v648 = vadd.f32 %v647, %v390
  %v649 = vadd.f32 %v648, %v393
  %v650 = vadd.f32 %v649, %v395
  %v651 = vadd.f32 %v650, %v398
  %v652 = vadd.f32 %v651, %v400
  %v653 = vadd.f32 %v652, %v403
  %v654 = vadd.f32 %v653, %v405
  %v655 = vadd.f32 %v654, %v408
  %v656 = vadd.f32 %v655, %v410
  %v657 = vadd.f32 %v656, %v413
  %v658 = vadd.f32 %v657, %v415
  %v659 = vadd.f32 %v658, %v418
  %v660 = vadd.f32 %v659, %v420
  %v661 = vadd.f32 %v660, %v423
  %v662 = vadd.f32 %v661, %v425
  %v663 = vadd.f32 %v662, %v428
  %v664 = vadd.f32 %v663, %v430
  %v665 = vadd.f32 %v664, %v433
  %v666 = vadd.f32 %v665, %v435
  %v667 = vadd.f32 %v666, %v438
  %v668 = vadd.f32 %v667, %v440
  %v669 = vadd.f32 %v668, %v443
  %v670 = vadd.f32 %v669, %v445
  %v671 = vadd.f32 %v670, %v448
  %v672 = vadd.f32 %v671, %v450
  %v673 = vadd.f32 %v672, %v453
  %v674 = vadd.f32 %v673, %v455
  %v675 = vadd.f32 %v674, %v458
  %v676 = vadd.f32 %v675, %v460
  %v677 = vadd.f32 %v676, %v463
  %v678 = vadd.f32 %v677, %v465
  %v679 = vadd.f32 %v678, %v468
  %v680 = vadd.f32 %v679, %v470
  %v681 = vadd.f32 %v680, %v473
  %v682 = vadd.f32 %v681, %v475
  %v683 = vadd.f32 %v682, %v478
  %v684 = vadd.f32 %v683, %v480
  %v685 = vadd.f32 %v684, %v483
  %v686 = vadd.f32 %v685, %v485
  %v687 = vadd.f32 %v686, %v488
  %v688 = vadd.f32 %v687, %v490
  %v689 = vadd.f32 %v688, %v493
  %v690 = vadd.f32 %v689, %v495
  %v691 = vadd.f32 %v690, %v498
  %v692 = vadd.f32 %v691, %v500
  %v693 = vrot.slane %v692, 4
  %v694 = vadd.f32 %v692, %v693
  %v695 = vrot.slane %v694, 2
  %v696 = vadd.f32 %v694, %v695
  %v697 = vrot.slane %v696, 1
  %v698 = vadd.f32 %v696, %v697
  %699 = vst [vmem:[%s3] sm:$0x1] %v698
  %v700 = vmul.f32 %v343, %v343
  %v701 = vmul.f32 %v345, %v345
  %v702 = vmul.f32 %v348, %v348
  %v703 = vmul.f32 %v350, %v350
  %v704 = vmul.f32 %v353, %v353
  %v705 = vmul.f32 %v355, %v355
  %v706 = vmul.f32 %v358, %v358
  %v707 = vmul.f32 %v360, %v360
  %v708 = vmul.f32 %v363, %v363
  %v709 = vmul.f32 %v365, %v365
  %v710 = vmul.f32 %v368, %v368
  %v711 = vmul.f32 %v370, %v370
  %v712 = vmul.f32 %v373, %v373
  %v713 = vmul.f32 %v375, %v375
  %v714 = vmul.f32 %v378, %v378
  %v715 = vmul.f32 %v380, %v380
  %v716 = vmul.f32 %v383, %v383
  %v717 = vmul.f32 %v385, %v385
  %v718 = vmul.f32 %v388, %v388
  %v719 = vmul.f32 %v390, %v390
  %v720 = vmul.f32 %v393, %v393
  %v721 = vmul.f32 %v395, %v395
  %v722 = vmul.f32 %v398, %v398
  %v723 = vmul.f32 %v400, %v400
  %v724 = vmul.f32 %v403, %v403
  %v725 = vmul.f32 %v405, %v405
  %v726 = vmul.f32 %v408, %v408
  %v727 = vmul.f32 %v410, %v410
  %v728 = vmul.f32 %v413, %v413
  %v729 = vmul.f32 %v415, %v415
  %v730 = vmul.f32 %v418, %v418
  %v731 = vmul.f32 %v420, %v420
  %v732 = vmul.f32 %v423, %v423
  %v733 = vmul.f32 %v425, %v425
  %v734 = vmul.f32 %v428, %v428
  %v735 = vmul.f32 %v430, %v430
  %v736 = vmul.f32 %v433, %v433
  %v737 = vmul.f32 %v435, %v435
  %v738 = vmul.f32 %v438, %v438
  %v739 = vmul.f32 %v440, %v440
  %v740 = vmul.f32 %v443, %v443
  %v741 = vmul.f32 %v445, %v445
  %v742 = vmul.f32 %v448, %v448
  %v743 = vmul.f32 %v450, %v450
  %v744 = vmul.f32 %v453, %v453
  %v745 = vmul.f32 %v455, %v455
  %v746 = vmul.f32 %v458, %v458
  %v747 = vmul.f32 %v460, %v460
  %v748 = vmul.f32 %v463, %v463
  %v749 = vmul.f32 %v465, %v465
  %v750 = vmul.f32 %v468, %v468
  %v751 = vmul.f32 %v470, %v470
  %v752 = vmul.f32 %v473, %v473
  %v753 = vmul.f32 %v475, %v475
  %v754 = vmul.f32 %v478, %v478
  %v755 = vmul.f32 %v480, %v480
  %v756 = vmul.f32 %v483, %v483
  %v757 = vmul.f32 %v485, %v485
  %v758 = vmul.f32 %v488, %v488
  %v759 = vmul.f32 %v490, %v490
  %v760 = vmul.f32 %v493, %v493
  %v761 = vmul.f32 %v495, %v495
  %v762 = vmul.f32 %v498, %v498
  %v763 = vmul.f32 %v500, %v500
  %v764 = vadd.f32 %v700, %v701
  %v765 = vadd.f32 %v764, %v702
  %v766 = vadd.f32 %v765, %v703
  %v767 = vadd.f32 %v766, %v704
  %v768 = vadd.f32 %v767, %v705
  %v769 = vadd.f32 %v768, %v706
  %v770 = vadd.f32 %v769, %v707
  %v771 = vadd.f32 %v770, %v708
  %v772 = vadd.f32 %v771, %v709
  %v773 = vadd.f32 %v772, %v710
  %v774 = vadd.f32 %v773, %v711
  %v775 = vadd.f32 %v774, %v712
  %v776 = vadd.f32 %v775, %v713
  %v777 = vadd.f32 %v776, %v714
  %v778 = vadd.f32 %v777, %v715
  %v779 = vadd.f32 %v778, %v716
  %v780 = vadd.f32 %v779, %v717
  %v781 = vadd.f32 %v780, %v718
  %v782 = vadd.f32 %v781, %v719
  %v783 = vadd.f32 %v782, %v720
  %v784 = vadd.f32 %v783, %v721
  %v785 = vadd.f32 %v784, %v722
  %v786 = vadd.f32 %v785, %v723
  %v787 = vadd.f32 %v786, %v724
  %v788 = vadd.f32 %v787, %v725
  %v789 = vadd.f32 %v788, %v726
  %v790 = vadd.f32 %v789, %v727
  %v791 = vadd.f32 %v790, %v728
  %v792 = vadd.f32 %v791, %v729
  %v793 = vadd.f32 %v792, %v730
  %v794 = vadd.f32 %v793, %v731
  %v795 = vadd.f32 %v794, %v732
  %v796 = vadd.f32 %v795, %v733
  %v797 = vadd.f32 %v796, %v734
  %v798 = vadd.f32 %v797, %v735
  %v799 = vadd.f32 %v798, %v736
  %v800 = vadd.f32 %v799, %v737
  %v801 = vadd.f32 %v800, %v738
  %v802 = vadd.f32 %v801, %v739
  %v803 = vadd.f32 %v802, %v740
  %v804 = vadd.f32 %v803, %v741
  %v805 = vadd.f32 %v804, %v742
  %v806 = vadd.f32 %v805, %v743
  %v807 = vadd.f32 %v806, %v744
  %v808 = vadd.f32 %v807, %v745
  %v809 = vadd.f32 %v808, %v746
  %v810 = vadd.f32 %v809, %v747
  %v811 = vadd.f32 %v810, %v748
  %v812 = vadd.f32 %v811, %v749
  %v813 = vadd.f32 %v812, %v750
  %v814 = vadd.f32 %v813, %v751
  %v815 = vadd.f32 %v814, %v752
  %v816 = vadd.f32 %v815, %v753
  %v817 = vadd.f32 %v816, %v754
  %v818 = vadd.f32 %v817, %v755
  %v819 = vadd.f32 %v818, %v756
  %v820 = vadd.f32 %v819, %v757
  %v821 = vadd.f32 %v820, %v758
  %v822 = vadd.f32 %v821, %v759
  %v823 = vadd.f32 %v822, %v760
  %v824 = vadd.f32 %v823, %v761
  %v825 = vadd.f32 %v824, %v762
  %v826 = vadd.f32 %v825, %v763
  %v827 = vrot.slane %v826, 4
  %v828 = vadd.f32 %v826, %v827
  %v829 = vrot.slane %v828, 2
  %v830 = vadd.f32 %v828, %v829
  %v831 = vrot.slane %v830, 1
  %v832 = vadd.f32 %v830, %v831
  %833 = vst [vmem:[%s3 + $0x1] sm:$0x1] %v832
  // Predicated region
  $region10: #{block_forward.4} parent=0 // pred_check
    _
  $region11: #{block_forward.4} parent=0 // pred_check_branch
    %835 = sbr.rel (0) target = $region13
  $region12: #{block_forward.4} parent=0 // pred_region
    _
  $region13: #{block_forward.4} parent=0 // pred_fallthru
    _
  // Predicated region
  $region14: #{block_forward.4} parent=0 // pred_check
    _
  $region15: #{block_forward.4} parent=0 // pred_check_branch
    %837 = sbr.rel (0) target = $region17
  $region16: #{block_forward.4} parent=0 // pred_region
    _
  $region17: #{block_forward.4} parent=0 // pred_fallthru
    _
  // Predicated region
  $region18: #{block_forward.4} parent=0 // pred_check
    _
  $region19: #{block_forward.4} parent=0 // pred_check_branch
    %839 = sbr.rel (0) target = $region21
  $region20: #{block_forward.4} parent=0 // pred_region
    _
  $region21: #{block_forward.4} parent=0 // pred_fallthru
    _
  // Predicated region
  $region22: #{block_forward.4} parent=0 // pred_check
    _
  $region23: #{block_forward.4} parent=0 // pred_check_branch
    %841 = sbr.rel (0) target = $region25
  $region24: #{block_forward.4} parent=0 // pred_region
    _
  $region25: #{block_forward.4} parent=0 // pred_fallthru
    _

// kernel: block_forward.6
$region0: #{block_forward.6}
  #allocation0 [shape = 'u32[]', space=smem, size = 0x4, offset = 0x4, fixed_abs, tag = 'smem constant byte address 0x4 - core index']
  #allocation1 [shape = 'u32[72,128]{1,0:T(1,128)}', space=vmem, size = 0x9000, scoped, tag = 'internal scratch']
  %s0 = inlined_call_operand.vmem [shape: bf16[512,128], index: 0, kind: input, shape index: {}]
  %s1 = inlined_call_operand.vmem [shape: f32[2,128], index: 1, kind: input, shape index: {}]
  %s2 = inlined_call_operand.vmem [shape: bf16[128,128], index: 2, kind: input, shape index: {}]
  %s3 = inlined_call_operand.vmem [shape: f32[512,128], index: 3, kind: output, shape index: {0}]
  %s4 = inlined_call_operand.vmem [shape: f32[1,2,128], index: 4, kind: output, shape index: {1}]
  %5 = xla_tuple %s3, %s4
  %s6 = sld [smem:[#allocation0]]
  $region30: #{block_forward.6} parent=0
    _
  %s8 = ssub.s32 1, %s6
  %s9 = scalar_select 0, %s8, %s6
  // Predicated region
  $region2: #{block_forward.6} parent=0 // pred_check
    _
  $region3: #{block_forward.6} parent=0 // pred_check_branch
    %11 = sbr.rel (0) target = $region5
  $region4: #{block_forward.6} parent=0 // pred_region
    _
  $region5: #{block_forward.6} parent=0 // pred_fallthru
    _
  // Predicated region
  $region6: #{block_forward.6} parent=0 // pred_check
    _
  $region7: #{block_forward.6} parent=0 // pred_check_branch
    %13 = sbr.rel (0) target = $region9
  $region8: #{block_forward.6} parent=0 // pred_region
    _
  $region9: #{block_forward.6} parent=0 // pred_fallthru
    _
  // Predicated region
  $region10: #{block_forward.6} parent=0 // pred_check
    _
  $region11: #{block_forward.6} parent=0 // pred_check_branch
    %15 = sbr.rel (0) target = $region13
  $region12: #{block_forward.6} parent=0 // pred_region
    _
  $region13: #{block_forward.6} parent=0 // pred_fallthru
    _
  %v16 = vld [vmem:[%s0] sm:$0xf]
  %v17 = vld [vmem:[%s0 + $0x4] sm:$0xf]
  %v18 = vld [vmem:[%s0 + $0x8] sm:$0xf]
  %v19 = vld [vmem:[%s0 + $0xc] sm:$0xf]
  %v20 = vld [vmem:[%s0 + $0x10] sm:$0xf]
  %v21 = vld [vmem:[%s0 + $0x14] sm:$0xf]
  %v22 = vld [vmem:[%s0 + $0x18] sm:$0xf]
  %v23 = vld [vmem:[%s0 + $0x1c] sm:$0xf]
  %v24 = vld [vmem:[%s0 + $0x20] sm:$0xf]
  %v25 = vld [vmem:[%s0 + $0x24] sm:$0xf]
  %v26 = vld [vmem:[%s0 + $0x28] sm:$0xf]
  %v27 = vld [vmem:[%s0 + $0x2c] sm:$0xf]
  %v28 = vld [vmem:[%s0 + $0x30] sm:$0xf]
  %v29 = vld [vmem:[%s0 + $0x34] sm:$0xf]
  %v30 = vld [vmem:[%s0 + $0x38] sm:$0xf]
  %v31 = vld [vmem:[%s0 + $0x3c] sm:$0xf]
  %v32 = vld [vmem:[%s0 + $0x40] sm:$0xf]
  %v33 = vld [vmem:[%s0 + $0x44] sm:$0xf]
  %v34 = vld [vmem:[%s0 + $0x48] sm:$0xf]
  %v35 = vld [vmem:[%s0 + $0x4c] sm:$0xf]
  %v36 = vld [vmem:[%s0 + $0x50] sm:$0xf]
  %v37 = vld [vmem:[%s0 + $0x54] sm:$0xf]
  %v38 = vld [vmem:[%s0 + $0x58] sm:$0xf]
  %v39 = vld [vmem:[%s0 + $0x5c] sm:$0xf]
  %v40 = vld [vmem:[%s0 + $0x60] sm:$0xf]
  %v41 = vld [vmem:[%s0 + $0x64] sm:$0xf]
  %v42 = vld [vmem:[%s0 + $0x68] sm:$0xf]
  %v43 = vld [vmem:[%s0 + $0x6c] sm:$0xf]
  %v44 = vld [vmem:[%s0 + $0x70] sm:$0xf]
  %v45 = vld [vmem:[%s0 + $0x74] sm:$0xf]
  %v46 = vld [vmem:[%s0 + $0x78] sm:$0xf]
  %v47 = vld [vmem:[%s0 + $0x7c] sm:$0xf]
  %v48 = vld [vmem:[%s0 + $0x80] sm:$0xf]
  %v49 = vld [vmem:[%s0 + $0x84] sm:$0xf]
  %v50 = vld [vmem:[%s0 + $0x88] sm:$0xf]
  %v51 = vld [vmem:[%s0 + $0x8c] sm:$0xf]
  %v52 = vld [vmem:[%s0 + $0x90] sm:$0xf]
  %v53 = vld [vmem:[%s0 + $0x94] sm:$0xf]
  %v54 = vld [vmem:[%s0 + $0x98] sm:$0xf]
  %v55 = vld [vmem:[%s0 + $0x9c] sm:$0xf]
  %v56 = vld [vmem:[%s0 + $0xa0] sm:$0xf]
  %v57 = vld [vmem:[%s0 + $0xa4] sm:$0xf]
  %v58 = vld [vmem:[%s0 + $0xa8] sm:$0xf]
  %v59 = vld [vmem:[%s0 + $0xac] sm:$0xf]
  %v60 = vld [vmem:[%s0 + $0xb0] sm:$0xf]
  %v61 = vld [vmem:[%s0 + $0xb4] sm:$0xf]
  %v62 = vld [vmem:[%s0 + $0xb8] sm:$0xf]
  %v63 = vld [vmem:[%s0 + $0xbc] sm:$0xf]
  %v64 = vld [vmem:[%s0 + $0xc0] sm:$0xf]
  %v65 = vld [vmem:[%s0 + $0xc4] sm:$0xf]
  %v66 = vld [vmem:[%s0 + $0xc8] sm:$0xf]
  %v67 = vld [vmem:[%s0 + $0xcc] sm:$0xf]
  %v68 = vld [vmem:[%s0 + $0xd0] sm:$0xf]
  %v69 = vld [vmem:[%s0 + $0xd4] sm:$0xf]
  %v70 = vld [vmem:[%s0 + $0xd8] sm:$0xf]
  %v71 = vld [vmem:[%s0 + $0xdc] sm:$0xf]
  %v72 = vld [vmem:[%s0 + $0xe0] sm:$0xf]
  %v73 = vld [vmem:[%s0 + $0xe4] sm:$0xf]
  %v74 = vld [vmem:[%s0 + $0xe8] sm:$0xf]
  %v75 = vld [vmem:[%s0 + $0xec] sm:$0xf]
  %v76 = vld [vmem:[%s0 + $0xf0] sm:$0xf]
  %v77 = vld [vmem:[%s0 + $0xf4] sm:$0xf]
  %v78 = vld [vmem:[%s0 + $0xf8] sm:$0xf]
  %v79 = vld [vmem:[%s0 + $0xfc] sm:$0xf]
  %v80 = vunpack.c.l.bf16 %v16
  %v81 = vunpack.c.l.bf16 %v17
  %v82 = vunpack.c.l.bf16 %v18
  %v83 = vunpack.c.l.bf16 %v19
  %v84 = vunpack.c.l.bf16 %v20
  %v85 = vunpack.c.l.bf16 %v21
  %v86 = vunpack.c.l.bf16 %v22
  %v87 = vunpack.c.l.bf16 %v23
  %v88 = vunpack.c.l.bf16 %v24
  %v89 = vunpack.c.l.bf16 %v25
  %v90 = vunpack.c.l.bf16 %v26
  %v91 = vunpack.c.l.bf16 %v27
  %v92 = vunpack.c.l.bf16 %v28
  %v93 = vunpack.c.l.bf16 %v29
  %v94 = vunpack.c.l.bf16 %v30
  %v95 = vunpack.c.l.bf16 %v31
  %v96 = vunpack.c.l.bf16 %v32
  %v97 = vunpack.c.l.bf16 %v33
  %v98 = vunpack.c.l.bf16 %v34
  %v99 = vunpack.c.l.bf16 %v35
  %v100 = vunpack.c.l.bf16 %v36
  %v101 = vunpack.c.l.bf16 %v37
  %v102 = vunpack.c.l.bf16 %v38
  %v103 = vunpack.c.l.bf16 %v39
  %v104 = vunpack.c.l.bf16 %v40
  %v105 = vunpack.c.l.bf16 %v41
  %v106 = vunpack.c.l.bf16 %v42
  %v107 = vunpack.c.l.bf16 %v43
  %v108 = vunpack.c.l.bf16 %v44
  %v109 = vunpack.c.l.bf16 %v45
  %v110 = vunpack.c.l.bf16 %v46
  %v111 = vunpack.c.l.bf16 %v47
  %v112 = vunpack.c.l.bf16 %v48
  %v113 = vunpack.c.l.bf16 %v49
  %v114 = vunpack.c.l.bf16 %v50
  %v115 = vunpack.c.l.bf16 %v51
  %v116 = vunpack.c.l.bf16 %v52
  %v117 = vunpack.c.l.bf16 %v53
  %v118 = vunpack.c.l.bf16 %v54
  %v119 = vunpack.c.l.bf16 %v55
  %v120 = vunpack.c.l.bf16 %v56
  %v121 = vunpack.c.l.bf16 %v57
  %v122 = vunpack.c.l.bf16 %v58
  %v123 = vunpack.c.l.bf16 %v59
  %v124 = vunpack.c.l.bf16 %v60
  %v125 = vunpack.c.l.bf16 %v61
  %v126 = vunpack.c.l.bf16 %v62
  %v127 = vunpack.c.l.bf16 %v63
  %v128 = vunpack.c.l.bf16 %v64
  %v129 = vunpack.c.l.bf16 %v65
  %v130 = vunpack.c.l.bf16 %v66
  %v131 = vunpack.c.l.bf16 %v67
  %v132 = vunpack.c.l.bf16 %v68
  %v133 = vunpack.c.l.bf16 %v69
  %v134 = vunpack.c.l.bf16 %v70
  %v135 = vunpack.c.l.bf16 %v71
  %v136 = vunpack.c.l.bf16 %v72
  %v137 = vunpack.c.l.bf16 %v73
  %v138 = vunpack.c.l.bf16 %v74
  %v139 = vunpack.c.l.bf16 %v75
  %v140 = vunpack.c.l.bf16 %v76
  %v141 = vunpack.c.l.bf16 %v77
  %v142 = vunpack.c.l.bf16 %v78
  %v143 = vunpack.c.l.bf16 %v79
  %v144 = vld [vmem:[%s1] sm:$0x1]
  %v145 = vperm.slane %v144, 0
  %v146 = vmul.f32 %v80, %v145
  %v147 = vmul.f32 %v81, %v145
  %v148 = vmul.f32 %v82, %v145
  %v149 = vmul.f32 %v83, %v145
  %v150 = vmul.f32 %v84, %v145
  %v151 = vmul.f32 %v85, %v145
  %v152 = vmul.f32 %v86, %v145
  %v153 = vmul.f32 %v87, %v145
  %v154 = vmul.f32 %v88, %v145
  %v155 = vmul.f32 %v89, %v145
  %v156 = vmul.f32 %v90, %v145
  %v157 = vmul.f32 %v91, %v145
  %v158 = vmul.f32 %v92, %v145
  %v159 = vmul.f32 %v93, %v145
  %v160 = vmul.f32 %v94, %v145
  %v161 = vmul.f32 %v95, %v145
  %v162 = vmul.f32 %v96, %v145
  %v163 = vmul.f32 %v97, %v145
  %v164 = vmul.f32 %v98, %v145
  %v165 = vmul.f32 %v99, %v145
  %v166 = vmul.f32 %v100, %v145
  %v167 = vmul.f32 %v101, %v145
  %v168 = vmul.f32 %v102, %v145
  %v169 = vmul.f32 %v103, %v145
  %v170 = vmul.f32 %v104, %v145
  %v171 = vmul.f32 %v105, %v145
  %v172 = vmul.f32 %v106, %v145
  %v173 = vmul.f32 %v107, %v145
  %v174 = vmul.f32 %v108, %v145
  %v175 = vmul.f32 %v109, %v145
  %v176 = vmul.f32 %v110, %v145
  %v177 = vmul.f32 %v111, %v145
  %v178 = vmul.f32 %v112, %v145
  %v179 = vmul.f32 %v113, %v145
  %v180 = vmul.f32 %v114, %v145
  %v181 = vmul.f32 %v115, %v145
  %v182 = vmul.f32 %v116, %v145
  %v183 = vmul.f32 %v117, %v145
  %v184 = vmul.f32 %v118, %v145
  %v185 = vmul.f32 %v119, %v145
  %v186 = vmul.f32 %v120, %v145
  %v187 = vmul.f32 %v121, %v145
  %v188 = vmul.f32 %v122, %v145
  %v189 = vmul.f32 %v123, %v145
  %v190 = vmul.f32 %v124, %v145
  %v191 = vmul.f32 %v125, %v145
  %v192 = vmul.f32 %v126, %v145
  %v193 = vmul.f32 %v127, %v145
  %v194 = vmul.f32 %v128, %v145
  %v195 = vmul.f32 %v129, %v145
  %v196 = vmul.f32 %v130, %v145
  %v197 = vmul.f32 %v131, %v145
  %v198 = vmul.f32 %v132, %v145
  %v199 = vmul.f32 %v133, %v145
  %v200 = vmul.f32 %v134, %v145
  %v201 = vmul.f32 %v135, %v145
  %v202 = vmul.f32 %v136, %v145
  %v203 = vmul.f32 %v137, %v145
  %v204 = vmul.f32 %v138, %v145
  %v205 = vmul.f32 %v139, %v145
  %v206 = vmul.f32 %v140, %v145
  %v207 = vmul.f32 %v141, %v145
  %v208 = vmul.f32 %v142, %v145
  %v209 = vmul.f32 %v143, %v145
  %v210 = vld [vmem:[%s1 + $0x1] sm:$0x1]
  %v211 = vperm.slane %v210, 0
  %v212 = vadd.f32 %v146, %v211
  %v213 = vadd.f32 %v147, %v211
  %v214 = vadd.f32 %v148, %v211
  %v215 = vadd.f32 %v149, %v211
  %v216 = vadd.f32 %v150, %v211
  %v217 = vadd.f32 %v151, %v211
  %v218 = vadd.f32 %v152, %v211
  %v219 = vadd.f32 %v153, %v211
  %v220 = vadd.f32 %v154, %v211
  %v221 = vadd.f32 %v155, %v211
  %v222 = vadd.f32 %v156, %v211
  %v223 = vadd.f32 %v157, %v211
  %v224 = vadd.f32 %v158, %v211
  %v225 = vadd.f32 %v159, %v211
  %v226 = vadd.f32 %v160, %v211
  %v227 = vadd.f32 %v161, %v211
  %v228 = vadd.f32 %v162, %v211
  %v229 = vadd.f32 %v163, %v211
  %v230 = vadd.f32 %v164, %v211
  %v231 = vadd.f32 %v165, %v211
  %v232 = vadd.f32 %v166, %v211
  %v233 = vadd.f32 %v167, %v211
  %v234 = vadd.f32 %v168, %v211
  %v235 = vadd.f32 %v169, %v211
  %v236 = vadd.f32 %v170, %v211
  %v237 = vadd.f32 %v171, %v211
  %v238 = vadd.f32 %v172, %v211
  %v239 = vadd.f32 %v173, %v211
  %v240 = vadd.f32 %v174, %v211
  %v241 = vadd.f32 %v175, %v211
  %v242 = vadd.f32 %v176, %v211
  %v243 = vadd.f32 %v177, %v211
  %v244 = vadd.f32 %v178, %v211
  %v245 = vadd.f32 %v179, %v211
  %v246 = vadd.f32 %v180, %v211
  %v247 = vadd.f32 %v181, %v211
  %v248 = vadd.f32 %v182, %v211
  %v249 = vadd.f32 %v183, %v211
  %v250 = vadd.f32 %v184, %v211
  %v251 = vadd.f32 %v185, %v211
  %v252 = vadd.f32 %v186, %v211
  %v253 = vadd.f32 %v187, %v211
  %v254 = vadd.f32 %v188, %v211
  %v255 = vadd.f32 %v189, %v211
  %v256 = vadd.f32 %v190, %v211
  %v257 = vadd.f32 %v191, %v211
  %v258 = vadd.f32 %v192, %v211
  %v259 = vadd.f32 %v193, %v211
  %v260 = vadd.f32 %v194, %v211
  %v261 = vadd.f32 %v195, %v211
  %v262 = vadd.f32 %v196, %v211
  %v263 = vadd.f32 %v197, %v211
  %v264 = vadd.f32 %v198, %v211
  %v265 = vadd.f32 %v199, %v211
  %v266 = vadd.f32 %v200, %v211
  %v267 = vadd.f32 %v201, %v211
  %v268 = vadd.f32 %v202, %v211
  %v269 = vadd.f32 %v203, %v211
  %v270 = vadd.f32 %v204, %v211
  %v271 = vadd.f32 %v205, %v211
  %v272 = vadd.f32 %v206, %v211
  %v273 = vadd.f32 %v207, %v211
  %v274 = vadd.f32 %v208, %v211
  %v275 = vadd.f32 %v209, %v211
  %v276 = vmax.f32 %v212, 0.0
  %v277 = vmax.f32 %v213, 0.0
  %v278 = vmax.f32 %v214, 0.0
  %v279 = vmax.f32 %v215, 0.0
  %v280 = vmax.f32 %v216, 0.0
  %v281 = vmax.f32 %v217, 0.0
  %v282 = vmax.f32 %v218, 0.0
  %v283 = vmax.f32 %v219, 0.0
  %v284 = vmax.f32 %v220, 0.0
  %v285 = vmax.f32 %v221, 0.0
  %v286 = vmax.f32 %v222, 0.0
  %v287 = vmax.f32 %v223, 0.0
  %v288 = vmax.f32 %v224, 0.0
  %v289 = vmax.f32 %v225, 0.0
  %v290 = vmax.f32 %v226, 0.0
  %v291 = vmax.f32 %v227, 0.0
  %v292 = vmax.f32 %v228, 0.0
  %v293 = vmax.f32 %v229, 0.0
  %v294 = vmax.f32 %v230, 0.0
  %v295 = vmax.f32 %v231, 0.0
  %v296 = vmax.f32 %v232, 0.0
  %v297 = vmax.f32 %v233, 0.0
  %v298 = vmax.f32 %v234, 0.0
  %v299 = vmax.f32 %v235, 0.0
  %v300 = vmax.f32 %v236, 0.0
  %v301 = vmax.f32 %v237, 0.0
  %v302 = vmax.f32 %v238, 0.0
  %v303 = vmax.f32 %v239, 0.0
  %v304 = vmax.f32 %v240, 0.0
  %v305 = vmax.f32 %v241, 0.0
  %v306 = vmax.f32 %v242, 0.0
  %v307 = vmax.f32 %v243, 0.0
  %v308 = vmax.f32 %v244, 0.0
  %v309 = vmax.f32 %v245, 0.0
  %v310 = vmax.f32 %v246, 0.0
  %v311 = vmax.f32 %v247, 0.0
  %v312 = vmax.f32 %v248, 0.0
  %v313 = vmax.f32 %v249, 0.0
  %v314 = vmax.f32 %v250, 0.0
  %v315 = vmax.f32 %v251, 0.0
  %v316 = vmax.f32 %v252, 0.0
  %v317 = vmax.f32 %v253, 0.0
  %v318 = vmax.f32 %v254, 0.0
  %v319 = vmax.f32 %v255, 0.0
  %v320 = vmax.f32 %v256, 0.0
  %v321 = vmax.f32 %v257, 0.0
  %v322 = vmax.f32 %v258, 0.0
  %v323 = vmax.f32 %v259, 0.0
  %v324 = vmax.f32 %v260, 0.0
  %v325 = vmax.f32 %v261, 0.0
  %v326 = vmax.f32 %v262, 0.0
  %v327 = vmax.f32 %v263, 0.0
  %v328 = vmax.f32 %v264, 0.0
  %v329 = vmax.f32 %v265, 0.0
  %v330 = vmax.f32 %v266, 0.0
  %v331 = vmax.f32 %v267, 0.0
  %v332 = vmax.f32 %v268, 0.0
  %v333 = vmax.f32 %v269, 0.0
  %v334 = vmax.f32 %v270, 0.0
  %v335 = vmax.f32 %v271, 0.0
  %v336 = vmax.f32 %v272, 0.0
  %v337 = vmax.f32 %v273, 0.0
  %v338 = vmax.f32 %v274, 0.0
  %v339 = vmax.f32 %v275, 0.0
  %v340 = vpack.c.bf16 %v277, %v276
  %v341 = vpack.c.bf16 %v279, %v278
  %v342 = vpack.c.bf16 %v281, %v280
  %v343 = vpack.c.bf16 %v283, %v282
  %v344 = vpack.c.bf16 %v285, %v284
  %v345 = vpack.c.bf16 %v287, %v286
  %v346 = vpack.c.bf16 %v289, %v288
  %v347 = vpack.c.bf16 %v291, %v290
  %v348 = vpack.c.bf16 %v293, %v292
  %v349 = vpack.c.bf16 %v295, %v294
  %v350 = vpack.c.bf16 %v297, %v296
  %v351 = vpack.c.bf16 %v299, %v298
  %v352 = vpack.c.bf16 %v301, %v300
  %v353 = vpack.c.bf16 %v303, %v302
  %v354 = vpack.c.bf16 %v305, %v304
  %v355 = vpack.c.bf16 %v307, %v306
  %v356 = vpack.c.bf16 %v309, %v308
  %v357 = vpack.c.bf16 %v311, %v310
  %v358 = vpack.c.bf16 %v313, %v312
  %v359 = vpack.c.bf16 %v315, %v314
  %v360 = vpack.c.bf16 %v317, %v316
  %v361 = vpack.c.bf16 %v319, %v318
  %v362 = vpack.c.bf16 %v321, %v320
  %v363 = vpack.c.bf16 %v323, %v322
  %v364 = vpack.c.bf16 %v325, %v324
  %v365 = vpack.c.bf16 %v327, %v326
  %v366 = vpack.c.bf16 %v329, %v328
  %v367 = vpack.c.bf16 %v331, %v330
  %v368 = vpack.c.bf16 %v333, %v332
  %v369 = vpack.c.bf16 %v335, %v334
  %v370 = vpack.c.bf16 %v337, %v336
  %v371 = vpack.c.bf16 %v339, %v338
  %v372 = vld [vmem:[%s2] sm:$0xf]
  %v373 = vld [vmem:[%s2 + $0x4] sm:$0xf]
  %v374 = vld [vmem:[%s2 + $0x8] sm:$0xf]
  %v375 = vld [vmem:[%s2 + $0xc] sm:$0xf]
  %v376 = vld [vmem:[%s2 + $0x10] sm:$0xf]
  %v377 = vld [vmem:[%s2 + $0x14] sm:$0xf]
  %v378 = vld [vmem:[%s2 + $0x18] sm:$0xf]
  %v379 = vld [vmem:[%s2 + $0x1c] sm:$0xf]
  %v380 = vld [vmem:[%s2 + $0x20] sm:$0xf]
  %v381 = vld [vmem:[%s2 + $0x24] sm:$0xf]
  %v382 = vld [vmem:[%s2 + $0x28] sm:$0xf]
  %v383 = vld [vmem:[%s2 + $0x2c] sm:$0xf]
  %v384 = vld [vmem:[%s2 + $0x30] sm:$0xf]
  %v385 = vld [vmem:[%s2 + $0x34] sm:$0xf]
  %v386 = vld [vmem:[%s2 + $0x38] sm:$0xf]
  %v387 = vld [vmem:[%s2 + $0x3c] sm:$0xf]
  %v404 = vunpack.c.l.b16 %v372
  %v405 = vunpack.c.l.b16 %v373
  %v406 = vunpack.c.l.b16 %v374
  %v407 = vunpack.c.l.b16 %v375
  %v408 = vunpack.c.l.b16 %v376
  %v409 = vunpack.c.l.b16 %v377
  %v410 = vunpack.c.l.b16 %v378
  %v411 = vunpack.c.l.b16 %v379
  %v412 = vunpack.c.l.b16 %v380
  %v413 = vunpack.c.l.b16 %v381
  %v414 = vunpack.c.l.b16 %v382
  %v415 = vunpack.c.l.b16 %v383
  %v416 = vunpack.c.l.b16 %v384
  %v417 = vunpack.c.l.b16 %v385
  %v418 = vunpack.c.l.b16 %v386
  %v419 = vunpack.c.l.b16 %v387
  %v420 = vpack.c.b16 %v405, %v404
  %v421 = vpack.c.b16 %v407, %v406
  %v422 = vpack.c.b16 %v409, %v408
  %v423 = vpack.c.b16 %v411, %v410
  %v424 = vpack.c.b16 %v413, %v412
  %v425 = vpack.c.b16 %v415, %v414
  %v426 = vpack.c.b16 %v417, %v416
  %v427 = vpack.c.b16 %v419, %v418
  %436 = vmatpush.bf16.msra.mxu0 %v427
  %437 = vmatpush.bf16.msra.mxu0 %v426
  %438 = vmatpush.bf16.msra.mxu0 %v425
  %439 = vmatpush.bf16.msra.mxu0 %v424
  %440 = vmatpush.bf16.msra.mxu0 %v423
  %441 = vmatpush.bf16.msra.mxu0 %v422
  %442 = vmatpush.bf16.msra.mxu0 %v421
  %443 = vmatpush.bf16.msra.mxu0 %v420
  %444 = vmatmul.bf16.gmra.mxu0 %v340
  %v445 = vpop.f32.mrf.mxu0
  %v446 = vadd.f32 0.0, %v445
  %v447 = vpop.f32.mrf.mxu0
  %v448 = vadd.f32 0.0, %v447
  %449 = vmatmul.bf16.gmra.mxu0 %v341
  %v450 = vpop.f32.mrf.mxu0
  %v451 = vadd.f32 0.0, %v450
  %v452 = vpop.f32.mrf.mxu0
  %v453 = vadd.f32 0.0, %v452
  %454 = vmatmul.bf16.gmra.mxu0 %v342
  %v455 = vpop.f32.mrf.mxu0
  %v456 = vadd.f32 0.0, %v455
  %v457 = vpop.f32.mrf.mxu0
  %v458 = vadd.f32 0.0, %v457
  %459 = vmatmul.bf16.gmra.mxu0 %v343
  %v460 = vpop.f32.mrf.mxu0
  %v461 = vadd.f32 0.0, %v460
  %v462 = vpop.f32.mrf.mxu0
  %v463 = vadd.f32 0.0, %v462
  %464 = vmatmul.bf16.gmra.mxu0 %v344
  %v465 = vpop.f32.mrf.mxu0
  %v466 = vadd.f32 0.0, %v465
  %v467 = vpop.f32.mrf.mxu0
  %v468 = vadd.f32 0.0, %v467
  %469 = vmatmul.bf16.gmra.mxu0 %v345
  %v470 = vpop.f32.mrf.mxu0
  %v471 = vadd.f32 0.0, %v470
  %v472 = vpop.f32.mrf.mxu0
  %v473 = vadd.f32 0.0, %v472
  %474 = vmatmul.bf16.gmra.mxu0 %v346
  %v475 = vpop.f32.mrf.mxu0
  %v476 = vadd.f32 0.0, %v475
  %v477 = vpop.f32.mrf.mxu0
  %v478 = vadd.f32 0.0, %v477
  %479 = vmatmul.bf16.gmra.mxu0 %v347
  %v480 = vpop.f32.mrf.mxu0
  %v481 = vadd.f32 0.0, %v480
  %v482 = vpop.f32.mrf.mxu0
  %v483 = vadd.f32 0.0, %v482
  %484 = vmatmul.bf16.gmra.mxu0 %v348
  %v485 = vpop.f32.mrf.mxu0
  %v486 = vadd.f32 0.0, %v485
  %v487 = vpop.f32.mrf.mxu0
  %v488 = vadd.f32 0.0, %v487
  %489 = vmatmul.bf16.gmra.mxu0 %v349
  %v490 = vpop.f32.mrf.mxu0
  %v491 = vadd.f32 0.0, %v490
  %v492 = vpop.f32.mrf.mxu0
  %v493 = vadd.f32 0.0, %v492
  %494 = vmatmul.bf16.gmra.mxu0 %v350
  %v495 = vpop.f32.mrf.mxu0
  %v496 = vadd.f32 0.0, %v495
  %v497 = vpop.f32.mrf.mxu0
  %v498 = vadd.f32 0.0, %v497
  %499 = vmatmul.bf16.gmra.mxu0 %v351
  %v500 = vpop.f32.mrf.mxu0
  %v501 = vadd.f32 0.0, %v500
  %v502 = vpop.f32.mrf.mxu0
  %v503 = vadd.f32 0.0, %v502
  %504 = vmatmul.bf16.gmra.mxu0 %v352
  %v505 = vpop.f32.mrf.mxu0
  %v506 = vadd.f32 0.0, %v505
  %v507 = vpop.f32.mrf.mxu0
  %v508 = vadd.f32 0.0, %v507
  %509 = vmatmul.bf16.gmra.mxu0 %v353
  %v510 = vpop.f32.mrf.mxu0
  %v511 = vadd.f32 0.0, %v510
  %v512 = vpop.f32.mrf.mxu0
  %v513 = vadd.f32 0.0, %v512
  %514 = vmatmul.bf16.gmra.mxu0 %v354
  %v515 = vpop.f32.mrf.mxu0
  %v516 = vadd.f32 0.0, %v515
  %v517 = vpop.f32.mrf.mxu0
  %v518 = vadd.f32 0.0, %v517
  %519 = vmatmul.bf16.gmra.mxu0 %v355
  %v520 = vpop.f32.mrf.mxu0
  %v521 = vadd.f32 0.0, %v520
  %v522 = vpop.f32.mrf.mxu0
  %v523 = vadd.f32 0.0, %v522
  %524 = vmatmul.bf16.gmra.mxu0 %v356
  %v525 = vpop.f32.mrf.mxu0
  %v526 = vadd.f32 0.0, %v525
  %v527 = vpop.f32.mrf.mxu0
  %v528 = vadd.f32 0.0, %v527
  %529 = vmatmul.bf16.gmra.mxu0 %v357
  %v530 = vpop.f32.mrf.mxu0
  %v531 = vadd.f32 0.0, %v530
  %v532 = vpop.f32.mrf.mxu0
  %v533 = vadd.f32 0.0, %v532
  %534 = vmatmul.bf16.gmra.mxu0 %v358
  %v535 = vpop.f32.mrf.mxu0
  %v536 = vadd.f32 0.0, %v535
  %v537 = vpop.f32.mrf.mxu0
  %v538 = vadd.f32 0.0, %v537
  %539 = vmatmul.bf16.gmra.mxu0 %v359
  %v540 = vpop.f32.mrf.mxu0
  %v541 = vadd.f32 0.0, %v540
  %v542 = vpop.f32.mrf.mxu0
  %v543 = vadd.f32 0.0, %v542
  %544 = vmatmul.bf16.gmra.mxu0 %v360
  %v545 = vpop.f32.mrf.mxu0
  %v546 = vadd.f32 0.0, %v545
  %v547 = vpop.f32.mrf.mxu0
  %v548 = vadd.f32 0.0, %v547
  %549 = vmatmul.bf16.gmra.mxu0 %v361
  %v550 = vpop.f32.mrf.mxu0
  %v551 = vadd.f32 0.0, %v550
  %v552 = vpop.f32.mrf.mxu0
  %v553 = vadd.f32 0.0, %v552
  %554 = vmatmul.bf16.gmra.mxu0 %v362
  %v555 = vpop.f32.mrf.mxu0
  %v556 = vadd.f32 0.0, %v555
  %v557 = vpop.f32.mrf.mxu0
  %v558 = vadd.f32 0.0, %v557
  %559 = vmatmul.bf16.gmra.mxu0 %v363
  %v560 = vpop.f32.mrf.mxu0
  %v561 = vadd.f32 0.0, %v560
  %v562 = vpop.f32.mrf.mxu0
  %v563 = vadd.f32 0.0, %v562
  %564 = vmatmul.bf16.gmra.mxu0 %v364
  %v565 = vpop.f32.mrf.mxu0
  %v566 = vadd.f32 0.0, %v565
  %v567 = vpop.f32.mrf.mxu0
  %v568 = vadd.f32 0.0, %v567
  %569 = vmatmul.bf16.gmra.mxu0 %v365
  %v570 = vpop.f32.mrf.mxu0
  %v571 = vadd.f32 0.0, %v570
  %v572 = vpop.f32.mrf.mxu0
  %v573 = vadd.f32 0.0, %v572
  %574 = vmatmul.bf16.gmra.mxu0 %v366
  %v575 = vpop.f32.mrf.mxu0
  %v576 = vadd.f32 0.0, %v575
  %v577 = vpop.f32.mrf.mxu0
  %v578 = vadd.f32 0.0, %v577
  %579 = vmatmul.bf16.gmra.mxu0 %v367
  %v580 = vpop.f32.mrf.mxu0
  %v581 = vadd.f32 0.0, %v580
  %v582 = vpop.f32.mrf.mxu0
  %v583 = vadd.f32 0.0, %v582
  %584 = vmatmul.bf16.gmra.mxu0 %v368
  %v585 = vpop.f32.mrf.mxu0
  %v586 = vadd.f32 0.0, %v585
  %v587 = vpop.f32.mrf.mxu0
  %v588 = vadd.f32 0.0, %v587
  %589 = vmatmul.bf16.gmra.mxu0 %v369
  %v590 = vpop.f32.mrf.mxu0
  %v591 = vadd.f32 0.0, %v590
  %v592 = vpop.f32.mrf.mxu0
  %v593 = vadd.f32 0.0, %v592
  %594 = vmatmul.bf16.gmra.mxu0 %v370
  %v595 = vpop.f32.mrf.mxu0
  %v596 = vadd.f32 0.0, %v595
  %v597 = vpop.f32.mrf.mxu0
  %v598 = vadd.f32 0.0, %v597
  %599 = vmatmul.bf16.gmra.mxu0 %v371
  %v600 = vpop.f32.mrf.mxu0
  %v601 = vadd.f32 0.0, %v600
  %v602 = vpop.f32.mrf.mxu0
  %v603 = vadd.f32 0.0, %v602
  %604 = vdwg.mxu0
  %605 = vst [vmem:[%s3] sm:$0xff] %v446
  %606 = vst [vmem:[%s3 + $0x8] sm:$0xff] %v448
  %607 = vst [vmem:[%s3 + $0x10] sm:$0xff] %v451
  %608 = vst [vmem:[%s3 + $0x18] sm:$0xff] %v453
  %609 = vst [vmem:[%s3 + $0x20] sm:$0xff] %v456
  %610 = vst [vmem:[%s3 + $0x28] sm:$0xff] %v458
  %611 = vst [vmem:[%s3 + $0x30] sm:$0xff] %v461
  %612 = vst [vmem:[%s3 + $0x38] sm:$0xff] %v463
  %613 = vst [vmem:[%s3 + $0x40] sm:$0xff] %v466
  %614 = vst [vmem:[%s3 + $0x48] sm:$0xff] %v468
  %615 = vst [vmem:[%s3 + $0x50] sm:$0xff] %v471
  %616 = vst [vmem:[%s3 + $0x58] sm:$0xff] %v473
  %617 = vst [vmem:[%s3 + $0x60] sm:$0xff] %v476
  %618 = vst [vmem:[%s3 + $0x68] sm:$0xff] %v478
  %619 = vst [vmem:[%s3 + $0x70] sm:$0xff] %v481
  %620 = vst [vmem:[%s3 + $0x78] sm:$0xff] %v483
  %621 = vst [vmem:[%s3 + $0x80] sm:$0xff] %v486
  %622 = vst [vmem:[%s3 + $0x88] sm:$0xff] %v488
  %623 = vst [vmem:[%s3 + $0x90] sm:$0xff] %v491
  %624 = vst [vmem:[%s3 + $0x98] sm:$0xff] %v493
  %625 = vst [vmem:[%s3 + $0xa0] sm:$0xff] %v496
  %626 = vst [vmem:[%s3 + $0xa8] sm:$0xff] %v498
  %627 = vst [vmem:[%s3 + $0xb0] sm:$0xff] %v501
  %628 = vst [vmem:[%s3 + $0xb8] sm:$0xff] %v503
  %629 = vst [vmem:[%s3 + $0xc0] sm:$0xff] %v506
  %630 = vst [vmem:[%s3 + $0xc8] sm:$0xff] %v508
  %631 = vst [vmem:[%s3 + $0xd0] sm:$0xff] %v511
  %632 = vst [vmem:[%s3 + $0xd8] sm:$0xff] %v513
  %633 = vst [vmem:[%s3 + $0xe0] sm:$0xff] %v516
  %634 = vst [vmem:[%s3 + $0xe8] sm:$0xff] %v518
  %635 = vst [vmem:[%s3 + $0xf0] sm:$0xff] %v521
  %636 = vst [vmem:[%s3 + $0xf8] sm:$0xff] %v523
  %637 = vst [vmem:[%s3 + $0x100] sm:$0xff] %v526
  %638 = vst [vmem:[%s3 + $0x108] sm:$0xff] %v528
  %639 = vst [vmem:[%s3 + $0x110] sm:$0xff] %v531
  %640 = vst [vmem:[%s3 + $0x118] sm:$0xff] %v533
  %641 = vst [vmem:[%s3 + $0x120] sm:$0xff] %v536
  %642 = vst [vmem:[%s3 + $0x128] sm:$0xff] %v538
  %643 = vst [vmem:[%s3 + $0x130] sm:$0xff] %v541
  %644 = vst [vmem:[%s3 + $0x138] sm:$0xff] %v543
  %645 = vst [vmem:[%s3 + $0x140] sm:$0xff] %v546
  %646 = vst [vmem:[%s3 + $0x148] sm:$0xff] %v548
  %647 = vst [vmem:[%s3 + $0x150] sm:$0xff] %v551
  %648 = vst [vmem:[%s3 + $0x158] sm:$0xff] %v553
  %649 = vst [vmem:[%s3 + $0x160] sm:$0xff] %v556
  %650 = vst [vmem:[%s3 + $0x168] sm:$0xff] %v558
  %651 = vst [vmem:[%s3 + $0x170] sm:$0xff] %v561
  %652 = vst [vmem:[%s3 + $0x178] sm:$0xff] %v563
  %653 = vst [vmem:[%s3 + $0x180] sm:$0xff] %v566
  %654 = vst [vmem:[%s3 + $0x188] sm:$0xff] %v568
  %655 = vst [vmem:[%s3 + $0x190] sm:$0xff] %v571
  %656 = vst [vmem:[%s3 + $0x198] sm:$0xff] %v573
  %657 = vst [vmem:[%s3 + $0x1a0] sm:$0xff] %v576
  %658 = vst [vmem:[%s3 + $0x1a8] sm:$0xff] %v578
  %659 = vst [vmem:[%s3 + $0x1b0] sm:$0xff] %v581
  %660 = vst [vmem:[%s3 + $0x1b8] sm:$0xff] %v583
  %661 = vst [vmem:[%s3 + $0x1c0] sm:$0xff] %v586
  %662 = vst [vmem:[%s3 + $0x1c8] sm:$0xff] %v588
  %663 = vst [vmem:[%s3 + $0x1d0] sm:$0xff] %v591
  %664 = vst [vmem:[%s3 + $0x1d8] sm:$0xff] %v593
  %665 = vst [vmem:[%s3 + $0x1e0] sm:$0xff] %v596
  %666 = vst [vmem:[%s3 + $0x1e8] sm:$0xff] %v598
  %667 = vst [vmem:[%s3 + $0x1f0] sm:$0xff] %v601
  %668 = vst [vmem:[%s3 + $0x1f8] sm:$0xff] %v603
  %v669 = vadd.f32 %v446, %v448
  %v670 = vadd.f32 %v669, %v451
  %v671 = vadd.f32 %v670, %v453
  %v672 = vadd.f32 %v671, %v456
  %v673 = vadd.f32 %v672, %v458
  %v674 = vadd.f32 %v673, %v461
  %v675 = vadd.f32 %v674, %v463
  %v676 = vadd.f32 %v675, %v466
  %v677 = vadd.f32 %v676, %v468
  %v678 = vadd.f32 %v677, %v471
  %v679 = vadd.f32 %v678, %v473
  %v680 = vadd.f32 %v679, %v476
  %v681 = vadd.f32 %v680, %v478
  %v682 = vadd.f32 %v681, %v481
  %v683 = vadd.f32 %v682, %v483
  %v684 = vadd.f32 %v683, %v486
  %v685 = vadd.f32 %v684, %v488
  %v686 = vadd.f32 %v685, %v491
  %v687 = vadd.f32 %v686, %v493
  %v688 = vadd.f32 %v687, %v496
  %v689 = vadd.f32 %v688, %v498
  %v690 = vadd.f32 %v689, %v501
  %v691 = vadd.f32 %v690, %v503
  %v692 = vadd.f32 %v691, %v506
  %v693 = vadd.f32 %v692, %v508
  %v694 = vadd.f32 %v693, %v511
  %v695 = vadd.f32 %v694, %v513
  %v696 = vadd.f32 %v695, %v516
  %v697 = vadd.f32 %v696, %v518
  %v698 = vadd.f32 %v697, %v521
  %v699 = vadd.f32 %v698, %v523
  %v700 = vadd.f32 %v699, %v526
  %v701 = vadd.f32 %v700, %v528
  %v702 = vadd.f32 %v701, %v531
  %v703 = vadd.f32 %v702, %v533
  %v704 = vadd.f32 %v703, %v536
  %v705 = vadd.f32 %v704, %v538
  %v706 = vadd.f32 %v705, %v541
  %v707 = vadd.f32 %v706, %v543
  %v708 = vadd.f32 %v707, %v546
  %v709 = vadd.f32 %v708, %v548
  %v710 = vadd.f32 %v709, %v551
  %v711 = vadd.f32 %v710, %v553
  %v712 = vadd.f32 %v711, %v556
  %v713 = vadd.f32 %v712, %v558
  %v714 = vadd.f32 %v713, %v561
  %v715 = vadd.f32 %v714, %v563
  %v716 = vadd.f32 %v715, %v566
  %v717 = vadd.f32 %v716, %v568
  %v718 = vadd.f32 %v717, %v571
  %v719 = vadd.f32 %v718, %v573
  %v720 = vadd.f32 %v719, %v576
  %v721 = vadd.f32 %v720, %v578
  %v722 = vadd.f32 %v721, %v581
  %v723 = vadd.f32 %v722, %v583
  %v724 = vadd.f32 %v723, %v586
  %v725 = vadd.f32 %v724, %v588
  %v726 = vadd.f32 %v725, %v591
  %v727 = vadd.f32 %v726, %v593
  %v728 = vadd.f32 %v727, %v596
  %v729 = vadd.f32 %v728, %v598
  %v730 = vadd.f32 %v729, %v601
  %v731 = vadd.f32 %v730, %v603
  %v732 = vrot.slane %v731, 4
  %v733 = vadd.f32 %v731, %v732
  %v734 = vrot.slane %v733, 2
  %v735 = vadd.f32 %v733, %v734
  %v736 = vrot.slane %v735, 1
  %v737 = vadd.f32 %v735, %v736
  %738 = vst [vmem:[%s4] sm:$0x1] %v737
  %v739 = vmul.f32 %v446, %v446
  %v740 = vmul.f32 %v448, %v448
  %v741 = vmul.f32 %v451, %v451
  %v742 = vmul.f32 %v453, %v453
  %v743 = vmul.f32 %v456, %v456
  %v744 = vmul.f32 %v458, %v458
  %v745 = vmul.f32 %v461, %v461
  %v746 = vmul.f32 %v463, %v463
  %v747 = vmul.f32 %v466, %v466
  %v748 = vmul.f32 %v468, %v468
  %v749 = vmul.f32 %v471, %v471
  %v750 = vmul.f32 %v473, %v473
  %v751 = vmul.f32 %v476, %v476
  %v752 = vmul.f32 %v478, %v478
  %v753 = vmul.f32 %v481, %v481
  %v754 = vmul.f32 %v483, %v483
  %v755 = vmul.f32 %v486, %v486
  %v756 = vmul.f32 %v488, %v488
  %v757 = vmul.f32 %v491, %v491
  %v758 = vmul.f32 %v493, %v493
  %v759 = vmul.f32 %v496, %v496
  %v760 = vmul.f32 %v498, %v498
  %v761 = vmul.f32 %v501, %v501
  %v762 = vmul.f32 %v503, %v503
  %v763 = vmul.f32 %v506, %v506
  %v764 = vmul.f32 %v508, %v508
  %v765 = vmul.f32 %v511, %v511
  %v766 = vmul.f32 %v513, %v513
  %v767 = vmul.f32 %v516, %v516
  %v768 = vmul.f32 %v518, %v518
  %v769 = vmul.f32 %v521, %v521
  %v770 = vmul.f32 %v523, %v523
  %v771 = vmul.f32 %v526, %v526
  %v772 = vmul.f32 %v528, %v528
  %v773 = vmul.f32 %v531, %v531
  %v774 = vmul.f32 %v533, %v533
  %v775 = vmul.f32 %v536, %v536
  %v776 = vmul.f32 %v538, %v538
  %v777 = vmul.f32 %v541, %v541
  %v778 = vmul.f32 %v543, %v543
  %v779 = vmul.f32 %v546, %v546
  %v780 = vmul.f32 %v548, %v548
  %v781 = vmul.f32 %v551, %v551
  %v782 = vmul.f32 %v553, %v553
  %v783 = vmul.f32 %v556, %v556
  %v784 = vmul.f32 %v558, %v558
  %v785 = vmul.f32 %v561, %v561
  %v786 = vmul.f32 %v563, %v563
  %v787 = vmul.f32 %v566, %v566
  %v788 = vmul.f32 %v568, %v568
  %v789 = vmul.f32 %v571, %v571
  %v790 = vmul.f32 %v573, %v573
  %v791 = vmul.f32 %v576, %v576
  %v792 = vmul.f32 %v578, %v578
  %v793 = vmul.f32 %v581, %v581
  %v794 = vmul.f32 %v583, %v583
  %v795 = vmul.f32 %v586, %v586
  %v796 = vmul.f32 %v588, %v588
  %v797 = vmul.f32 %v591, %v591
  %v798 = vmul.f32 %v593, %v593
  %v799 = vmul.f32 %v596, %v596
  %v800 = vmul.f32 %v598, %v598
  %v801 = vmul.f32 %v601, %v601
  %v802 = vmul.f32 %v603, %v603
  %v803 = vadd.f32 %v739, %v740
  %v804 = vadd.f32 %v803, %v741
  %v805 = vadd.f32 %v804, %v742
  %v806 = vadd.f32 %v805, %v743
  %v807 = vadd.f32 %v806, %v744
  %v808 = vadd.f32 %v807, %v745
  %v809 = vadd.f32 %v808, %v746
  %v810 = vadd.f32 %v809, %v747
  %v811 = vadd.f32 %v810, %v748
  %v812 = vadd.f32 %v811, %v749
  %v813 = vadd.f32 %v812, %v750
  %v814 = vadd.f32 %v813, %v751
  %v815 = vadd.f32 %v814, %v752
  %v816 = vadd.f32 %v815, %v753
  %v817 = vadd.f32 %v816, %v754
  %v818 = vadd.f32 %v817, %v755
  %v819 = vadd.f32 %v818, %v756
  %v820 = vadd.f32 %v819, %v757
  %v821 = vadd.f32 %v820, %v758
  %v822 = vadd.f32 %v821, %v759
  %v823 = vadd.f32 %v822, %v760
  %v824 = vadd.f32 %v823, %v761
  %v825 = vadd.f32 %v824, %v762
  %v826 = vadd.f32 %v825, %v763
  %v827 = vadd.f32 %v826, %v764
  %v828 = vadd.f32 %v827, %v765
  %v829 = vadd.f32 %v828, %v766
  %v830 = vadd.f32 %v829, %v767
  %v831 = vadd.f32 %v830, %v768
  %v832 = vadd.f32 %v831, %v769
  %v833 = vadd.f32 %v832, %v770
  %v834 = vadd.f32 %v833, %v771
  %v835 = vadd.f32 %v834, %v772
  %v836 = vadd.f32 %v835, %v773
  %v837 = vadd.f32 %v836, %v774
  %v838 = vadd.f32 %v837, %v775
  %v839 = vadd.f32 %v838, %v776
  %v840 = vadd.f32 %v839, %v777
  %v841 = vadd.f32 %v840, %v778
  %v842 = vadd.f32 %v841, %v779
  %v843 = vadd.f32 %v842, %v780
  %v844 = vadd.f32 %v843, %v781
  %v845 = vadd.f32 %v844, %v782
  %v846 = vadd.f32 %v845, %v783
  %v847 = vadd.f32 %v846, %v784
  %v848 = vadd.f32 %v847, %v785
  %v849 = vadd.f32 %v848, %v786
  %v850 = vadd.f32 %v849, %v787
  %v851 = vadd.f32 %v850, %v788
  %v852 = vadd.f32 %v851, %v789
  %v853 = vadd.f32 %v852, %v790
  %v854 = vadd.f32 %v853, %v791
  %v855 = vadd.f32 %v854, %v792
  %v856 = vadd.f32 %v855, %v793
  %v857 = vadd.f32 %v856, %v794
  %v858 = vadd.f32 %v857, %v795
  %v859 = vadd.f32 %v858, %v796
  %v860 = vadd.f32 %v859, %v797
  %v861 = vadd.f32 %v860, %v798
  %v862 = vadd.f32 %v861, %v799
  %v863 = vadd.f32 %v862, %v800
  %v864 = vadd.f32 %v863, %v801
  %v865 = vadd.f32 %v864, %v802
  %v866 = vrot.slane %v865, 4
  %v867 = vadd.f32 %v865, %v866
  %v868 = vrot.slane %v867, 2
  %v869 = vadd.f32 %v867, %v868
  %v870 = vrot.slane %v869, 1
  %v871 = vadd.f32 %v869, %v870
  %872 = vst [vmem:[%s4 + $0x1] sm:$0x1] %v871
  // Predicated region
  $region14: #{block_forward.6} parent=0 // pred_check
    _
  $region15: #{block_forward.6} parent=0 // pred_check_branch
    %874 = sbr.rel (0) target = $region17
  $region16: #{block_forward.6} parent=0 // pred_region
    _
  $region17: #{block_forward.6} parent=0 // pred_fallthru
    _
  // Predicated region
  $region18: #{block_forward.6} parent=0 // pred_check
    _
  $region19: #{block_forward.6} parent=0 // pred_check_branch
    %876 = sbr.rel (0) target = $region21
  $region20: #{block_forward.6} parent=0 // pred_region
    _
  $region21: #{block_forward.6} parent=0 // pred_fallthru
    _
  // Predicated region
  $region22: #{block_forward.6} parent=0 // pred_check
    _
  $region23: #{block_forward.6} parent=0 // pred_check_branch
    %878 = sbr.rel (0) target = $region25
  $region24: #{block_forward.6} parent=0 // pred_region
    _
  $region25: #{block_forward.6} parent=0 // pred_fallthru
    _
  // Predicated region
  $region26: #{block_forward.6} parent=0 // pred_check
    _
  $region27: #{block_forward.6} parent=0 // pred_check_branch
    %880 = sbr.rel (0) target = $region29
  $region28: #{block_forward.6} parent=0 // pred_region
    _
  $region29: #{block_forward.6} parent=0 // pred_fallthru
    _

// kernel: block_forward.7
$region0: #{block_forward.7}
  #allocation0 [shape = 'u32[]', space=smem, size = 0x4, offset = 0x4, fixed_abs, tag = 'smem constant byte address 0x4 - core index']
  #allocation1 [shape = 'u32[72,128]{1,0:T(1,128)}', space=vmem, size = 0x9000, scoped, tag = 'internal scratch']
  %s0 = inlined_call_operand.vmem [shape: f32[512,128], index: 0, kind: input, shape index: {}]
  %s1 = inlined_call_operand.vmem [shape: f32[2,128], index: 1, kind: input, shape index: {}]
  %s2 = inlined_call_operand.vmem [shape: f32[512,128], index: 2, kind: input, shape index: {}]
  %s3 = inlined_call_operand.hbm [shape: f32[512,128], index: 3, kind: output, shape index: {}]
  %s4 = sld [smem:[#allocation0]]
  $region22: #{block_forward.7} parent=0
    _
  %s6 = ssub.s32 1, %s4
  %s7 = scalar_select 0, %s6, %s4
  $region1: #{block_forward.7} parent=0
    #allocation2 [shape = 'u8[262144]{0}', space=vmem, size = 0x40000, scoped, tag = 'output window, operand 0, single buffered']
    #allocation3 [shape = 's32[1]{0}', space=sflag, size = 0x4, scoped, tag = 'scoped memory for block_forward.7']
    %8 = vsyncpa [#allocation3], 0
    // Predicated region
    $region2: #{block_forward.7} parent=1 // pred_check
      _
    $region3: #{block_forward.7} parent=1 // pred_check_branch
      %10 = sbr.rel (0) target = $region5
    $region4: #{block_forward.7} parent=1 // pred_region
      _
    $region5: #{block_forward.7} parent=1 // pred_fallthru
      _
    // Predicated region
    $region6: #{block_forward.7} parent=1 // pred_check
      _
    $region7: #{block_forward.7} parent=1 // pred_check_branch
      %12 = sbr.rel (0) target = $region9
    $region8: #{block_forward.7} parent=1 // pred_region
      _
    $region9: #{block_forward.7} parent=1 // pred_fallthru
      _
    // Predicated region
    $region10: #{block_forward.7} parent=1 // pred_check
      _
    $region11: #{block_forward.7} parent=1 // pred_check_branch
      %14 = sbr.rel (0) target = $region13
    $region12: #{block_forward.7} parent=1 // pred_region
      _
    $region13: #{block_forward.7} parent=1 // pred_fallthru
      _
    %v15 = vld [vmem:[%s0] sm:$0xff]
    %v16 = vld [vmem:[%s0 + $0x8] sm:$0xff]
    %v17 = vld [vmem:[%s0 + $0x10] sm:$0xff]
    %v18 = vld [vmem:[%s0 + $0x18] sm:$0xff]
    %v19 = vld [vmem:[%s0 + $0x20] sm:$0xff]
    %v20 = vld [vmem:[%s0 + $0x28] sm:$0xff]
    %v21 = vld [vmem:[%s0 + $0x30] sm:$0xff]
    %v22 = vld [vmem:[%s0 + $0x38] sm:$0xff]
    %v23 = vld [vmem:[%s0 + $0x40] sm:$0xff]
    %v24 = vld [vmem:[%s0 + $0x48] sm:$0xff]
    %v25 = vld [vmem:[%s0 + $0x50] sm:$0xff]
    %v26 = vld [vmem:[%s0 + $0x58] sm:$0xff]
    %v27 = vld [vmem:[%s0 + $0x60] sm:$0xff]
    %v28 = vld [vmem:[%s0 + $0x68] sm:$0xff]
    %v29 = vld [vmem:[%s0 + $0x70] sm:$0xff]
    %v30 = vld [vmem:[%s0 + $0x78] sm:$0xff]
    %v31 = vld [vmem:[%s0 + $0x80] sm:$0xff]
    %v32 = vld [vmem:[%s0 + $0x88] sm:$0xff]
    %v33 = vld [vmem:[%s0 + $0x90] sm:$0xff]
    %v34 = vld [vmem:[%s0 + $0x98] sm:$0xff]
    %v35 = vld [vmem:[%s0 + $0xa0] sm:$0xff]
    %v36 = vld [vmem:[%s0 + $0xa8] sm:$0xff]
    %v37 = vld [vmem:[%s0 + $0xb0] sm:$0xff]
    %v38 = vld [vmem:[%s0 + $0xb8] sm:$0xff]
    %v39 = vld [vmem:[%s0 + $0xc0] sm:$0xff]
    %v40 = vld [vmem:[%s0 + $0xc8] sm:$0xff]
    %v41 = vld [vmem:[%s0 + $0xd0] sm:$0xff]
    %v42 = vld [vmem:[%s0 + $0xd8] sm:$0xff]
    %v43 = vld [vmem:[%s0 + $0xe0] sm:$0xff]
    %v44 = vld [vmem:[%s0 + $0xe8] sm:$0xff]
    %v45 = vld [vmem:[%s0 + $0xf0] sm:$0xff]
    %v46 = vld [vmem:[%s0 + $0xf8] sm:$0xff]
    %v47 = vld [vmem:[%s0 + $0x100] sm:$0xff]
    %v48 = vld [vmem:[%s0 + $0x108] sm:$0xff]
    %v49 = vld [vmem:[%s0 + $0x110] sm:$0xff]
    %v50 = vld [vmem:[%s0 + $0x118] sm:$0xff]
    %v51 = vld [vmem:[%s0 + $0x120] sm:$0xff]
    %v52 = vld [vmem:[%s0 + $0x128] sm:$0xff]
    %v53 = vld [vmem:[%s0 + $0x130] sm:$0xff]
    %v54 = vld [vmem:[%s0 + $0x138] sm:$0xff]
    %v55 = vld [vmem:[%s0 + $0x140] sm:$0xff]
    %v56 = vld [vmem:[%s0 + $0x148] sm:$0xff]
    %v57 = vld [vmem:[%s0 + $0x150] sm:$0xff]
    %v58 = vld [vmem:[%s0 + $0x158] sm:$0xff]
    %v59 = vld [vmem:[%s0 + $0x160] sm:$0xff]
    %v60 = vld [vmem:[%s0 + $0x168] sm:$0xff]
    %v61 = vld [vmem:[%s0 + $0x170] sm:$0xff]
    %v62 = vld [vmem:[%s0 + $0x178] sm:$0xff]
    %v63 = vld [vmem:[%s0 + $0x180] sm:$0xff]
    %v64 = vld [vmem:[%s0 + $0x188] sm:$0xff]
    %v65 = vld [vmem:[%s0 + $0x190] sm:$0xff]
    %v66 = vld [vmem:[%s0 + $0x198] sm:$0xff]
    %v67 = vld [vmem:[%s0 + $0x1a0] sm:$0xff]
    %v68 = vld [vmem:[%s0 + $0x1a8] sm:$0xff]
    %v69 = vld [vmem:[%s0 + $0x1b0] sm:$0xff]
    %v70 = vld [vmem:[%s0 + $0x1b8] sm:$0xff]
    %v71 = vld [vmem:[%s0 + $0x1c0] sm:$0xff]
    %v72 = vld [vmem:[%s0 + $0x1c8] sm:$0xff]
    %v73 = vld [vmem:[%s0 + $0x1d0] sm:$0xff]
    %v74 = vld [vmem:[%s0 + $0x1d8] sm:$0xff]
    %v75 = vld [vmem:[%s0 + $0x1e0] sm:$0xff]
    %v76 = vld [vmem:[%s0 + $0x1e8] sm:$0xff]
    %v77 = vld [vmem:[%s0 + $0x1f0] sm:$0xff]
    %v78 = vld [vmem:[%s0 + $0x1f8] sm:$0xff]
    %v79 = vld [vmem:[%s1] sm:$0x1]
    %v80 = vperm.slane %v79, 0
    %v81 = vmul.f32 %v15, %v80
    %v82 = vmul.f32 %v16, %v80
    %v83 = vmul.f32 %v17, %v80
    %v84 = vmul.f32 %v18, %v80
    %v85 = vmul.f32 %v19, %v80
    %v86 = vmul.f32 %v20, %v80
    %v87 = vmul.f32 %v21, %v80
    %v88 = vmul.f32 %v22, %v80
    %v89 = vmul.f32 %v23, %v80
    %v90 = vmul.f32 %v24, %v80
    %v91 = vmul.f32 %v25, %v80
    %v92 = vmul.f32 %v26, %v80
    %v93 = vmul.f32 %v27, %v80
    %v94 = vmul.f32 %v28, %v80
    %v95 = vmul.f32 %v29, %v80
    %v96 = vmul.f32 %v30, %v80
    %v97 = vmul.f32 %v31, %v80
    %v98 = vmul.f32 %v32, %v80
    %v99 = vmul.f32 %v33, %v80
    %v100 = vmul.f32 %v34, %v80
    %v101 = vmul.f32 %v35, %v80
    %v102 = vmul.f32 %v36, %v80
    %v103 = vmul.f32 %v37, %v80
    %v104 = vmul.f32 %v38, %v80
    %v105 = vmul.f32 %v39, %v80
    %v106 = vmul.f32 %v40, %v80
    %v107 = vmul.f32 %v41, %v80
    %v108 = vmul.f32 %v42, %v80
    %v109 = vmul.f32 %v43, %v80
    %v110 = vmul.f32 %v44, %v80
    %v111 = vmul.f32 %v45, %v80
    %v112 = vmul.f32 %v46, %v80
    %v113 = vmul.f32 %v47, %v80
    %v114 = vmul.f32 %v48, %v80
    %v115 = vmul.f32 %v49, %v80
    %v116 = vmul.f32 %v50, %v80
    %v117 = vmul.f32 %v51, %v80
    %v118 = vmul.f32 %v52, %v80
    %v119 = vmul.f32 %v53, %v80
    %v120 = vmul.f32 %v54, %v80
    %v121 = vmul.f32 %v55, %v80
    %v122 = vmul.f32 %v56, %v80
    %v123 = vmul.f32 %v57, %v80
    %v124 = vmul.f32 %v58, %v80
    %v125 = vmul.f32 %v59, %v80
    %v126 = vmul.f32 %v60, %v80
    %v127 = vmul.f32 %v61, %v80
    %v128 = vmul.f32 %v62, %v80
    %v129 = vmul.f32 %v63, %v80
    %v130 = vmul.f32 %v64, %v80
    %v131 = vmul.f32 %v65, %v80
    %v132 = vmul.f32 %v66, %v80
    %v133 = vmul.f32 %v67, %v80
    %v134 = vmul.f32 %v68, %v80
    %v135 = vmul.f32 %v69, %v80
    %v136 = vmul.f32 %v70, %v80
    %v137 = vmul.f32 %v71, %v80
    %v138 = vmul.f32 %v72, %v80
    %v139 = vmul.f32 %v73, %v80
    %v140 = vmul.f32 %v74, %v80
    %v141 = vmul.f32 %v75, %v80
    %v142 = vmul.f32 %v76, %v80
    %v143 = vmul.f32 %v77, %v80
    %v144 = vmul.f32 %v78, %v80
    %v145 = vld [vmem:[%s1 + $0x1] sm:$0x1]
    %v146 = vperm.slane %v145, 0
    %v147 = vadd.f32 %v81, %v146
    %v148 = vadd.f32 %v82, %v146
    %v149 = vadd.f32 %v83, %v146
    %v150 = vadd.f32 %v84, %v146
    %v151 = vadd.f32 %v85, %v146
    %v152 = vadd.f32 %v86, %v146
    %v153 = vadd.f32 %v87, %v146
    %v154 = vadd.f32 %v88, %v146
    %v155 = vadd.f32 %v89, %v146
    %v156 = vadd.f32 %v90, %v146
    %v157 = vadd.f32 %v91, %v146
    %v158 = vadd.f32 %v92, %v146
    %v159 = vadd.f32 %v93, %v146
    %v160 = vadd.f32 %v94, %v146
    %v161 = vadd.f32 %v95, %v146
    %v162 = vadd.f32 %v96, %v146
    %v163 = vadd.f32 %v97, %v146
    %v164 = vadd.f32 %v98, %v146
    %v165 = vadd.f32 %v99, %v146
    %v166 = vadd.f32 %v100, %v146
    %v167 = vadd.f32 %v101, %v146
    %v168 = vadd.f32 %v102, %v146
    %v169 = vadd.f32 %v103, %v146
    %v170 = vadd.f32 %v104, %v146
    %v171 = vadd.f32 %v105, %v146
    %v172 = vadd.f32 %v106, %v146
    %v173 = vadd.f32 %v107, %v146
    %v174 = vadd.f32 %v108, %v146
    %v175 = vadd.f32 %v109, %v146
    %v176 = vadd.f32 %v110, %v146
    %v177 = vadd.f32 %v111, %v146
    %v178 = vadd.f32 %v112, %v146
    %v179 = vadd.f32 %v113, %v146
    %v180 = vadd.f32 %v114, %v146
    %v181 = vadd.f32 %v115, %v146
    %v182 = vadd.f32 %v116, %v146
    %v183 = vadd.f32 %v117, %v146
    %v184 = vadd.f32 %v118, %v146
    %v185 = vadd.f32 %v119, %v146
    %v186 = vadd.f32 %v120, %v146
    %v187 = vadd.f32 %v121, %v146
    %v188 = vadd.f32 %v122, %v146
    %v189 = vadd.f32 %v123, %v146
    %v190 = vadd.f32 %v124, %v146
    %v191 = vadd.f32 %v125, %v146
    %v192 = vadd.f32 %v126, %v146
    %v193 = vadd.f32 %v127, %v146
    %v194 = vadd.f32 %v128, %v146
    %v195 = vadd.f32 %v129, %v146
    %v196 = vadd.f32 %v130, %v146
    %v197 = vadd.f32 %v131, %v146
    %v198 = vadd.f32 %v132, %v146
    %v199 = vadd.f32 %v133, %v146
    %v200 = vadd.f32 %v134, %v146
    %v201 = vadd.f32 %v135, %v146
    %v202 = vadd.f32 %v136, %v146
    %v203 = vadd.f32 %v137, %v146
    %v204 = vadd.f32 %v138, %v146
    %v205 = vadd.f32 %v139, %v146
    %v206 = vadd.f32 %v140, %v146
    %v207 = vadd.f32 %v141, %v146
    %v208 = vadd.f32 %v142, %v146
    %v209 = vadd.f32 %v143, %v146
    %v210 = vadd.f32 %v144, %v146
    %v211 = vld [vmem:[%s2] sm:$0xff]
    %v212 = vld [vmem:[%s2 + $0x8] sm:$0xff]
    %v213 = vld [vmem:[%s2 + $0x10] sm:$0xff]
    %v214 = vld [vmem:[%s2 + $0x18] sm:$0xff]
    %v215 = vld [vmem:[%s2 + $0x20] sm:$0xff]
    %v216 = vld [vmem:[%s2 + $0x28] sm:$0xff]
    %v217 = vld [vmem:[%s2 + $0x30] sm:$0xff]
    %v218 = vld [vmem:[%s2 + $0x38] sm:$0xff]
    %v219 = vld [vmem:[%s2 + $0x40] sm:$0xff]
    %v220 = vld [vmem:[%s2 + $0x48] sm:$0xff]
    %v221 = vld [vmem:[%s2 + $0x50] sm:$0xff]
    %v222 = vld [vmem:[%s2 + $0x58] sm:$0xff]
    %v223 = vld [vmem:[%s2 + $0x60] sm:$0xff]
    %v224 = vld [vmem:[%s2 + $0x68] sm:$0xff]
    %v225 = vld [vmem:[%s2 + $0x70] sm:$0xff]
    %v226 = vld [vmem:[%s2 + $0x78] sm:$0xff]
    %v227 = vld [vmem:[%s2 + $0x80] sm:$0xff]
    %v228 = vld [vmem:[%s2 + $0x88] sm:$0xff]
    %v229 = vld [vmem:[%s2 + $0x90] sm:$0xff]
    %v230 = vld [vmem:[%s2 + $0x98] sm:$0xff]
    %v231 = vld [vmem:[%s2 + $0xa0] sm:$0xff]
    %v232 = vld [vmem:[%s2 + $0xa8] sm:$0xff]
    %v233 = vld [vmem:[%s2 + $0xb0] sm:$0xff]
    %v234 = vld [vmem:[%s2 + $0xb8] sm:$0xff]
    %v235 = vld [vmem:[%s2 + $0xc0] sm:$0xff]
    %v236 = vld [vmem:[%s2 + $0xc8] sm:$0xff]
    %v237 = vld [vmem:[%s2 + $0xd0] sm:$0xff]
    %v238 = vld [vmem:[%s2 + $0xd8] sm:$0xff]
    %v239 = vld [vmem:[%s2 + $0xe0] sm:$0xff]
    %v240 = vld [vmem:[%s2 + $0xe8] sm:$0xff]
    %v241 = vld [vmem:[%s2 + $0xf0] sm:$0xff]
    %v242 = vld [vmem:[%s2 + $0xf8] sm:$0xff]
    %v243 = vld [vmem:[%s2 + $0x100] sm:$0xff]
    %v244 = vld [vmem:[%s2 + $0x108] sm:$0xff]
    %v245 = vld [vmem:[%s2 + $0x110] sm:$0xff]
    %v246 = vld [vmem:[%s2 + $0x118] sm:$0xff]
    %v247 = vld [vmem:[%s2 + $0x120] sm:$0xff]
    %v248 = vld [vmem:[%s2 + $0x128] sm:$0xff]
    %v249 = vld [vmem:[%s2 + $0x130] sm:$0xff]
    %v250 = vld [vmem:[%s2 + $0x138] sm:$0xff]
    %v251 = vld [vmem:[%s2 + $0x140] sm:$0xff]
    %v252 = vld [vmem:[%s2 + $0x148] sm:$0xff]
    %v253 = vld [vmem:[%s2 + $0x150] sm:$0xff]
    %v254 = vld [vmem:[%s2 + $0x158] sm:$0xff]
    %v255 = vld [vmem:[%s2 + $0x160] sm:$0xff]
    %v256 = vld [vmem:[%s2 + $0x168] sm:$0xff]
    %v257 = vld [vmem:[%s2 + $0x170] sm:$0xff]
    %v258 = vld [vmem:[%s2 + $0x178] sm:$0xff]
    %v259 = vld [vmem:[%s2 + $0x180] sm:$0xff]
    %v260 = vld [vmem:[%s2 + $0x188] sm:$0xff]
    %v261 = vld [vmem:[%s2 + $0x190] sm:$0xff]
    %v262 = vld [vmem:[%s2 + $0x198] sm:$0xff]
    %v263 = vld [vmem:[%s2 + $0x1a0] sm:$0xff]
    %v264 = vld [vmem:[%s2 + $0x1a8] sm:$0xff]
    %v265 = vld [vmem:[%s2 + $0x1b0] sm:$0xff]
    %v266 = vld [vmem:[%s2 + $0x1b8] sm:$0xff]
    %v267 = vld [vmem:[%s2 + $0x1c0] sm:$0xff]
    %v268 = vld [vmem:[%s2 + $0x1c8] sm:$0xff]
    %v269 = vld [vmem:[%s2 + $0x1d0] sm:$0xff]
    %v270 = vld [vmem:[%s2 + $0x1d8] sm:$0xff]
    %v271 = vld [vmem:[%s2 + $0x1e0] sm:$0xff]
    %v272 = vld [vmem:[%s2 + $0x1e8] sm:$0xff]
    %v273 = vld [vmem:[%s2 + $0x1f0] sm:$0xff]
    %v274 = vld [vmem:[%s2 + $0x1f8] sm:$0xff]
    %v275 = vadd.f32 %v147, %v211
    %v276 = vadd.f32 %v148, %v212
    %v277 = vadd.f32 %v149, %v213
    %v278 = vadd.f32 %v150, %v214
    %v279 = vadd.f32 %v151, %v215
    %v280 = vadd.f32 %v152, %v216
    %v281 = vadd.f32 %v153, %v217
    %v282 = vadd.f32 %v154, %v218
    %v283 = vadd.f32 %v155, %v219
    %v284 = vadd.f32 %v156, %v220
    %v285 = vadd.f32 %v157, %v221
    %v286 = vadd.f32 %v158, %v222
    %v287 = vadd.f32 %v159, %v223
    %v288 = vadd.f32 %v160, %v224
    %v289 = vadd.f32 %v161, %v225
    %v290 = vadd.f32 %v162, %v226
    %v291 = vadd.f32 %v163, %v227
    %v292 = vadd.f32 %v164, %v228
    %v293 = vadd.f32 %v165, %v229
    %v294 = vadd.f32 %v166, %v230
    %v295 = vadd.f32 %v167, %v231
    %v296 = vadd.f32 %v168, %v232
    %v297 = vadd.f32 %v169, %v233
    %v298 = vadd.f32 %v170, %v234
    %v299 = vadd.f32 %v171, %v235
    %v300 = vadd.f32 %v172, %v236
    %v301 = vadd.f32 %v173, %v237
    %v302 = vadd.f32 %v174, %v238
    %v303 = vadd.f32 %v175, %v239
    %v304 = vadd.f32 %v176, %v240
    %v305 = vadd.f32 %v177, %v241
    %v306 = vadd.f32 %v178, %v242
    %v307 = vadd.f32 %v179, %v243
    %v308 = vadd.f32 %v180, %v244
    %v309 = vadd.f32 %v181, %v245
    %v310 = vadd.f32 %v182, %v246
    %v311 = vadd.f32 %v183, %v247
    %v312 = vadd.f32 %v184, %v248
    %v313 = vadd.f32 %v185, %v249
    %v314 = vadd.f32 %v186, %v250
    %v315 = vadd.f32 %v187, %v251
    %v316 = vadd.f32 %v188, %v252
    %v317 = vadd.f32 %v189, %v253
    %v318 = vadd.f32 %v190, %v254
    %v319 = vadd.f32 %v191, %v255
    %v320 = vadd.f32 %v192, %v256
    %v321 = vadd.f32 %v193, %v257
    %v322 = vadd.f32 %v194, %v258
    %v323 = vadd.f32 %v195, %v259
    %v324 = vadd.f32 %v196, %v260
    %v325 = vadd.f32 %v197, %v261
    %v326 = vadd.f32 %v198, %v262
    %v327 = vadd.f32 %v199, %v263
    %v328 = vadd.f32 %v200, %v264
    %v329 = vadd.f32 %v201, %v265
    %v330 = vadd.f32 %v202, %v266
    %v331 = vadd.f32 %v203, %v267
    %v332 = vadd.f32 %v204, %v268
    %v333 = vadd.f32 %v205, %v269
    %v334 = vadd.f32 %v206, %v270
    %v335 = vadd.f32 %v207, %v271
    %v336 = vadd.f32 %v208, %v272
    %v337 = vadd.f32 %v209, %v273
    %v338 = vadd.f32 %v210, %v274
    %v339 = vmax.f32 %v275, 0.0
    %v340 = vmax.f32 %v276, 0.0
    %v341 = vmax.f32 %v277, 0.0
    %v342 = vmax.f32 %v278, 0.0
    %v343 = vmax.f32 %v279, 0.0
    %v344 = vmax.f32 %v280, 0.0
    %v345 = vmax.f32 %v281, 0.0
    %v346 = vmax.f32 %v282, 0.0
    %v347 = vmax.f32 %v283, 0.0
    %v348 = vmax.f32 %v284, 0.0
    %v349 = vmax.f32 %v285, 0.0
    %v350 = vmax.f32 %v286, 0.0
    %v351 = vmax.f32 %v287, 0.0
    %v352 = vmax.f32 %v288, 0.0
    %v353 = vmax.f32 %v289, 0.0
    %v354 = vmax.f32 %v290, 0.0
    %v355 = vmax.f32 %v291, 0.0
    %v356 = vmax.f32 %v292, 0.0
    %v357 = vmax.f32 %v293, 0.0
    %v358 = vmax.f32 %v294, 0.0
    %v359 = vmax.f32 %v295, 0.0
    %v360 = vmax.f32 %v296, 0.0
    %v361 = vmax.f32 %v297, 0.0
    %v362 = vmax.f32 %v298, 0.0
    %v363 = vmax.f32 %v299, 0.0
    %v364 = vmax.f32 %v300, 0.0
    %v365 = vmax.f32 %v301, 0.0
    %v366 = vmax.f32 %v302, 0.0
    %v367 = vmax.f32 %v303, 0.0
    %v368 = vmax.f32 %v304, 0.0
    %v369 = vmax.f32 %v305, 0.0
    %v370 = vmax.f32 %v306, 0.0
    %v371 = vmax.f32 %v307, 0.0
    %v372 = vmax.f32 %v308, 0.0
    %v373 = vmax.f32 %v309, 0.0
    %v374 = vmax.f32 %v310, 0.0
    %v375 = vmax.f32 %v311, 0.0
    %v376 = vmax.f32 %v312, 0.0
    %v377 = vmax.f32 %v313, 0.0
    %v378 = vmax.f32 %v314, 0.0
    %v379 = vmax.f32 %v315, 0.0
    %v380 = vmax.f32 %v316, 0.0
    %v381 = vmax.f32 %v317, 0.0
    %v382 = vmax.f32 %v318, 0.0
    %v383 = vmax.f32 %v319, 0.0
    %v384 = vmax.f32 %v320, 0.0
    %v385 = vmax.f32 %v321, 0.0
    %v386 = vmax.f32 %v322, 0.0
    %v387 = vmax.f32 %v323, 0.0
    %v388 = vmax.f32 %v324, 0.0
    %v389 = vmax.f32 %v325, 0.0
    %v390 = vmax.f32 %v326, 0.0
    %v391 = vmax.f32 %v327, 0.0
    %v392 = vmax.f32 %v328, 0.0
    %v393 = vmax.f32 %v329, 0.0
    %v394 = vmax.f32 %v330, 0.0
    %v395 = vmax.f32 %v331, 0.0
    %v396 = vmax.f32 %v332, 0.0
    %v397 = vmax.f32 %v333, 0.0
    %v398 = vmax.f32 %v334, 0.0
    %v399 = vmax.f32 %v335, 0.0
    %v400 = vmax.f32 %v336, 0.0
    %v401 = vmax.f32 %v337, 0.0
    %v402 = vmax.f32 %v338, 0.0
    %403 = vst [vmem:[#allocation2] sm:$0xff] %v339
    %404 = vst [vmem:[#allocation2 + $0x8] sm:$0xff] %v340
    %405 = vst [vmem:[#allocation2 + $0x10] sm:$0xff] %v341
    %406 = vst [vmem:[#allocation2 + $0x18] sm:$0xff] %v342
    %407 = vst [vmem:[#allocation2 + $0x20] sm:$0xff] %v343
    %408 = vst [vmem:[#allocation2 + $0x28] sm:$0xff] %v344
    %409 = vst [vmem:[#allocation2 + $0x30] sm:$0xff] %v345
    %410 = vst [vmem:[#allocation2 + $0x38] sm:$0xff] %v346
    %411 = vst [vmem:[#allocation2 + $0x40] sm:$0xff] %v347
    %412 = vst [vmem:[#allocation2 + $0x48] sm:$0xff] %v348
    %413 = vst [vmem:[#allocation2 + $0x50] sm:$0xff] %v349
    %414 = vst [vmem:[#allocation2 + $0x58] sm:$0xff] %v350
    %415 = vst [vmem:[#allocation2 + $0x60] sm:$0xff] %v351
    %416 = vst [vmem:[#allocation2 + $0x68] sm:$0xff] %v352
    %417 = vst [vmem:[#allocation2 + $0x70] sm:$0xff] %v353
    %418 = vst [vmem:[#allocation2 + $0x78] sm:$0xff] %v354
    %419 = vst [vmem:[#allocation2 + $0x80] sm:$0xff] %v355
    %420 = vst [vmem:[#allocation2 + $0x88] sm:$0xff] %v356
    %421 = vst [vmem:[#allocation2 + $0x90] sm:$0xff] %v357
    %422 = vst [vmem:[#allocation2 + $0x98] sm:$0xff] %v358
    %423 = vst [vmem:[#allocation2 + $0xa0] sm:$0xff] %v359
    %424 = vst [vmem:[#allocation2 + $0xa8] sm:$0xff] %v360
    %425 = vst [vmem:[#allocation2 + $0xb0] sm:$0xff] %v361
    %426 = vst [vmem:[#allocation2 + $0xb8] sm:$0xff] %v362
    %427 = vst [vmem:[#allocation2 + $0xc0] sm:$0xff] %v363
    %428 = vst [vmem:[#allocation2 + $0xc8] sm:$0xff] %v364
    %429 = vst [vmem:[#allocation2 + $0xd0] sm:$0xff] %v365
    %430 = vst [vmem:[#allocation2 + $0xd8] sm:$0xff] %v366
    %431 = vst [vmem:[#allocation2 + $0xe0] sm:$0xff] %v367
    %432 = vst [vmem:[#allocation2 + $0xe8] sm:$0xff] %v368
    %433 = vst [vmem:[#allocation2 + $0xf0] sm:$0xff] %v369
    %434 = vst [vmem:[#allocation2 + $0xf8] sm:$0xff] %v370
    %435 = vst [vmem:[#allocation2 + $0x100] sm:$0xff] %v371
    %436 = vst [vmem:[#allocation2 + $0x108] sm:$0xff] %v372
    %437 = vst [vmem:[#allocation2 + $0x110] sm:$0xff] %v373
    %438 = vst [vmem:[#allocation2 + $0x118] sm:$0xff] %v374
    %439 = vst [vmem:[#allocation2 + $0x120] sm:$0xff] %v375
    %440 = vst [vmem:[#allocation2 + $0x128] sm:$0xff] %v376
    %441 = vst [vmem:[#allocation2 + $0x130] sm:$0xff] %v377
    %442 = vst [vmem:[#allocation2 + $0x138] sm:$0xff] %v378
    %443 = vst [vmem:[#allocation2 + $0x140] sm:$0xff] %v379
    %444 = vst [vmem:[#allocation2 + $0x148] sm:$0xff] %v380
    %445 = vst [vmem:[#allocation2 + $0x150] sm:$0xff] %v381
    %446 = vst [vmem:[#allocation2 + $0x158] sm:$0xff] %v382
    %447 = vst [vmem:[#allocation2 + $0x160] sm:$0xff] %v383
    %448 = vst [vmem:[#allocation2 + $0x168] sm:$0xff] %v384
    %449 = vst [vmem:[#allocation2 + $0x170] sm:$0xff] %v385
    %450 = vst [vmem:[#allocation2 + $0x178] sm:$0xff] %v386
    %451 = vst [vmem:[#allocation2 + $0x180] sm:$0xff] %v387
    %452 = vst [vmem:[#allocation2 + $0x188] sm:$0xff] %v388
    %453 = vst [vmem:[#allocation2 + $0x190] sm:$0xff] %v389
    %454 = vst [vmem:[#allocation2 + $0x198] sm:$0xff] %v390
    %455 = vst [vmem:[#allocation2 + $0x1a0] sm:$0xff] %v391
    %456 = vst [vmem:[#allocation2 + $0x1a8] sm:$0xff] %v392
    %457 = vst [vmem:[#allocation2 + $0x1b0] sm:$0xff] %v393
    %458 = vst [vmem:[#allocation2 + $0x1b8] sm:$0xff] %v394
    %459 = vst [vmem:[#allocation2 + $0x1c0] sm:$0xff] %v395
    %460 = vst [vmem:[#allocation2 + $0x1c8] sm:$0xff] %v396
    %461 = vst [vmem:[#allocation2 + $0x1d0] sm:$0xff] %v397
    %462 = vst [vmem:[#allocation2 + $0x1d8] sm:$0xff] %v398
    %463 = vst [vmem:[#allocation2 + $0x1e0] sm:$0xff] %v399
    %464 = vst [vmem:[#allocation2 + $0x1e8] sm:$0xff] %v400
    %465 = vst [vmem:[#allocation2 + $0x1f0] sm:$0xff] %v401
    %466 = vst [vmem:[#allocation2 + $0x1f8] sm:$0xff] %v402
    // Predicated region
    $region14: #{block_forward.7} parent=1 // pred_check
      _
    $region15: #{block_forward.7} parent=1 // pred_check_branch
      %468 = sbr.rel (0) target = $region17
    $region16: #{block_forward.7} parent=1 // pred_region
      %470 = vsyncadd [#allocation3], 0
      %s471 = sshll.u32 [#allocation2], 4
      %s472 = int_to_ptr.vmem [resolvable:$true] %s471
      %s473 = sshll.u32 %s3, 4
      %s474 = int_to_ptr.hbm [resolvable:$true] %s473
      %479 = dma.vmem_to_hbm [thread:$0]  %s472, 8192, %s474, [#allocation3], 128, 128, 8
    $region17: #{block_forward.7} parent=1 // pred_fallthru
      _
    // Predicated region
    $region18: #{block_forward.7} parent=1 // pred_check
      _
    $region19: #{block_forward.7} parent=1 // pred_check_branch
      %481 = sbr.rel (0) target = $region21
    $region20: #{block_forward.7} parent=1 // pred_region
      %483 = dma.done [#allocation3], 8192
    $region21: #{block_forward.7} parent=1 // pred_fallthru
      _
    %484 = vsyncpa [#allocation3], 1

// kernel: block_forward.5
$region0: #{block_forward.5}
  #allocation0 [shape = 'u32[]', space=smem, size = 0x4, offset = 0x4, fixed_abs, tag = 'smem constant byte address 0x4 - core index']
  #allocation1 [shape = 'u32[72,128]{1,0:T(1,128)}', space=vmem, size = 0x9000, scoped, tag = 'internal scratch']
  #allocation2 [shape = 'f32[18,18,128]{2,1,0:T(8,128)}', space=vmem, size = 0x36000, scoped, tag = 'scratch operand']
  %s0 = inlined_call_operand.vmem [shape: bf16[2,16,16,128], index: 0, kind: input, shape index: {}]
  %s1 = inlined_call_operand.vmem [shape: f32[2,128], index: 1, kind: input, shape index: {}]
  %s2 = inlined_call_operand.vmem [shape: bf16[9,128,128], index: 2, kind: input, shape index: {}]
  %s3 = inlined_call_operand.vmem [shape: bf16[2,256,128], index: 3, kind: output, shape index: {0}]
  %s4 = inlined_call_operand.vmem [shape: f32[2,2,128], index: 4, kind: output, shape index: {1}]
  %5 = xla_tuple %s3, %s4
  %s6 = sld [smem:[#allocation0]]
  $region53: #{block_forward.5} parent=0
    _
  %s8 = ssub.s32 1, %s6
  %s9 = scalar_select 0, %s8, %s6
  loop: start=0, step=1, limit=4
  $region2: #{block_forward.5} parent=0 // loop_pre_header
    _
  $region3: #{block_forward.5} parent=0 // loop_header
    %s11 = sphi 0, %s15
    %p12 = scmp.ge.s32.totalorder %s11, 4
    %s21 = sphi 0, %s23
    %s24 = sphi 0, %s21
    %s25 = sphi 0, %s24
    %s41 = sphi 0, %s25
    %s45 = sphi 0, %s45
    %s47 = sphi 0, %s45
    %s48 = sphi 0, %s47
    %s62 = sphi 0, %s48
    %s66 = sphi 0, %s66
    %s68 = sphi 0, %s66
    %s69 = sphi 0, %s68
    %s83 = sphi 0, %s69
    %s89 = sphi 0, %s91
    %s92 = sphi 0, %s89
    %s93 = sphi 0, %s92
    %s109 = sphi 0, %s93
    %s115 = sphi 0, %s117
    %s118 = sphi 0, %s115
    %s119 = sphi 0, %s118
    %s135 = sphi 0, %s119
  $region4: #{block_forward.5} parent=0 // loop_header_branch
    %14 = sbr.rel (%p12) target = $region8
  $region5: #{block_forward.5} parent=0 // loop_body
    %s16 = ssub.s32 %s11, 1
    %s17 = ssub.s32 %s11, 2
    %s18 = sadd.s32 %s11, 1
    %s19 = ssub.s32 %s11, %s18
    %p20 = scmp.eq.s32.totalorder %s19, 0
    %s22 = sadd.s32 %s21, 1
    %s23 = scalar_select %p20, %s21, %s22
    %p26 = pneg %p20
    %p27 = scmp.eq.s32.totalorder %s11, 1
    %p28 = por %p26, %p27
    %p29 = scmp.ne.s32.totalorder %s21, %s24
    %p30 = scmp.eq.s32.totalorder %s11, 0
    %p31 = por %p29, %p30
    %p32 = scmp.ne.s32.totalorder %s21, %s24
    %p33 = scmp.eq.s32.totalorder %s16, 1
    %p34 = por %p32, %p33
    %p35 = scmp.ne.s32.totalorder %s24, %s25
    %p36 = scmp.eq.s32.totalorder %s16, 0
    %p37 = por %p35, %p36
    %p38 = scmp.ne.s32.totalorder %s24, %s25
    %p39 = scmp.eq.s32.totalorder %s17, 1
    %p40 = por %p38, %p39
    %p42 = scmp.ne.s32.totalorder %s25, %s41
    %p43 = scmp.eq.s32.totalorder %s17, 0
    %p44 = por %p42, %p43
    %s46 = sadd.s32 %s45, 1
    %p49 = scmp.eq.s32.totalorder %s11, 1
    %p50 = scmp.ne.s32.totalorder %s45, %s47
    %p51 = scmp.eq.s32.totalorder %s11, 0
    %p52 = por %p50, %p51
    %p53 = scmp.ne.s32.totalorder %s45, %s47
    %p54 = scmp.eq.s32.totalorder %s16, 1
    %p55 = por %p53, %p54
    %p56 = scmp.ne.s32.totalorder %s47, %s48
    %p57 = scmp.eq.s32.totalorder %s16, 0
    %p58 = por %p56, %p57
    %p59 = scmp.ne.s32.totalorder %s47, %s48
    %p60 = scmp.eq.s32.totalorder %s17, 1
    %p61 = por %p59, %p60
    %p63 = scmp.ne.s32.totalorder %s48, %s62
    %p64 = scmp.eq.s32.totalorder %s17, 0
    %p65 = por %p63, %p64
    %s67 = sadd.s32 %s66, 1
    %p70 = scmp.eq.s32.totalorder %s11, 1
    %p71 = scmp.ne.s32.totalorder %s66, %s68
    %p72 = scmp.eq.s32.totalorder %s11, 0
    %p73 = por %p71, %p72
    %p74 = scmp.ne.s32.totalorder %s66, %s68
    %p75 = scmp.eq.s32.totalorder %s16, 1
    %p76 = por %p74, %p75
    %p77 = scmp.ne.s32.totalorder %s68, %s69
    %p78 = scmp.eq.s32.totalorder %s16, 0
    %p79 = por %p77, %p78
    %p80 = scmp.ne.s32.totalorder %s68, %s69
    %p81 = scmp.eq.s32.totalorder %s17, 1
    %p82 = por %p80, %p81
    %p84 = scmp.ne.s32.totalorder %s69, %s83
    %p85 = scmp.eq.s32.totalorder %s17, 0
    %p86 = por %p84, %p85
    %s87 = ssub.s32 %s11, %s18
    %p88 = scmp.eq.s32.totalorder %s87, 0
    %s90 = sadd.s32 %s89, 1
    %s91 = scalar_select %p88, %s89, %s90
    %p94 = pneg %p88
    %p95 = scmp.eq.s32.totalorder %s11, 1
    %p96 = por %p94, %p95
    %p97 = scmp.ne.s32.totalorder %s89, %s92
    %p98 = scmp.eq.s32.totalorder %s11, 0
    %p99 = por %p97, %p98
    %p100 = scmp.ne.s32.totalorder %s89, %s92
    %p101 = scmp.eq.s32.totalorder %s16, 1
    %p102 = por %p100, %p101
    %p103 = scmp.ne.s32.totalorder %s92, %s93
    %p104 = scmp.eq.s32.totalorder %s16, 0
    %p105 = por %p103, %p104
    %p106 = scmp.ne.s32.totalorder %s92, %s93
    %p107 = scmp.eq.s32.totalorder %s17, 1
    %p108 = por %p106, %p107
    %p110 = scmp.ne.s32.totalorder %s93, %s109
    %p111 = scmp.eq.s32.totalorder %s17, 0
    %p112 = por %p110, %p111
    %s113 = ssub.s32 %s11, %s18
    %p114 = scmp.eq.s32.totalorder %s113, 0
    %s116 = sadd.s32 %s115, 1
    %s117 = scalar_select %p114, %s115, %s116
    %p120 = pneg %p114
    %p121 = scmp.eq.s32.totalorder %s11, 1
    %p122 = por %p120, %p121
    %p123 = scmp.ne.s32.totalorder %s115, %s118
    %p124 = scmp.eq.s32.totalorder %s11, 0
    %p125 = por %p123, %p124
    %p126 = scmp.ne.s32.totalorder %s115, %s118
    %p127 = scmp.eq.s32.totalorder %s16, 1
    %p128 = por %p126, %p127
    %p129 = scmp.ne.s32.totalorder %s118, %s119
    %p130 = scmp.eq.s32.totalorder %s16, 0
    %p131 = por %p129, %p130
    %p132 = scmp.ne.s32.totalorder %s118, %s119
    %p133 = scmp.eq.s32.totalorder %s17, 1
    %p134 = por %p132, %p133
    %p136 = scmp.ne.s32.totalorder %s119, %s135
    %p137 = scmp.eq.s32.totalorder %s17, 0
    %p138 = por %p136, %p137
    %p139 = scmp.le.s32.totalorder 1, %s11
    %p140 = scmp.lt.s32.totalorder %s11, 3
    %p141 = pnand %p139, %p140
    %p142 = pneg %p141
    // Predicated region
    $region9: #{block_forward.5} parent=5 // pred_check
      _
    $region10: #{block_forward.5} parent=5 // pred_check_branch
      %144 = sbr.rel (%p141) target = $region12
    $region11: #{block_forward.5} parent=5 // pred_region
      %s145 = ssub.s32 %s11, 1
      // Predicated region
      $region13: #{block_forward.5} parent=11 // pred_check
        %p146 = pneg %p58
      $region14: #{block_forward.5} parent=11 // pred_check_branch
        %148 = sbr.rel (%p146) target = $region16
      $region15: #{block_forward.5} parent=11 // pred_region
        _
      $region16: #{block_forward.5} parent=11 // pred_fallthru
        _
      // Predicated region
      $region17: #{block_forward.5} parent=11 // pred_check
        %p149 = pneg %p79
      $region18: #{block_forward.5} parent=11 // pred_check_branch
        %151 = sbr.rel (%p149) target = $region20
      $region19: #{block_forward.5} parent=11 // pred_region
        _
      $region20: #{block_forward.5} parent=11 // pred_fallthru
        _
    $region12: #{block_forward.5} parent=5 // pred_fallthru
      _
    %p152 = scmp.lt.s32.totalorder %s11, 2
    // Predicated region
    $region21: #{block_forward.5} parent=5 // pred_check
      %p153 = pneg %p152
    $region22: #{block_forward.5} parent=5 // pred_check_branch
      %155 = sbr.rel (%p153) target = $region24
    $region23: #{block_forward.5} parent=5 // pred_region
      // Predicated region
      $region25: #{block_forward.5} parent=23 // pred_check
        %p156 = pneg %p31
      $region26: #{block_forward.5} parent=23 // pred_check_branch
        %158 = sbr.rel (%p156) target = $region28
      $region27: #{block_forward.5} parent=23 // pred_region
        %p159 = scmp.lt.s32.totalorder %s11, 1
        %s160 = scalar_select %p159, %s11, 1
        %s161 = smul.addr %s160, 32
        %s162 = smul.addr %s161, 4
        %s163 = scalar_lea.vmem %s0, %s162
      $region28: #{block_forward.5} parent=23 // pred_fallthru
        _
    $region24: #{block_forward.5} parent=5 // pred_fallthru
      _
    %p164 = scmp.le.s32.totalorder 1, %s11
    %p165 = scmp.lt.s32.totalorder %s11, 3
    %p166 = pnand %p164, %p165
    %p167 = pneg %p166
    // Predicated region
    $region29: #{block_forward.5} parent=5 // pred_check
      _
    $region30: #{block_forward.5} parent=5 // pred_check_branch
      %169 = sbr.rel (%p166) target = $region32
    $region31: #{block_forward.5} parent=5 // pred_region
      %s170 = ssub.s32 %s11, 1
      %p171 = scmp.lt.s32.totalorder %s16, 1
      %s172 = scalar_select %p171, %s16, 1
      %s173 = smul.addr %s172, 32
      %s174 = smul.addr %s173, 4
      %s175 = scalar_lea.vmem %s0, %s174
      %p176 = pneg %p37
      %p177 = pneg %p34
      %p178 = pneg %p58
      %p179 = pneg %p55
      %p180 = pneg %p79
      %p181 = pneg %p76
      %p182 = pneg %p105
      %p183 = pneg %p102
      %p184 = scmp.lt.s32.totalorder %s16, 1
      %s185 = scalar_select %p184, %s16, 1
      %s186 = smul.addr %s185, 32
      %s187 = smul.addr %s186, 4
      %s188 = scalar_lea.vmem %s3, %s187
      %p189 = pneg %p131
      %p190 = pneg %p128
      %p191 = scmp.lt.s32.totalorder %s16, 1
      %s192 = scalar_select %p191, %s16, 1
      %s193 = smul.addr %s192, 2
      %s194 = scalar_lea.vmem %s4, %s193
      %p195 = scmp.lt.s32.totalorder %s16, 1
      %s196 = scalar_select %p195, %s16, 1
      %s197 = smul.addr %s196, 32
      %s198 = smul.addr %s197, 4
      %s199 = scalar_lea.vmem %s0, %s198
      %p200 = scmp.lt.s32.totalorder %s16, 1
      %s201 = scalar_select %p200, %s16, 1
      %s202 = smul.addr %s201, 32
      %s203 = smul.addr %s202, 4
      %s204 = scalar_lea.vmem %s3, %s203
      %p205 = scmp.lt.s32.totalorder %s16, 1
      %s206 = scalar_select %p205, %s16, 1
      %s207 = smul.addr %s206, 2
      %s208 = scalar_lea.vmem %s4, %s207
      %209 = vst [vmem:[#allocation2] sm:$0xff] 0.0
      %210 = vst [vmem:[#allocation2 + $0x8] sm:$0xff] 0.0
      %211 = vst [vmem:[#allocation2 + $0x10] sm:$0x3] 0.0
      %212 = vst [vmem:[#allocation2 + $0x18] sm:$0xff] 0.0
      %213 = vst [vmem:[#allocation2 + $0x20] sm:$0xff] 0.0
      %214 = vst [vmem:[#allocation2 + $0x28] sm:$0x3] 0.0
      %215 = vst [vmem:[#allocation2 + $0x30] sm:$0xff] 0.0
      %216 = vst [vmem:[#allocation2 + $0x38] sm:$0xff] 0.0
      %217 = vst [vmem:[#allocation2 + $0x40] sm:$0x3] 0.0
      %218 = vst [vmem:[#allocation2 + $0x48] sm:$0xff] 0.0
      %219 = vst [vmem:[#allocation2 + $0x50] sm:$0xff] 0.0
      %220 = vst [vmem:[#allocation2 + $0x58] sm:$0x3] 0.0
      %221 = vst [vmem:[#allocation2 + $0x60] sm:$0xff] 0.0
      %222 = vst [vmem:[#allocation2 + $0x68] sm:$0xff] 0.0
      %223 = vst [vmem:[#allocation2 + $0x70] sm:$0x3] 0.0
      %224 = vst [vmem:[#allocation2 + $0x78] sm:$0xff] 0.0
      %225 = vst [vmem:[#allocation2 + $0x80] sm:$0xff] 0.0
      %226 = vst [vmem:[#allocation2 + $0x88] sm:$0x3] 0.0
      %227 = vst [vmem:[#allocation2 + $0x90] sm:$0xff] 0.0
      %228 = vst [vmem:[#allocation2 + $0x98] sm:$0xff] 0.0
      %229 = vst [vmem:[#allocation2 + $0xa0] sm:$0x3] 0.0
      %230 = vst [vmem:[#allocation2 + $0xa8] sm:$0xff] 0.0
      %231 = vst [vmem:[#allocation2 + $0xb0] sm:$0xff] 0.0
      %232 = vst [vmem:[#allocation2 + $0xb8] sm:$0x3] 0.0
      %233 = vst [vmem:[#allocation2 + $0xc0] sm:$0xff] 0.0
      %234 = vst [vmem:[#allocation2 + $0xc8] sm:$0xff] 0.0
      %235 = vst [vmem:[#allocation2 + $0xd0] sm:$0x3] 0.0
      %236 = vst [vmem:[#allocation2 + $0xd8] sm:$0xff] 0.0
      %237 = vst [vmem:[#allocation2 + $0xe0] sm:$0xff] 0.0
      %238 = vst [vmem:[#allocation2 + $0xe8] sm:$0x3] 0.0
      %239 = vst [vmem:[#allocation2 + $0xf0] sm:$0xff] 0.0
      %240 = vst [vmem:[#allocation2 + $0xf8] sm:$0xff] 0.0
      %241 = vst [vmem:[#allocation2 + $0x100] sm:$0x3] 0.0
      %242 = vst [vmem:[#allocation2 + $0x108] sm:$0xff] 0.0
      %243 = vst [vmem:[#allocation2 + $0x110] sm:$0xff] 0.0
      %244 = vst [vmem:[#allocation2 + $0x118] sm:$0x3] 0.0
      %245 = vst [vmem:[#allocation2 + $0x120] sm:$0xff] 0.0
      %246 = vst [vmem:[#allocation2 + $0x128] sm:$0xff] 0.0
      %247 = vst [vmem:[#allocation2 + $0x130] sm:$0x3] 0.0
      %248 = vst [vmem:[#allocation2 + $0x138] sm:$0xff] 0.0
      %249 = vst [vmem:[#allocation2 + $0x140] sm:$0xff] 0.0
      %250 = vst [vmem:[#allocation2 + $0x148] sm:$0x3] 0.0
      %251 = vst [vmem:[#allocation2 + $0x150] sm:$0xff] 0.0
      %252 = vst [vmem:[#allocation2 + $0x158] sm:$0xff] 0.0
      %253 = vst [vmem:[#allocation2 + $0x160] sm:$0x3] 0.0
      %254 = vst [vmem:[#allocation2 + $0x168] sm:$0xff] 0.0
      %255 = vst [vmem:[#allocation2 + $0x170] sm:$0xff] 0.0
      %256 = vst [vmem:[#allocation2 + $0x178] sm:$0x3] 0.0
      %257 = vst [vmem:[#allocation2 + $0x180] sm:$0xff] 0.0
      %258 = vst [vmem:[#allocation2 + $0x188] sm:$0xff] 0.0
      %259 = vst [vmem:[#allocation2 + $0x190] sm:$0x3] 0.0
      %260 = vst [vmem:[#allocation2 + $0x198] sm:$0xff] 0.0
      %261 = vst [vmem:[#allocation2 + $0x1a0] sm:$0xff] 0.0
      %262 = vst [vmem:[#allocation2 + $0x1a8] sm:$0x3] 0.0
      %v263 = vld [vmem:[%s199] sm:$0xf]
      %v264 = vld [vmem:[%s199 + $0x4] sm:$0xf]
      %v265 = vld [vmem:[%s199 + $0x8] sm:$0xf]
      %v266 = vld [vmem:[%s199 + $0xc] sm:$0xf]
      %v267 = vld [vmem:[%s199 + $0x10] sm:$0xf]
      %v268 = vld [vmem:[%s199 + $0x14] sm:$0xf]
      %v269 = vld [vmem:[%s199 + $0x18] sm:$0xf]
      %v270 = vld [vmem:[%s199 + $0x1c] sm:$0xf]
      %v271 = vld [vmem:[%s199 + $0x20] sm:$0xf]
      %v272 = vld [vmem:[%s199 + $0x24] sm:$0xf]
      %v273 = vld [vmem:[%s199 + $0x28] sm:$0xf]
      %v274 = vld [vmem:[%s199 + $0x2c] sm:$0xf]
      %v275 = vld [vmem:[%s199 + $0x30] sm:$0xf]
      %v276 = vld [vmem:[%s199 + $0x34] sm:$0xf]
      %v277 = vld [vmem:[%s199 + $0x38] sm:$0xf]
      %v278 = vld [vmem:[%s199 + $0x3c] sm:$0xf]
      %v279 = vld [vmem:[%s199 + $0x40] sm:$0xf]
      %v280 = vld [vmem:[%s199 + $0x44] sm:$0xf]
      %v281 = vld [vmem:[%s199 + $0x48] sm:$0xf]
      %v282 = vld [vmem:[%s199 + $0x4c] sm:$0xf]
      %v283 = vld [vmem:[%s199 + $0x50] sm:$0xf]
      %v284 = vld [vmem:[%s199 + $0x54] sm:$0xf]
      %v285 = vld [vmem:[%s199 + $0x58] sm:$0xf]
      %v286 = vld [vmem:[%s199 + $0x5c] sm:$0xf]
      %v287 = vld [vmem:[%s199 + $0x60] sm:$0xf]
      %v288 = vld [vmem:[%s199 + $0x64] sm:$0xf]
      %v289 = vld [vmem:[%s199 + $0x68] sm:$0xf]
      %v290 = vld [vmem:[%s199 + $0x6c] sm:$0xf]
      %v291 = vld [vmem:[%s199 + $0x70] sm:$0xf]
      %v292 = vld [vmem:[%s199 + $0x74] sm:$0xf]
      %v293 = vld [vmem:[%s199 + $0x78] sm:$0xf]
      %v294 = vld [vmem:[%s199 + $0x7c] sm:$0xf]
      %v295 = vunpack.c.l.bf16 %v263
      %v296 = vunpack.c.l.bf16 %v264
      %v297 = vunpack.c.l.bf16 %v265
      %v298 = vunpack.c.l.bf16 %v266
      %v299 = vunpack.c.l.bf16 %v267
      %v300 = vunpack.c.l.bf16 %v268
      %v301 = vunpack.c.l.bf16 %v269
      %v302 = vunpack.c.l.bf16 %v270
      %v303 = vunpack.c.l.bf16 %v271
      %v304 = vunpack.c.l.bf16 %v272
      %v305 = vunpack.c.l.bf16 %v273
      %v306 = vunpack.c.l.bf16 %v274
      %v307 = vunpack.c.l.bf16 %v275
      %v308 = vunpack.c.l.bf16 %v276
      %v309 = vunpack.c.l.bf16 %v277
      %v310 = vunpack.c.l.bf16 %v278
      %v311 = vunpack.c.l.bf16 %v279
      %v312 = vunpack.c.l.bf16 %v280
      %v313 = vunpack.c.l.bf16 %v281
      %v314 = vunpack.c.l.bf16 %v282
      %v315 = vunpack.c.l.bf16 %v283
      %v316 = vunpack.c.l.bf16 %v284
      %v317 = vunpack.c.l.bf16 %v285
      %v318 = vunpack.c.l.bf16 %v286
      %v319 = vunpack.c.l.bf16 %v287
      %v320 = vunpack.c.l.bf16 %v288
      %v321 = vunpack.c.l.bf16 %v289
      %v322 = vunpack.c.l.bf16 %v290
      %v323 = vunpack.c.l.bf16 %v291
      %v324 = vunpack.c.l.bf16 %v292
      %v325 = vunpack.c.l.bf16 %v293
      %v326 = vunpack.c.l.bf16 %v294
      %v327 = vld [vmem:[%s1] sm:$0x1]
      %v328 = vperm.slane %v327, 0
      %v329 = vmul.f32 %v295, %v328
      %v330 = vmul.f32 %v296, %v328
      %v331 = vmul.f32 %v297, %v328
      %v332 = vmul.f32 %v298, %v328
      %v333 = vmul.f32 %v299, %v328
      %v334 = vmul.f32 %v300, %v328
      %v335 = vmul.f32 %v301, %v328
      %v336 = vmul.f32 %v302, %v328
      %v337 = vmul.f32 %v303, %v328
      %v338 = vmul.f32 %v304, %v328
      %v339 = vmul.f32 %v305, %v328
      %v340 = vmul.f32 %v306, %v328
      %v341 = vmul.f32 %v307, %v328
      %v342 = vmul.f32 %v308, %v328
      %v343 = vmul.f32 %v309, %v328
      %v344 = vmul.f32 %v310, %v328
      %v345 = vmul.f32 %v311, %v328
      %v346 = vmul.f32 %v312, %v328
      %v347 = vmul.f32 %v313, %v328
      %v348 = vmul.f32 %v314, %v328
      %v349 = vmul.f32 %v315, %v328
      %v350 = vmul.f32 %v316, %v328
      %v351 = vmul.f32 %v317, %v328
      %v352 = vmul.f32 %v318, %v328
      %v353 = vmul.f32 %v319, %v328
      %v354 = vmul.f32 %v320, %v328
      %v355 = vmul.f32 %v321, %v328
      %v356 = vmul.f32 %v322, %v328
      %v357 = vmul.f32 %v323, %v328
      %v358 = vmul.f32 %v324, %v328
      %v359 = vmul.f32 %v325, %v328
      %v360 = vmul.f32 %v326, %v328
      %v361 = vld [vmem:[%s1 + $0x1] sm:$0x1]
      %v362 = vperm.slane %v361, 0
      %v363 = vadd.f32 %v329, %v362
      %v364 = vadd.f32 %v330, %v362
      %v365 = vadd.f32 %v331, %v362
      %v366 = vadd.f32 %v332, %v362
      %v367 = vadd.f32 %v333, %v362
      %v368 = vadd.f32 %v334, %v362
      %v369 = vadd.f32 %v335, %v362
      %v370 = vadd.f32 %v336, %v362
      %v371 = vadd.f32 %v337, %v362
      %v372 = vadd.f32 %v338, %v362
      %v373 = vadd.f32 %v339, %v362
      %v374 = vadd.f32 %v340, %v362
      %v375 = vadd.f32 %v341, %v362
      %v376 = vadd.f32 %v342, %v362
      %v377 = vadd.f32 %v343, %v362
      %v378 = vadd.f32 %v344, %v362
      %v379 = vadd.f32 %v345, %v362
      %v380 = vadd.f32 %v346, %v362
      %v381 = vadd.f32 %v347, %v362
      %v382 = vadd.f32 %v348, %v362
      %v383 = vadd.f32 %v349, %v362
      %v384 = vadd.f32 %v350, %v362
      %v385 = vadd.f32 %v351, %v362
      %v386 = vadd.f32 %v352, %v362
      %v387 = vadd.f32 %v353, %v362
      %v388 = vadd.f32 %v354, %v362
      %v389 = vadd.f32 %v355, %v362
      %v390 = vadd.f32 %v356, %v362
      %v391 = vadd.f32 %v357, %v362
      %v392 = vadd.f32 %v358, %v362
      %v393 = vadd.f32 %v359, %v362
      %v394 = vadd.f32 %v360, %v362
      %v395 = vmax.f32 %v363, 0.0
      %v396 = vmax.f32 %v364, 0.0
      %v397 = vmax.f32 %v365, 0.0
      %v398 = vmax.f32 %v366, 0.0
      %v399 = vmax.f32 %v367, 0.0
      %v400 = vmax.f32 %v368, 0.0
      %v401 = vmax.f32 %v369, 0.0
      %v402 = vmax.f32 %v370, 0.0
      %v403 = vmax.f32 %v371, 0.0
      %v404 = vmax.f32 %v372, 0.0
      %v405 = vmax.f32 %v373, 0.0
      %v406 = vmax.f32 %v374, 0.0
      %v407 = vmax.f32 %v375, 0.0
      %v408 = vmax.f32 %v376, 0.0
      %v409 = vmax.f32 %v377, 0.0
      %v410 = vmax.f32 %v378, 0.0
      %v411 = vmax.f32 %v379, 0.0
      %v412 = vmax.f32 %v380, 0.0
      %v413 = vmax.f32 %v381, 0.0
      %v414 = vmax.f32 %v382, 0.0
      %v415 = vmax.f32 %v383, 0.0
      %v416 = vmax.f32 %v384, 0.0
      %v417 = vmax.f32 %v385, 0.0
      %v418 = vmax.f32 %v386, 0.0
      %v419 = vmax.f32 %v387, 0.0
      %v420 = vmax.f32 %v388, 0.0
      %v421 = vmax.f32 %v389, 0.0
      %v422 = vmax.f32 %v390, 0.0
      %v423 = vmax.f32 %v391, 0.0
      %v424 = vmax.f32 %v392, 0.0
      %v425 = vmax.f32 %v393, 0.0
      %v426 = vmax.f32 %v394, 0.0
      %s427 = scalar_lea.vmem [#allocation2], 24
      %428 = vst [vmem:[%s427 + $0x1] sm:$0xff] %v395
      %429 = vst [vmem:[%s427 + $0x9] sm:$0xff] %v396
      %430 = vst [vmem:[%s427 + $0x19] sm:$0xff] %v397
      %431 = vst [vmem:[%s427 + $0x21] sm:$0xff] %v398
      %432 = vst [vmem:[%s427 + $0x31] sm:$0xff] %v399
      %433 = vst [vmem:[%s427 + $0x39] sm:$0xff] %v400
      %434 = vst [vmem:[%s427 + $0x49] sm:$0xff] %v401
      %435 = vst [vmem:[%s427 + $0x51] sm:$0xff] %v402
      %436 = vst [vmem:[%s427 + $0x61] sm:$0xff] %v403
      %437 = vst [vmem:[%s427 + $0x69] sm:$0xff] %v404
      %438 = vst [vmem:[%s427 + $0x79] sm:$0xff] %v405
      %439 = vst [vmem:[%s427 + $0x81] sm:$0xff] %v406
      %440 = vst [vmem:[%s427 + $0x91] sm:$0xff] %v407
      %441 = vst [vmem:[%s427 + $0x99] sm:$0xff] %v408
      %442 = vst [vmem:[%s427 + $0xa9] sm:$0xff] %v409
      %443 = vst [vmem:[%s427 + $0xb1] sm:$0xff] %v410
      %444 = vst [vmem:[%s427 + $0xc1] sm:$0xff] %v411
      %445 = vst [vmem:[%s427 + $0xc9] sm:$0xff] %v412
      %446 = vst [vmem:[%s427 + $0xd9] sm:$0xff] %v413
      %447 = vst [vmem:[%s427 + $0xe1] sm:$0xff] %v414
      %448 = vst [vmem:[%s427 + $0xf1] sm:$0xff] %v415
      %449 = vst [vmem:[%s427 + $0xf9] sm:$0xff] %v416
      %450 = vst [vmem:[%s427 + $0x109] sm:$0xff] %v417
      %451 = vst [vmem:[%s427 + $0x111] sm:$0xff] %v418
      %452 = vst [vmem:[%s427 + $0x121] sm:$0xff] %v419
      %453 = vst [vmem:[%s427 + $0x129] sm:$0xff] %v420
      %454 = vst [vmem:[%s427 + $0x139] sm:$0xff] %v421
      %455 = vst [vmem:[%s427 + $0x141] sm:$0xff] %v422
      %456 = vst [vmem:[%s427 + $0x151] sm:$0xff] %v423
      %457 = vst [vmem:[%s427 + $0x159] sm:$0xff] %v424
      %458 = vst [vmem:[%s427 + $0x169] sm:$0xff] %v425
      %459 = vst [vmem:[%s427 + $0x171] sm:$0xff] %v426
      %v460 = vld [vmem:[#allocation2] sm:$0xff]
      %v461 = vld [vmem:[#allocation2 + $0x8] sm:$0xff]
      %v462 = vld [vmem:[#allocation2 + $0x18] sm:$0xff]
      %v463 = vld [vmem:[#allocation2 + $0x20] sm:$0xff]
      %v464 = vld [vmem:[#allocation2 + $0x30] sm:$0xff]
      %v465 = vld [vmem:[#allocation2 + $0x38] sm:$0xff]
      %v466 = vld [vmem:[#allocation2 + $0x48] sm:$0xff]
      %v467 = vld [vmem:[#allocation2 + $0x50] sm:$0xff]
      %v468 = vld [vmem:[#allocation2 + $0x60] sm:$0xff]
      %v469 = vld [vmem:[#allocation2 + $0x68] sm:$0xff]
      %v470 = vld [vmem:[#allocation2 + $0x78] sm:$0xff]
      %v471 = vld [vmem:[#allocation2 + $0x80] sm:$0xff]
      %v472 = vld [vmem:[#allocation2 + $0x90] sm:$0xff]
      %v473 = vld [vmem:[#allocation2 + $0x98] sm:$0xff]
      %v474 = vld [vmem:[#allocation2 + $0xa8] sm:$0xff]
      %v475 = vld [vmem:[#allocation2 + $0xb0] sm:$0xff]
      %v476 = vld [vmem:[#allocation2 + $0xc0] sm:$0xff]
      %v477 = vld [vmem:[#allocation2 + $0xc8] sm:$0xff]
      %v478 = vld [vmem:[#allocation2 + $0xd8] sm:$0xff]
      %v479 = vld [vmem:[#allocation2 + $0xe0] sm:$0xff]
      %v480 = vld [vmem:[#allocation2 + $0xf0] sm:$0xff]
      %v481 = vld [vmem:[#allocation2 + $0xf8] sm:$0xff]
      %v482 = vld [vmem:[#allocation2 + $0x108] sm:$0xff]
      %v483 = vld [vmem:[#allocation2 + $0x110] sm:$0xff]
      %v484 = vld [vmem:[#allocation2 + $0x120] sm:$0xff]
      %v485 = vld [vmem:[#allocation2 + $0x128] sm:$0xff]
      %v486 = vld [vmem:[#allocation2 + $0x138] sm:$0xff]
      %v487 = vld [vmem:[#allocation2 + $0x140] sm:$0xff]
      %v488 = vld [vmem:[#allocation2 + $0x150] sm:$0xff]
      %v489 = vld [vmem:[#allocation2 + $0x158] sm:$0xff]
      %v490 = vld [vmem:[#allocation2 + $0x168] sm:$0xff]
      %v491 = vld [vmem:[#allocation2 + $0x170] sm:$0xff]
      %v492 = vpack.c.bf16 %v461, %v460
      %v493 = vpack.c.bf16 %v463, %v462
      %v494 = vpack.c.bf16 %v465, %v464
      %v495 = vpack.c.bf16 %v467, %v466
      %v496 = vpack.c.bf16 %v469, %v468
      %v497 = vpack.c.bf16 %v471, %v470
      %v498 = vpack.c.bf16 %v473, %v472
      %v499 = vpack.c.bf16 %v475, %v474
      %v500 = vpack.c.bf16 %v477, %v476
      %v501 = vpack.c.bf16 %v479, %v478
      %v502 = vpack.c.bf16 %v481, %v480
      %v503 = vpack.c.bf16 %v483, %v482
      %v504 = vpack.c.bf16 %v485, %v484
      %v505 = vpack.c.bf16 %v487, %v486
      %v506 = vpack.c.bf16 %v489, %v488
      %v507 = vpack.c.bf16 %v491, %v490
      %v508 = vld [vmem:[%s2] sm:$0xf]
      %v509 = vld [vmem:[%s2 + $0x4] sm:$0xf]
      %v510 = vld [vmem:[%s2 + $0x8] sm:$0xf]
      %v511 = vld [vmem:[%s2 + $0xc] sm:$0xf]
      %v512 = vld [vmem:[%s2 + $0x10] sm:$0xf]
      %v513 = vld [vmem:[%s2 + $0x14] sm:$0xf]
      %v514 = vld [vmem:[%s2 + $0x18] sm:$0xf]
      %v515 = vld [vmem:[%s2 + $0x1c] sm:$0xf]
      %v516 = vld [vmem:[%s2 + $0x20] sm:$0xf]
      %v517 = vld [vmem:[%s2 + $0x24] sm:$0xf]
      %v518 = vld [vmem:[%s2 + $0x28] sm:$0xf]
      %v519 = vld [vmem:[%s2 + $0x2c] sm:$0xf]
      %v520 = vld [vmem:[%s2 + $0x30] sm:$0xf]
      %v521 = vld [vmem:[%s2 + $0x34] sm:$0xf]
      %v522 = vld [vmem:[%s2 + $0x38] sm:$0xf]
      %v523 = vld [vmem:[%s2 + $0x3c] sm:$0xf]
      %v524 = vld [vmem:[#allocation2 + $0x1] sm:$0xff]
      %v525 = vld [vmem:[#allocation2 + $0x9] sm:$0xff]
      %v526 = vld [vmem:[#allocation2 + $0x19] sm:$0xff]
      %v527 = vld [vmem:[#allocation2 + $0x21] sm:$0xff]
      %v528 = vld [vmem:[#allocation2 + $0x31] sm:$0xff]
      %v529 = vld [vmem:[#allocation2 + $0x39] sm:$0xff]
      %v530 = vld [vmem:[#allocation2 + $0x49] sm:$0xff]
      %v531 = vld [vmem:[#allocation2 + $0x51] sm:$0xff]
      %v532 = vld [vmem:[#allocation2 + $0x61] sm:$0xff]
      %v533 = vld [vmem:[#allocation2 + $0x69] sm:$0xff]
      %v534 = vld [vmem:[#allocation2 + $0x79] sm:$0xff]
      %v535 = vld [vmem:[#allocation2 + $0x81] sm:$0xff]
      %v536 = vld [vmem:[#allocation2 + $0x91] sm:$0xff]
      %v537 = vld [vmem:[#allocation2 + $0x99] sm:$0xff]
      %v538 = vld [vmem:[#allocation2 + $0xa9] sm:$0xff]
      %v539 = vld [vmem:[#allocation2 + $0xb1] sm:$0xff]
      %v540 = vld [vmem:[#allocation2 + $0xc1] sm:$0xff]
      %v541 = vld [vmem:[#allocation2 + $0xc9] sm:$0xff]
      %v542 = vld [vmem:[#allocation2 + $0xd9] sm:$0xff]
      %v543 = vld [vmem:[#allocation2 + $0xe1] sm:$0xff]
      %v544 = vld [vmem:[#allocation2 + $0xf1] sm:$0xff]
      %v545 = vld [vmem:[#allocation2 + $0xf9] sm:$0xff]
      %v546 = vld [vmem:[#allocation2 + $0x109] sm:$0xff]
      %v547 = vld [vmem:[#allocation2 + $0x111] sm:$0xff]
      %v548 = vld [vmem:[#allocation2 + $0x121] sm:$0xff]
      %v549 = vld [vmem:[#allocation2 + $0x129] sm:$0xff]
      %v550 = vld [vmem:[#allocation2 + $0x139] sm:$0xff]
      %v551 = vld [vmem:[#allocation2 + $0x141] sm:$0xff]
      %v552 = vld [vmem:[#allocation2 + $0x151] sm:$0xff]
      %v553 = vld [vmem:[#allocation2 + $0x159] sm:$0xff]
      %v554 = vld [vmem:[#allocation2 + $0x169] sm:$0xff]
      %v555 = vld [vmem:[#allocation2 + $0x171] sm:$0xff]
      %v556 = vpack.c.bf16 %v525, %v524
      %v557 = vpack.c.bf16 %v527, %v526
      %v558 = vpack.c.bf16 %v529, %v528
      %v559 = vpack.c.bf16 %v531, %v530
      %v560 = vpack.c.bf16 %v533, %v532
      %v561 = vpack.c.bf16 %v535, %v534
      %v562 = vpack.c.bf16 %v537, %v536
      %v563 = vpack.c.bf16 %v539, %v538
      %v564 = vpack.c.bf16 %v541, %v540
      %v565 = vpack.c.bf16 %v543, %v542
      %v566 = vpack.c.bf16 %v545, %v544
      %v567 = vpack.c.bf16 %v547, %v546
      %v568 = vpack.c.bf16 %v549, %v548
      %v569 = vpack.c.bf16 %v551, %v550
      %v570 = vpack.c.bf16 %v553, %v552
      %v571 = vpack.c.bf16 %v555, %v554
      %s572 = scalar_lea.vmem %s2, 64
      %v573 = vld [vmem:[%s572] sm:$0xf]
      %v574 = vld [vmem:[%s572 + $0x4] sm:$0xf]
      %v575 = vld [vmem:[%s572 + $0x8] sm:$0xf]
      %v576 = vld [vmem:[%s572 + $0xc] sm:$0xf]
      %v577 = vld [vmem:[%s572 + $0x10] sm:$0xf]
      %v578 = vld [vmem:[%s572 + $0x14] sm:$0xf]
      %v579 = vld [vmem:[%s572 + $0x18] sm:$0xf]
      %v580 = vld [vmem:[%s572 + $0x1c] sm:$0xf]
      %v581 = vld [vmem:[%s572 + $0x20] sm:$0xf]
      %v582 = vld [vmem:[%s572 + $0x24] sm:$0xf]
      %v583 = vld [vmem:[%s572 + $0x28] sm:$0xf]
      %v584 = vld [vmem:[%s572 + $0x2c] sm:$0xf]
      %v585 = vld [vmem:[%s572 + $0x30] sm:$0xf]
      %v586 = vld [vmem:[%s572 + $0x34] sm:$0xf]
      %v587 = vld [vmem:[%s572 + $0x38] sm:$0xf]
      %v588 = vld [vmem:[%s572 + $0x3c] sm:$0xf]
      %v605 = vunpack.c.l.b16 %v573
      %v606 = vunpack.c.l.b16 %v574
      %v607 = vunpack.c.l.b16 %v575
      %v608 = vunpack.c.l.b16 %v576
      %v609 = vunpack.c.l.b16 %v577
      %v610 = vunpack.c.l.b16 %v578
      %v611 = vunpack.c.l.b16 %v579
      %v612 = vunpack.c.l.b16 %v580
      %v613 = vunpack.c.l.b16 %v581
      %v614 = vunpack.c.l.b16 %v582
      %v615 = vunpack.c.l.b16 %v583
      %v616 = vunpack.c.l.b16 %v584
      %v617 = vunpack.c.l.b16 %v585
      %v618 = vunpack.c.l.b16 %v586
      %v619 = vunpack.c.l.b16 %v587
      %v620 = vunpack.c.l.b16 %v588
      %v621 = vpack.c.b16 %v606, %v605
      %v622 = vpack.c.b16 %v608, %v607
      %v623 = vpack.c.b16 %v610, %v609
      %v624 = vpack.c.b16 %v612, %v611
      %v625 = vpack.c.b16 %v614, %v613
      %v626 = vpack.c.b16 %v616, %v615
      %v627 = vpack.c.b16 %v618, %v617
      %v628 = vpack.c.b16 %v620, %v619
      %637 = vmatpush.bf16.msra.mxu0 %v628
      %638 = vmatpush.bf16.msra.mxu0 %v627
      %639 = vmatpush.bf16.msra.mxu0 %v626
      %640 = vmatpush.bf16.msra.mxu0 %v625
      %641 = vmatpush.bf16.msra.mxu0 %v624
      %642 = vmatpush.bf16.msra.mxu0 %v623
      %643 = vmatpush.bf16.msra.mxu0 %v622
      %644 = vmatpush.bf16.msra.mxu0 %v621
      %645 = vmatmul.bf16.gmra.mxu0 %v556
      %v646 = vpop.f32.mrf.mxu0
      %v647 = vadd.f32 0.0, %v646
      %v648 = vpop.f32.mrf.mxu0
      %v649 = vadd.f32 0.0, %v648
      %650 = vmatmul.bf16.gmra.mxu0 %v557
      %v651 = vpop.f32.mrf.mxu0
      %v652 = vadd.f32 0.0, %v651
      %v653 = vpop.f32.mrf.mxu0
      %v654 = vadd.f32 0.0, %v653
      %655 = vmatmul.bf16.gmra.mxu0 %v558
      %v656 = vpop.f32.mrf.mxu0
      %v657 = vadd.f32 0.0, %v656
      %v658 = vpop.f32.mrf.mxu0
      %v659 = vadd.f32 0.0, %v658
      %660 = vmatmul.bf16.gmra.mxu0 %v559
      %v661 = vpop.f32.mrf.mxu0
      %v662 = vadd.f32 0.0, %v661
      %v663 = vpop.f32.mrf.mxu0
      %v664 = vadd.f32 0.0, %v663
      %665 = vmatmul.bf16.gmra.mxu0 %v560
      %v666 = vpop.f32.mrf.mxu0
      %v667 = vadd.f32 0.0, %v666
      %v668 = vpop.f32.mrf.mxu0
      %v669 = vadd.f32 0.0, %v668
      %670 = vmatmul.bf16.gmra.mxu0 %v561
      %v671 = vpop.f32.mrf.mxu0
      %v672 = vadd.f32 0.0, %v671
      %v673 = vpop.f32.mrf.mxu0
      %v674 = vadd.f32 0.0, %v673
      %675 = vmatmul.bf16.gmra.mxu0 %v562
      %v676 = vpop.f32.mrf.mxu0
      %v677 = vadd.f32 0.0, %v676
      %v678 = vpop.f32.mrf.mxu0
      %v679 = vadd.f32 0.0, %v678
      %680 = vmatmul.bf16.gmra.mxu0 %v563
      %v681 = vpop.f32.mrf.mxu0
      %v682 = vadd.f32 0.0, %v681
      %v683 = vpop.f32.mrf.mxu0
      %v684 = vadd.f32 0.0, %v683
      %685 = vmatmul.bf16.gmra.mxu0 %v564
      %v686 = vpop.f32.mrf.mxu0
      %v687 = vadd.f32 0.0, %v686
      %v688 = vpop.f32.mrf.mxu0
      %v689 = vadd.f32 0.0, %v688
      %690 = vmatmul.bf16.gmra.mxu0 %v565
      %v691 = vpop.f32.mrf.mxu0
      %v692 = vadd.f32 0.0, %v691
      %v693 = vpop.f32.mrf.mxu0
      %v694 = vadd.f32 0.0, %v693
      %695 = vmatmul.bf16.gmra.mxu0 %v566
      %v696 = vpop.f32.mrf.mxu0
      %v697 = vadd.f32 0.0, %v696
      %v698 = vpop.f32.mrf.mxu0
      %v699 = vadd.f32 0.0, %v698
      %700 = vmatmul.bf16.gmra.mxu0 %v567
      %v701 = vpop.f32.mrf.mxu0
      %v702 = vadd.f32 0.0, %v701
      %v703 = vpop.f32.mrf.mxu0
      %v704 = vadd.f32 0.0, %v703
      %705 = vmatmul.bf16.gmra.mxu0 %v568
      %v706 = vpop.f32.mrf.mxu0
      %v707 = vadd.f32 0.0, %v706
      %v708 = vpop.f32.mrf.mxu0
      %v709 = vadd.f32 0.0, %v708
      %710 = vmatmul.bf16.gmra.mxu0 %v569
      %v711 = vpop.f32.mrf.mxu0
      %v712 = vadd.f32 0.0, %v711
      %v713 = vpop.f32.mrf.mxu0
      %v714 = vadd.f32 0.0, %v713
      %715 = vmatmul.bf16.gmra.mxu0 %v570
      %v716 = vpop.f32.mrf.mxu0
      %v717 = vadd.f32 0.0, %v716
      %v718 = vpop.f32.mrf.mxu0
      %v719 = vadd.f32 0.0, %v718
      %720 = vmatmul.bf16.gmra.mxu0 %v571
      %v721 = vpop.f32.mrf.mxu0
      %v722 = vadd.f32 0.0, %v721
      %v723 = vpop.f32.mrf.mxu0
      %v724 = vadd.f32 0.0, %v723
      %725 = vdwg.mxu0
      %v742 = vunpack.c.l.b16 %v508
      %v743 = vunpack.c.l.b16 %v509
      %v744 = vunpack.c.l.b16 %v510
      %v745 = vunpack.c.l.b16 %v511
      %v746 = vunpack.c.l.b16 %v512
      %v747 = vunpack.c.l.b16 %v513
      %v748 = vunpack.c.l.b16 %v514
      %v749 = vunpack.c.l.b16 %v515
      %v750 = vunpack.c.l.b16 %v516
      %v751 = vunpack.c.l.b16 %v517
      %v752 = vunpack.c.l.b16 %v518
      %v753 = vunpack.c.l.b16 %v519
      %v754 = vunpack.c.l.b16 %v520
      %v755 = vunpack.c.l.b16 %v521
      %v756 = vunpack.c.l.b16 %v522
      %v757 = vunpack.c.l.b16 %v523
      %v758 = vpack.c.b16 %v743, %v742
      %v759 = vpack.c.b16 %v745, %v744
      %v760 = vpack.c.b16 %v747, %v746
      %v761 = vpack.c.b16 %v749, %v748
      %v762 = vpack.c.b16 %v751, %v750
      %v763 = vpack.c.b16 %v753, %v752
      %v764 = vpack.c.b16 %v755, %v754
      %v765 = vpack.c.b16 %v757, %v756
      %774 = vmatpush.bf16.msra.mxu0 %v765
      %775 = vmatpush.bf16.msra.mxu0 %v764
      %776 = vmatpush.bf16.msra.mxu0 %v763
      %777 = vmatpush.bf16.msra.mxu0 %v762
      %778 = vmatpush.bf16.msra.mxu0 %v761
      %779 = vmatpush.bf16.msra.mxu0 %v760
      %780 = vmatpush.bf16.msra.mxu0 %v759
      %781 = vmatpush.bf16.msra.mxu0 %v758
      %782 = vmatmul.bf16.gmra.mxu0 %v492
      %v783 = vpop.f32.mrf.mxu0
      %v784 = vadd.f32 %v647, %v783
      %v785 = vpop.f32.mrf.mxu0
      %v786 = vadd.f32 %v649, %v785
      %787 = vmatmul.bf16.gmra.mxu0 %v493
      %v788 = vpop.f32.mrf.mxu0
      %v789 = vadd.f32 %v652, %v788
      %v790 = vpop.f32.mrf.mxu0
      %v791 = vadd.f32 %v654, %v790
      %792 = vmatmul.bf16.gmra.mxu0 %v494
      %v793 = vpop.f32.mrf.mxu0
      %v794 = vadd.f32 %v657, %v793
      %v795 = vpop.f32.mrf.mxu0
      %v796 = vadd.f32 %v659, %v795
      %797 = vmatmul.bf16.gmra.mxu0 %v495
      %v798 = vpop.f32.mrf.mxu0
      %v799 = vadd.f32 %v662, %v798
      %v800 = vpop.f32.mrf.mxu0
      %v801 = vadd.f32 %v664, %v800
      %802 = vmatmul.bf16.gmra.mxu0 %v496
      %v803 = vpop.f32.mrf.mxu0
      %v804 = vadd.f32 %v667, %v803
      %v805 = vpop.f32.mrf.mxu0
      %v806 = vadd.f32 %v669, %v805
      %807 = vmatmul.bf16.gmra.mxu0 %v497
      %v808 = vpop.f32.mrf.mxu0
      %v809 = vadd.f32 %v672, %v808
      %v810 = vpop.f32.mrf.mxu0
      %v811 = vadd.f32 %v674, %v810
      %812 = vmatmul.bf16.gmra.mxu0 %v498
      %v813 = vpop.f32.mrf.mxu0
      %v814 = vadd.f32 %v677, %v813
      %v815 = vpop.f32.mrf.mxu0
      %v816 = vadd.f32 %v679, %v815
      %817 = vmatmul.bf16.gmra.mxu0 %v499
      %v818 = vpop.f32.mrf.mxu0
      %v819 = vadd.f32 %v682, %v818
      %v820 = vpop.f32.mrf.mxu0
      %v821 = vadd.f32 %v684, %v820
      %822 = vmatmul.bf16.gmra.mxu0 %v500
      %v823 = vpop.f32.mrf.mxu0
      %v824 = vadd.f32 %v687, %v823
      %v825 = vpop.f32.mrf.mxu0
      %v826 = vadd.f32 %v689, %v825
      %827 = vmatmul.bf16.gmra.mxu0 %v501
      %v828 = vpop.f32.mrf.mxu0
      %v829 = vadd.f32 %v692, %v828
      %v830 = vpop.f32.mrf.mxu0
      %v831 = vadd.f32 %v694, %v830
      %832 = vmatmul.bf16.gmra.mxu0 %v502
      %v833 = vpop.f32.mrf.mxu0
      %v834 = vadd.f32 %v697, %v833
      %v835 = vpop.f32.mrf.mxu0
      %v836 = vadd.f32 %v699, %v835
      %837 = vmatmul.bf16.gmra.mxu0 %v503
      %v838 = vpop.f32.mrf.mxu0
      %v839 = vadd.f32 %v702, %v838
      %v840 = vpop.f32.mrf.mxu0
      %v841 = vadd.f32 %v704, %v840
      %842 = vmatmul.bf16.gmra.mxu0 %v504
      %v843 = vpop.f32.mrf.mxu0
      %v844 = vadd.f32 %v707, %v843
      %v845 = vpop.f32.mrf.mxu0
      %v846 = vadd.f32 %v709, %v845
      %847 = vmatmul.bf16.gmra.mxu0 %v505
      %v848 = vpop.f32.mrf.mxu0
      %v849 = vadd.f32 %v712, %v848
      %v850 = vpop.f32.mrf.mxu0
      %v851 = vadd.f32 %v714, %v850
      %852 = vmatmul.bf16.gmra.mxu0 %v506
      %v853 = vpop.f32.mrf.mxu0
      %v854 = vadd.f32 %v717, %v853
      %v855 = vpop.f32.mrf.mxu0
      %v856 = vadd.f32 %v719, %v855
      %857 = vmatmul.bf16.gmra.mxu0 %v507
      %v858 = vpop.f32.mrf.mxu0
      %v859 = vadd.f32 %v722, %v858
      %v860 = vpop.f32.mrf.mxu0
      %v861 = vadd.f32 %v724, %v860
      %862 = vdwg.mxu0
      %v863 = vld [vmem:[#allocation2 + $0x2] sm:$0xff]
      %v864 = vld [vmem:[#allocation2 + $0xa] sm:$0xff]
      %v865 = vld [vmem:[#allocation2 + $0x1a] sm:$0xff]
      %v866 = vld [vmem:[#allocation2 + $0x22] sm:$0xff]
      %v867 = vld [vmem:[#allocation2 + $0x32] sm:$0xff]
      %v868 = vld [vmem:[#allocation2 + $0x3a] sm:$0xff]
      %v869 = vld [vmem:[#allocation2 + $0x4a] sm:$0xff]
      %v870 = vld [vmem:[#allocation2 + $0x52] sm:$0xff]
      %v871 = vld [vmem:[#allocation2 + $0x62] sm:$0xff]
      %v872 = vld [vmem:[#allocation2 + $0x6a] sm:$0xff]
      %v873 = vld [vmem:[#allocation2 + $0x7a] sm:$0xff]
      %v874 = vld [vmem:[#allocation2 + $0x82] sm:$0xff]
      %v875 = vld [vmem:[#allocation2 + $0x92] sm:$0xff]
      %v876 = vld [vmem:[#allocation2 + $0x9a] sm:$0xff]
      %v877 = vld [vmem:[#allocation2 + $0xaa] sm:$0xff]
      %v878 = vld [vmem:[#allocation2 + $0xb2] sm:$0xff]
      %v879 = vld [vmem:[#allocation2 + $0xc2] sm:$0xff]
      %v880 = vld [vmem:[#allocation2 + $0xca] sm:$0xff]
      %v881 = vld [vmem:[#allocation2 + $0xda] sm:$0xff]
      %v882 = vld [vmem:[#allocation2 + $0xe2] sm:$0xff]
      %v883 = vld [vmem:[#allocation2 + $0xf2] sm:$0xff]
      %v884 = vld [vmem:[#allocation2 + $0xfa] sm:$0xff]
      %v885 = vld [vmem:[#allocation2 + $0x10a] sm:$0xff]
      %v886 = vld [vmem:[#allocation2 + $0x112] sm:$0xff]
      %v887 = vld [vmem:[#allocation2 + $0x122] sm:$0xff]
      %v888 = vld [vmem:[#allocation2 + $0x12a] sm:$0xff]
      %v889 = vld [vmem:[#allocation2 + $0x13a] sm:$0xff]
      %v890 = vld [vmem:[#allocation2 + $0x142] sm:$0xff]
      %v891 = vld [vmem:[#allocation2 + $0x152] sm:$0xff]
      %v892 = vld [vmem:[#allocation2 + $0x15a] sm:$0xff]
      %v893 = vld [vmem:[#allocation2 + $0x16a] sm:$0xff]
      %v894 = vld [vmem:[#allocation2 + $0x172] sm:$0xff]
      %v895 = vpack.c.bf16 %v864, %v863
      %v896 = vpack.c.bf16 %v866, %v865
      %v897 = vpack.c.bf16 %v868, %v867
      %v898 = vpack.c.bf16 %v870, %v869
      %v899 = vpack.c.bf16 %v872, %v871
      %v900 = vpack.c.bf16 %v874, %v873
      %v901 = vpack.c.bf16 %v876, %v875
      %v902 = vpack.c.bf16 %v878, %v877
      %v903 = vpack.c.bf16 %v880, %v879
      %v904 = vpack.c.bf16 %v882, %v881
      %v905 = vpack.c.bf16 %v884, %v883
      %v906 = vpack.c.bf16 %v886, %v885
      %v907 = vpack.c.bf16 %v888, %v887
      %v908 = vpack.c.bf16 %v890, %v889
      %v909 = vpack.c.bf16 %v892, %v891
      %v910 = vpack.c.bf16 %v894, %v893
      %s911 = scalar_lea.vmem %s2, 128
      %v912 = vld [vmem:[%s911] sm:$0xf]
      %v913 = vld [vmem:[%s911 + $0x4] sm:$0xf]
      %v914 = vld [vmem:[%s911 + $0x8] sm:$0xf]
      %v915 = vld [vmem:[%s911 + $0xc] sm:$0xf]
      %v916 = vld [vmem:[%s911 + $0x10] sm:$0xf]
      %v917 = vld [vmem:[%s911 + $0x14] sm:$0xf]
      %v918 = vld [vmem:[%s911 + $0x18] sm:$0xf]
      %v919 = vld [vmem:[%s911 + $0x1c] sm:$0xf]
      %v920 = vld [vmem:[%s911 + $0x20] sm:$0xf]
      %v921 = vld [vmem:[%s911 + $0x24] sm:$0xf]
      %v922 = vld [vmem:[%s911 + $0x28] sm:$0xf]
      %v923 = vld [vmem:[%s911 + $0x2c] sm:$0xf]
      %v924 = vld [vmem:[%s911 + $0x30] sm:$0xf]
      %v925 = vld [vmem:[%s911 + $0x34] sm:$0xf]
      %v926 = vld [vmem:[%s911 + $0x38] sm:$0xf]
      %v927 = vld [vmem:[%s911 + $0x3c] sm:$0xf]
      %v944 = vunpack.c.l.b16 %v912
      %v945 = vunpack.c.l.b16 %v913
      %v946 = vunpack.c.l.b16 %v914
      %v947 = vunpack.c.l.b16 %v915
      %v948 = vunpack.c.l.b16 %v916
      %v949 = vunpack.c.l.b16 %v917
      %v950 = vunpack.c.l.b16 %v918
      %v951 = vunpack.c.l.b16 %v919
      %v952 = vunpack.c.l.b16 %v920
      %v953 = vunpack.c.l.b16 %v921
      %v954 = vunpack.c.l.b16 %v922
      %v955 = vunpack.c.l.b16 %v923
      %v956 = vunpack.c.l.b16 %v924
      %v957 = vunpack.c.l.b16 %v925
      %v958 = vunpack.c.l.b16 %v926
      %v959 = vunpack.c.l.b16 %v927
      %v960 = vpack.c.b16 %v945, %v944
      %v961 = vpack.c.b16 %v947, %v946
      %v962 = vpack.c.b16 %v949, %v948
      %v963 = vpack.c.b16 %v951, %v950
      %v964 = vpack.c.b16 %v953, %v952
      %v965 = vpack.c.b16 %v955, %v954
      %v966 = vpack.c.b16 %v957, %v956
      %v967 = vpack.c.b16 %v959, %v958
      %976 = vmatpush.bf16.msra.mxu0 %v967
      %977 = vmatpush.bf16.msra.mxu0 %v966
      %978 = vmatpush.bf16.msra.mxu0 %v965
      %979 = vmatpush.bf16.msra.mxu0 %v964
      %980 = vmatpush.bf16.msra.mxu0 %v963
      %981 = vmatpush.bf16.msra.mxu0 %v962
      %982 = vmatpush.bf16.msra.mxu0 %v961
      %983 = vmatpush.bf16.msra.mxu0 %v960
      %984 = vmatmul.bf16.gmra.mxu0 %v895
      %v985 = vpop.f32.mrf.mxu0
      %v986 = vadd.f32 0.0, %v985
      %v987 = vpop.f32.mrf.mxu0
      %v988 = vadd.f32 0.0, %v987
      %989 = vmatmul.bf16.gmra.mxu0 %v896
      %v990 = vpop.f32.mrf.mxu0
      %v991 = vadd.f32 0.0, %v990
      %v992 = vpop.f32.mrf.mxu0
      %v993 = vadd.f32 0.0, %v992
      %994 = vmatmul.bf16.gmra.mxu0 %v897
      %v995 = vpop.f32.mrf.mxu0
      %v996 = vadd.f32 0.0, %v995
      %v997 = vpop.f32.mrf.mxu0
      %v998 = vadd.f32 0.0, %v997
      %999 = vmatmul.bf16.gmra.mxu0 %v898
      %v1000 = vpop.f32.mrf.mxu0
      %v1001 = vadd.f32 0.0, %v1000
      %v1002 = vpop.f32.mrf.mxu0
      %v1003 = vadd.f32 0.0, %v1002
      %1004 = vmatmul.bf16.gmra.mxu0 %v899
      %v1005 = vpop.f32.mrf.mxu0
      %v1006 = vadd.f32 0.0, %v1005
      %v1007 = vpop.f32.mrf.mxu0
      %v1008 = vadd.f32 0.0, %v1007
      %1009 = vmatmul.bf16.gmra.mxu0 %v900
      %v1010 = vpop.f32.mrf.mxu0
      %v1011 = vadd.f32 0.0, %v1010
      %v1012 = vpop.f32.mrf.mxu0
      %v1013 = vadd.f32 0.0, %v1012
      %1014 = vmatmul.bf16.gmra.mxu0 %v901
      %v1015 = vpop.f32.mrf.mxu0
      %v1016 = vadd.f32 0.0, %v1015
      %v1017 = vpop.f32.mrf.mxu0
      %v1018 = vadd.f32 0.0, %v1017
      %1019 = vmatmul.bf16.gmra.mxu0 %v902
      %v1020 = vpop.f32.mrf.mxu0
      %v1021 = vadd.f32 0.0, %v1020
      %v1022 = vpop.f32.mrf.mxu0
      %v1023 = vadd.f32 0.0, %v1022
      %1024 = vmatmul.bf16.gmra.mxu0 %v903
      %v1025 = vpop.f32.mrf.mxu0
      %v1026 = vadd.f32 0.0, %v1025
      %v1027 = vpop.f32.mrf.mxu0
      %v1028 = vadd.f32 0.0, %v1027
      %1029 = vmatmul.bf16.gmra.mxu0 %v904
      %v1030 = vpop.f32.mrf.mxu0
      %v1031 = vadd.f32 0.0, %v1030
      %v1032 = vpop.f32.mrf.mxu0
      %v1033 = vadd.f32 0.0, %v1032
      %1034 = vmatmul.bf16.gmra.mxu0 %v905
      %v1035 = vpop.f32.mrf.mxu0
      %v1036 = vadd.f32 0.0, %v1035
      %v1037 = vpop.f32.mrf.mxu0
      %v1038 = vadd.f32 0.0, %v1037
      %1039 = vmatmul.bf16.gmra.mxu0 %v906
      %v1040 = vpop.f32.mrf.mxu0
      %v1041 = vadd.f32 0.0, %v1040
      %v1042 = vpop.f32.mrf.mxu0
      %v1043 = vadd.f32 0.0, %v1042
      %1044 = vmatmul.bf16.gmra.mxu0 %v907
      %v1045 = vpop.f32.mrf.mxu0
      %v1046 = vadd.f32 0.0, %v1045
      %v1047 = vpop.f32.mrf.mxu0
      %v1048 = vadd.f32 0.0, %v1047
      %1049 = vmatmul.bf16.gmra.mxu0 %v908
      %v1050 = vpop.f32.mrf.mxu0
      %v1051 = vadd.f32 0.0, %v1050
      %v1052 = vpop.f32.mrf.mxu0
      %v1053 = vadd.f32 0.0, %v1052
      %1054 = vmatmul.bf16.gmra.mxu0 %v909
      %v1055 = vpop.f32.mrf.mxu0
      %v1056 = vadd.f32 0.0, %v1055
      %v1057 = vpop.f32.mrf.mxu0
      %v1058 = vadd.f32 0.0, %v1057
      %1059 = vmatmul.bf16.gmra.mxu0 %v910
      %v1060 = vpop.f32.mrf.mxu0
      %v1061 = vadd.f32 0.0, %v1060
      %v1062 = vpop.f32.mrf.mxu0
      %v1063 = vadd.f32 0.0, %v1062
      %1064 = vdwg.mxu0
      %v1065 = vadd.f32 %v784, %v986
      %v1066 = vadd.f32 %v786, %v988
      %v1067 = vadd.f32 %v789, %v991
      %v1068 = vadd.f32 %v791, %v993
      %v1069 = vadd.f32 %v794, %v996
      %v1070 = vadd.f32 %v796, %v998
      %v1071 = vadd.f32 %v799, %v1001
      %v1072 = vadd.f32 %v801, %v1003
      %v1073 = vadd.f32 %v804, %v1006
      %v1074 = vadd.f32 %v806, %v1008
      %v1075 = vadd.f32 %v809, %v1011
      %v1076 = vadd.f32 %v811, %v1013
      %v1077 = vadd.f32 %v814, %v1016
      %v1078 = vadd.f32 %v816, %v1018
      %v1079 = vadd.f32 %v819, %v1021
      %v1080 = vadd.f32 %v821, %v1023
      %v1081 = vadd.f32 %v824, %v1026
      %v1082 = vadd.f32 %v826, %v1028
      %v1083 = vadd.f32 %v829, %v1031
      %v1084 = vadd.f32 %v831, %v1033
      %v1085 = vadd.f32 %v834, %v1036
      %v1086 = vadd.f32 %v836, %v1038
      %v1087 = vadd.f32 %v839, %v1041
      %v1088 = vadd.f32 %v841, %v1043
      %v1089 = vadd.f32 %v844, %v1046
      %v1090 = vadd.f32 %v846, %v1048
      %v1091 = vadd.f32 %v849, %v1051
      %v1092 = vadd.f32 %v851, %v1053
      %v1093 = vadd.f32 %v854, %v1056
      %v1094 = vadd.f32 %v856, %v1058
      %v1095 = vadd.f32 %v859, %v1061
      %v1096 = vadd.f32 %v861, %v1063
      %v1097 = vld [vmem:[%s427] sm:$0xff]
      %v1098 = vld [vmem:[%s427 + $0x8] sm:$0xff]
      %v1099 = vld [vmem:[%s427 + $0x18] sm:$0xff]
      %v1100 = vld [vmem:[%s427 + $0x20] sm:$0xff]
      %v1101 = vld [vmem:[%s427 + $0x30] sm:$0xff]
      %v1102 = vld [vmem:[%s427 + $0x38] sm:$0xff]
      %v1103 = vld [vmem:[%s427 + $0x48] sm:$0xff]
      %v1104 = vld [vmem:[%s427 + $0x50] sm:$0xff]
      %v1105 = vld [vmem:[%s427 + $0x60] sm:$0xff]
      %v1106 = vld [vmem:[%s427 + $0x68] sm:$0xff]
      %v1107 = vld [vmem:[%s427 + $0x78] sm:$0xff]
      %v1108 = vld [vmem:[%s427 + $0x80] sm:$0xff]
      %v1109 = vld [vmem:[%s427 + $0x90] sm:$0xff]
      %v1110 = vld [vmem:[%s427 + $0x98] sm:$0xff]
      %v1111 = vld [vmem:[%s427 + $0xa8] sm:$0xff]
      %v1112 = vld [vmem:[%s427 + $0xb0] sm:$0xff]
      %v1113 = vld [vmem:[%s427 + $0xc0] sm:$0xff]
      %v1114 = vld [vmem:[%s427 + $0xc8] sm:$0xff]
      %v1115 = vld [vmem:[%s427 + $0xd8] sm:$0xff]
      %v1116 = vld [vmem:[%s427 + $0xe0] sm:$0xff]
      %v1117 = vld [vmem:[%s427 + $0xf0] sm:$0xff]
      %v1118 = vld [vmem:[%s427 + $0xf8] sm:$0xff]
      %v1119 = vld [vmem:[%s427 + $0x108] sm:$0xff]
      %v1120 = vld [vmem:[%s427 + $0x110] sm:$0xff]
      %v1121 = vld [vmem:[%s427 + $0x120] sm:$0xff]
      %v1122 = vld [vmem:[%s427 + $0x128] sm:$0xff]
      %v1123 = vld [vmem:[%s427 + $0x138] sm:$0xff]
      %v1124 = vld [vmem:[%s427 + $0x140] sm:$0xff]
      %v1125 = vld [vmem:[%s427 + $0x150] sm:$0xff]
      %v1126 = vld [vmem:[%s427 + $0x158] sm:$0xff]
      %v1127 = vld [vmem:[%s427 + $0x168] sm:$0xff]
      %v1128 = vld [vmem:[%s427 + $0x170] sm:$0xff]
      %v1129 = vpack.c.bf16 %v1098, %v1097
      %v1130 = vpack.c.bf16 %v1100, %v1099
      %v1131 = vpack.c.bf16 %v1102, %v1101
      %v1132 = vpack.c.bf16 %v1104, %v1103
      %v1133 = vpack.c.bf16 %v1106, %v1105
      %v1134 = vpack.c.bf16 %v1108, %v1107
      %v1135 = vpack.c.bf16 %v1110, %v1109
      %v1136 = vpack.c.bf16 %v1112, %v1111
      %v1137 = vpack.c.bf16 %v1114, %v1113
      %v1138 = vpack.c.bf16 %v1116, %v1115
      %v1139 = vpack.c.bf16 %v1118, %v1117
      %v1140 = vpack.c.bf16 %v1120, %v1119
      %v1141 = vpack.c.bf16 %v1122, %v1121
      %v1142 = vpack.c.bf16 %v1124, %v1123
      %v1143 = vpack.c.bf16 %v1126, %v1125
      %v1144 = vpack.c.bf16 %v1128, %v1127
      %s1145 = scalar_lea.vmem %s2, 192
      %v1146 = vld [vmem:[%s1145] sm:$0xf]
      %v1147 = vld [vmem:[%s1145 + $0x4] sm:$0xf]
      %v1148 = vld [vmem:[%s1145 + $0x8] sm:$0xf]
      %v1149 = vld [vmem:[%s1145 + $0xc] sm:$0xf]
      %v1150 = vld [vmem:[%s1145 + $0x10] sm:$0xf]
      %v1151 = vld [vmem:[%s1145 + $0x14] sm:$0xf]
      %v1152 = vld [vmem:[%s1145 + $0x18] sm:$0xf]
      %v1153 = vld [vmem:[%s1145 + $0x1c] sm:$0xf]
      %v1154 = vld [vmem:[%s1145 + $0x20] sm:$0xf]
      %v1155 = vld [vmem:[%s1145 + $0x24] sm:$0xf]
      %v1156 = vld [vmem:[%s1145 + $0x28] sm:$0xf]
      %v1157 = vld [vmem:[%s1145 + $0x2c] sm:$0xf]
      %v1158 = vld [vmem:[%s1145 + $0x30] sm:$0xf]
      %v1159 = vld [vmem:[%s1145 + $0x34] sm:$0xf]
      %v1160 = vld [vmem:[%s1145 + $0x38] sm:$0xf]
      %v1161 = vld [vmem:[%s1145 + $0x3c] sm:$0xf]
      %v1178 = vunpack.c.l.b16 %v1146
      %v1179 = vunpack.c.l.b16 %v1147
      %v1180 = vunpack.c.l.b16 %v1148
      %v1181 = vunpack.c.l.b16 %v1149
      %v1182 = vunpack.c.l.b16 %v1150
      %v1183 = vunpack.c.l.b16 %v1151
      %v1184 = vunpack.c.l.b16 %v1152
      %v1185 = vunpack.c.l.b16 %v1153
      %v1186 = vunpack.c.l.b16 %v1154
      %v1187 = vunpack.c.l.b16 %v1155
      %v1188 = vunpack.c.l.b16 %v1156
      %v1189 = vunpack.c.l.b16 %v1157
      %v1190 = vunpack.c.l.b16 %v1158
      %v1191 = vunpack.c.l.b16 %v1159
      %v1192 = vunpack.c.l.b16 %v1160
      %v1193 = vunpack.c.l.b16 %v1161
      %v1194 = vpack.c.b16 %v1179, %v1178
      %v1195 = vpack.c.b16 %v1181, %v1180
      %v1196 = vpack.c.b16 %v1183, %v1182
      %v1197 = vpack.c.b16 %v1185, %v1184
      %v1198 = vpack.c.b16 %v1187, %v1186
      %v1199 = vpack.c.b16 %v1189, %v1188
      %v1200 = vpack.c.b16 %v1191, %v1190
      %v1201 = vpack.c.b16 %v1193, %v1192
      %1210 = vmatpush.bf16.msra.mxu0 %v1201
      %1211 = vmatpush.bf16.msra.mxu0 %v1200
      %1212 = vmatpush.bf16.msra.mxu0 %v1199
      %1213 = vmatpush.bf16.msra.mxu0 %v1198
      %1214 = vmatpush.bf16.msra.mxu0 %v1197
      %1215 = vmatpush.bf16.msra.mxu0 %v1196
      %1216 = vmatpush.bf16.msra.mxu0 %v1195
      %1217 = vmatpush.bf16.msra.mxu0 %v1194
      %1218 = vmatmul.bf16.gmra.mxu0 %v1129
      %v1219 = vpop.f32.mrf.mxu0
      %v1220 = vadd.f32 0.0, %v1219
      %v1221 = vpop.f32.mrf.mxu0
      %v1222 = vadd.f32 0.0, %v1221
      %1223 = vmatmul.bf16.gmra.mxu0 %v1130
      %v1224 = vpop.f32.mrf.mxu0
      %v1225 = vadd.f32 0.0, %v1224
      %v1226 = vpop.f32.mrf.mxu0
      %v1227 = vadd.f32 0.0, %v1226
      %1228 = vmatmul.bf16.gmra.mxu0 %v1131
      %v1229 = vpop.f32.mrf.mxu0
      %v1230 = vadd.f32 0.0, %v1229
      %v1231 = vpop.f32.mrf.mxu0
      %v1232 = vadd.f32 0.0, %v1231
      %1233 = vmatmul.bf16.gmra.mxu0 %v1132
      %v1234 = vpop.f32.mrf.mxu0
      %v1235 = vadd.f32 0.0, %v1234
      %v1236 = vpop.f32.mrf.mxu0
      %v1237 = vadd.f32 0.0, %v1236
      %1238 = vmatmul.bf16.gmra.mxu0 %v1133
      %v1239 = vpop.f32.mrf.mxu0
      %v1240 = vadd.f32 0.0, %v1239
      %v1241 = vpop.f32.mrf.mxu0
      %v1242 = vadd.f32 0.0, %v1241
      %1243 = vmatmul.bf16.gmra.mxu0 %v1134
      %v1244 = vpop.f32.mrf.mxu0
      %v1245 = vadd.f32 0.0, %v1244
      %v1246 = vpop.f32.mrf.mxu0
      %v1247 = vadd.f32 0.0, %v1246
      %1248 = vmatmul.bf16.gmra.mxu0 %v1135
      %v1249 = vpop.f32.mrf.mxu0
      %v1250 = vadd.f32 0.0, %v1249
      %v1251 = vpop.f32.mrf.mxu0
      %v1252 = vadd.f32 0.0, %v1251
      %1253 = vmatmul.bf16.gmra.mxu0 %v1136
      %v1254 = vpop.f32.mrf.mxu0
      %v1255 = vadd.f32 0.0, %v1254
      %v1256 = vpop.f32.mrf.mxu0
      %v1257 = vadd.f32 0.0, %v1256
      %1258 = vmatmul.bf16.gmra.mxu0 %v1137
      %v1259 = vpop.f32.mrf.mxu0
      %v1260 = vadd.f32 0.0, %v1259
      %v1261 = vpop.f32.mrf.mxu0
      %v1262 = vadd.f32 0.0, %v1261
      %1263 = vmatmul.bf16.gmra.mxu0 %v1138
      %v1264 = vpop.f32.mrf.mxu0
      %v1265 = vadd.f32 0.0, %v1264
      %v1266 = vpop.f32.mrf.mxu0
      %v1267 = vadd.f32 0.0, %v1266
      %1268 = vmatmul.bf16.gmra.mxu0 %v1139
      %v1269 = vpop.f32.mrf.mxu0
      %v1270 = vadd.f32 0.0, %v1269
      %v1271 = vpop.f32.mrf.mxu0
      %v1272 = vadd.f32 0.0, %v1271
      %1273 = vmatmul.bf16.gmra.mxu0 %v1140
      %v1274 = vpop.f32.mrf.mxu0
      %v1275 = vadd.f32 0.0, %v1274
      %v1276 = vpop.f32.mrf.mxu0
      %v1277 = vadd.f32 0.0, %v1276
      %1278 = vmatmul.bf16.gmra.mxu0 %v1141
      %v1279 = vpop.f32.mrf.mxu0
      %v1280 = vadd.f32 0.0, %v1279
      %v1281 = vpop.f32.mrf.mxu0
      %v1282 = vadd.f32 0.0, %v1281
      %1283 = vmatmul.bf16.gmra.mxu0 %v1142
      %v1284 = vpop.f32.mrf.mxu0
      %v1285 = vadd.f32 0.0, %v1284
      %v1286 = vpop.f32.mrf.mxu0
      %v1287 = vadd.f32 0.0, %v1286
      %1288 = vmatmul.bf16.gmra.mxu0 %v1143
      %v1289 = vpop.f32.mrf.mxu0
      %v1290 = vadd.f32 0.0, %v1289
      %v1291 = vpop.f32.mrf.mxu0
      %v1292 = vadd.f32 0.0, %v1291
      %1293 = vmatmul.bf16.gmra.mxu0 %v1144
      %v1294 = vpop.f32.mrf.mxu0
      %v1295 = vadd.f32 0.0, %v1294
      %v1296 = vpop.f32.mrf.mxu0
      %v1297 = vadd.f32 0.0, %v1296
      %1298 = vdwg.mxu0
      %v1299 = vadd.f32 %v1065, %v1220
      %v1300 = vadd.f32 %v1066, %v1222
      %v1301 = vadd.f32 %v1067, %v1225
      %v1302 = vadd.f32 %v1068, %v1227
      %v1303 = vadd.f32 %v1069, %v1230
      %v1304 = vadd.f32 %v1070, %v1232
      %v1305 = vadd.f32 %v1071, %v1235
      %v1306 = vadd.f32 %v1072, %v1237
      %v1307 = vadd.f32 %v1073, %v1240
      %v1308 = vadd.f32 %v1074, %v1242
      %v1309 = vadd.f32 %v1075, %v1245
      %v1310 = vadd.f32 %v1076, %v1247
      %v1311 = vadd.f32 %v1077, %v1250
      %v1312 = vadd.f32 %v1078, %v1252
      %v1313 = vadd.f32 %v1079, %v1255
      %v1314 = vadd.f32 %v1080, %v1257
      %v1315 = vadd.f32 %v1081, %v1260
      %v1316 = vadd.f32 %v1082, %v1262
      %v1317 = vadd.f32 %v1083, %v1265
      %v1318 = vadd.f32 %v1084, %v1267
      %v1319 = vadd.f32 %v1085, %v1270
      %v1320 = vadd.f32 %v1086, %v1272
      %v1321 = vadd.f32 %v1087, %v1275
      %v1322 = vadd.f32 %v1088, %v1277
      %v1323 = vadd.f32 %v1089, %v1280
      %v1324 = vadd.f32 %v1090, %v1282
      %v1325 = vadd.f32 %v1091, %v1285
      %v1326 = vadd.f32 %v1092, %v1287
      %v1327 = vadd.f32 %v1093, %v1290
      %v1328 = vadd.f32 %v1094, %v1292
      %v1329 = vadd.f32 %v1095, %v1295
      %v1330 = vadd.f32 %v1096, %v1297
      %v1331 = vld [vmem:[%s427 + $0x1] sm:$0xff]
      %v1332 = vld [vmem:[%s427 + $0x9] sm:$0xff]
      %v1333 = vld [vmem:[%s427 + $0x19] sm:$0xff]
      %v1334 = vld [vmem:[%s427 + $0x21] sm:$0xff]
      %v1335 = vld [vmem:[%s427 + $0x31] sm:$0xff]
      %v1336 = vld [vmem:[%s427 + $0x39] sm:$0xff]
      %v1337 = vld [vmem:[%s427 + $0x49] sm:$0xff]
      %v1338 = vld [vmem:[%s427 + $0x51] sm:$0xff]
      %v1339 = vld [vmem:[%s427 + $0x61] sm:$0xff]
      %v1340 = vld [vmem:[%s427 + $0x69] sm:$0xff]
      %v1341 = vld [vmem:[%s427 + $0x79] sm:$0xff]
      %v1342 = vld [vmem:[%s427 + $0x81] sm:$0xff]
      %v1343 = vld [vmem:[%s427 + $0x91] sm:$0xff]
      %v1344 = vld [vmem:[%s427 + $0x99] sm:$0xff]
      %v1345 = vld [vmem:[%s427 + $0xa9] sm:$0xff]
      %v1346 = vld [vmem:[%s427 + $0xb1] sm:$0xff]
      %v1347 = vld [vmem:[%s427 + $0xc1] sm:$0xff]
      %v1348 = vld [vmem:[%s427 + $0xc9] sm:$0xff]
      %v1349 = vld [vmem:[%s427 + $0xd9] sm:$0xff]
      %v1350 = vld [vmem:[%s427 + $0xe1] sm:$0xff]
      %v1351 = vld [vmem:[%s427 + $0xf1] sm:$0xff]
      %v1352 = vld [vmem:[%s427 + $0xf9] sm:$0xff]
      %v1353 = vld [vmem:[%s427 + $0x109] sm:$0xff]
      %v1354 = vld [vmem:[%s427 + $0x111] sm:$0xff]
      %v1355 = vld [vmem:[%s427 + $0x121] sm:$0xff]
      %v1356 = vld [vmem:[%s427 + $0x129] sm:$0xff]
      %v1357 = vld [vmem:[%s427 + $0x139] sm:$0xff]
      %v1358 = vld [vmem:[%s427 + $0x141] sm:$0xff]
      %v1359 = vld [vmem:[%s427 + $0x151] sm:$0xff]
      %v1360 = vld [vmem:[%s427 + $0x159] sm:$0xff]
      %v1361 = vld [vmem:[%s427 + $0x169] sm:$0xff]
      %v1362 = vld [vmem:[%s427 + $0x171] sm:$0xff]
      %v1363 = vpack.c.bf16 %v1332, %v1331
      %v1364 = vpack.c.bf16 %v1334, %v1333
      %v1365 = vpack.c.bf16 %v1336, %v1335
      %v1366 = vpack.c.bf16 %v1338, %v1337
      %v1367 = vpack.c.bf16 %v1340, %v1339
      %v1368 = vpack.c.bf16 %v1342, %v1341
      %v1369 = vpack.c.bf16 %v1344, %v1343
      %v1370 = vpack.c.bf16 %v1346, %v1345
      %v1371 = vpack.c.bf16 %v1348, %v1347
      %v1372 = vpack.c.bf16 %v1350, %v1349
      %v1373 = vpack.c.bf16 %v1352, %v1351
      %v1374 = vpack.c.bf16 %v1354, %v1353
      %v1375 = vpack.c.bf16 %v1356, %v1355
      %v1376 = vpack.c.bf16 %v1358, %v1357
      %v1377 = vpack.c.bf16 %v1360, %v1359
      %v1378 = vpack.c.bf16 %v1362, %v1361
      %s1379 = scalar_lea.vmem %s2, 256
      %v1380 = vld [vmem:[%s1379] sm:$0xf]
      %v1381 = vld [vmem:[%s1379 + $0x4] sm:$0xf]
      %v1382 = vld [vmem:[%s1379 + $0x8] sm:$0xf]
      %v1383 = vld [vmem:[%s1379 + $0xc] sm:$0xf]
      %v1384 = vld [vmem:[%s1379 + $0x10] sm:$0xf]
      %v1385 = vld [vmem:[%s1379 + $0x14] sm:$0xf]
      %v1386 = vld [vmem:[%s1379 + $0x18] sm:$0xf]
      %v1387 = vld [vmem:[%s1379 + $0x1c] sm:$0xf]
      %v1388 = vld [vmem:[%s1379 + $0x20] sm:$0xf]
      %v1389 = vld [vmem:[%s1379 + $0x24] sm:$0xf]
      %v1390 = vld [vmem:[%s1379 + $0x28] sm:$0xf]
      %v1391 = vld [vmem:[%s1379 + $0x2c] sm:$0xf]
      %v1392 = vld [vmem:[%s1379 + $0x30] sm:$0xf]
      %v1393 = vld [vmem:[%s1379 + $0x34] sm:$0xf]
      %v1394 = vld [vmem:[%s1379 + $0x38] sm:$0xf]
      %v1395 = vld [vmem:[%s1379 + $0x3c] sm:$0xf]
      %v1412 = vunpack.c.l.b16 %v1380
      %v1413 = vunpack.c.l.b16 %v1381
      %v1414 = vunpack.c.l.b16 %v1382
      %v1415 = vunpack.c.l.b16 %v1383
      %v1416 = vunpack.c.l.b16 %v1384
      %v1417 = vunpack.c.l.b16 %v1385
      %v1418 = vunpack.c.l.b16 %v1386
      %v1419 = vunpack.c.l.b16 %v1387
      %v1420 = vunpack.c.l.b16 %v1388
      %v1421 = vunpack.c.l.b16 %v1389
      %v1422 = vunpack.c.l.b16 %v1390
      %v1423 = vunpack.c.l.b16 %v1391
      %v1424 = vunpack.c.l.b16 %v1392
      %v1425 = vunpack.c.l.b16 %v1393
      %v1426 = vunpack.c.l.b16 %v1394
      %v1427 = vunpack.c.l.b16 %v1395
      %v1428 = vpack.c.b16 %v1413, %v1412
      %v1429 = vpack.c.b16 %v1415, %v1414
      %v1430 = vpack.c.b16 %v1417, %v1416
      %v1431 = vpack.c.b16 %v1419, %v1418
      %v1432 = vpack.c.b16 %v1421, %v1420
      %v1433 = vpack.c.b16 %v1423, %v1422
      %v1434 = vpack.c.b16 %v1425, %v1424
      %v1435 = vpack.c.b16 %v1427, %v1426
      %1444 = vmatpush.bf16.msra.mxu0 %v1435
      %1445 = vmatpush.bf16.msra.mxu0 %v1434
      %1446 = vmatpush.bf16.msra.mxu0 %v1433
      %1447 = vmatpush.bf16.msra.mxu0 %v1432
      %1448 = vmatpush.bf16.msra.mxu0 %v1431
      %1449 = vmatpush.bf16.msra.mxu0 %v1430
      %1450 = vmatpush.bf16.msra.mxu0 %v1429
      %1451 = vmatpush.bf16.msra.mxu0 %v1428
      %1452 = vmatmul.bf16.gmra.mxu0 %v1363
      %v1453 = vpop.f32.mrf.mxu0
      %v1454 = vadd.f32 0.0, %v1453
      %v1455 = vpop.f32.mrf.mxu0
      %v1456 = vadd.f32 0.0, %v1455
      %1457 = vmatmul.bf16.gmra.mxu0 %v1364
      %v1458 = vpop.f32.mrf.mxu0
      %v1459 = vadd.f32 0.0, %v1458
      %v1460 = vpop.f32.mrf.mxu0
      %v1461 = vadd.f32 0.0, %v1460
      %1462 = vmatmul.bf16.gmra.mxu0 %v1365
      %v1463 = vpop.f32.mrf.mxu0
      %v1464 = vadd.f32 0.0, %v1463
      %v1465 = vpop.f32.mrf.mxu0
      %v1466 = vadd.f32 0.0, %v1465
      %1467 = vmatmul.bf16.gmra.mxu0 %v1366
      %v1468 = vpop.f32.mrf.mxu0
      %v1469 = vadd.f32 0.0, %v1468
      %v1470 = vpop.f32.mrf.mxu0
      %v1471 = vadd.f32 0.0, %v1470
      %1472 = vmatmul.bf16.gmra.mxu0 %v1367
      %v1473 = vpop.f32.mrf.mxu0
      %v1474 = vadd.f32 0.0, %v1473
      %v1475 = vpop.f32.mrf.mxu0
      %v1476 = vadd.f32 0.0, %v1475
      %1477 = vmatmul.bf16.gmra.mxu0 %v1368
      %v1478 = vpop.f32.mrf.mxu0
      %v1479 = vadd.f32 0.0, %v1478
      %v1480 = vpop.f32.mrf.mxu0
      %v1481 = vadd.f32 0.0, %v1480
      %1482 = vmatmul.bf16.gmra.mxu0 %v1369
      %v1483 = vpop.f32.mrf.mxu0
      %v1484 = vadd.f32 0.0, %v1483
      %v1485 = vpop.f32.mrf.mxu0
      %v1486 = vadd.f32 0.0, %v1485
      %1487 = vmatmul.bf16.gmra.mxu0 %v1370
      %v1488 = vpop.f32.mrf.mxu0
      %v1489 = vadd.f32 0.0, %v1488
      %v1490 = vpop.f32.mrf.mxu0
      %v1491 = vadd.f32 0.0, %v1490
      %1492 = vmatmul.bf16.gmra.mxu0 %v1371
      %v1493 = vpop.f32.mrf.mxu0
      %v1494 = vadd.f32 0.0, %v1493
      %v1495 = vpop.f32.mrf.mxu0
      %v1496 = vadd.f32 0.0, %v1495
      %1497 = vmatmul.bf16.gmra.mxu0 %v1372
      %v1498 = vpop.f32.mrf.mxu0
      %v1499 = vadd.f32 0.0, %v1498
      %v1500 = vpop.f32.mrf.mxu0
      %v1501 = vadd.f32 0.0, %v1500
      %1502 = vmatmul.bf16.gmra.mxu0 %v1373
      %v1503 = vpop.f32.mrf.mxu0
      %v1504 = vadd.f32 0.0, %v1503
      %v1505 = vpop.f32.mrf.mxu0
      %v1506 = vadd.f32 0.0, %v1505
      %1507 = vmatmul.bf16.gmra.mxu0 %v1374
      %v1508 = vpop.f32.mrf.mxu0
      %v1509 = vadd.f32 0.0, %v1508
      %v1510 = vpop.f32.mrf.mxu0
      %v1511 = vadd.f32 0.0, %v1510
      %1512 = vmatmul.bf16.gmra.mxu0 %v1375
      %v1513 = vpop.f32.mrf.mxu0
      %v1514 = vadd.f32 0.0, %v1513
      %v1515 = vpop.f32.mrf.mxu0
      %v1516 = vadd.f32 0.0, %v1515
      %1517 = vmatmul.bf16.gmra.mxu0 %v1376
      %v1518 = vpop.f32.mrf.mxu0
      %v1519 = vadd.f32 0.0, %v1518
      %v1520 = vpop.f32.mrf.mxu0
      %v1521 = vadd.f32 0.0, %v1520
      %1522 = vmatmul.bf16.gmra.mxu0 %v1377
      %v1523 = vpop.f32.mrf.mxu0
      %v1524 = vadd.f32 0.0, %v1523
      %v1525 = vpop.f32.mrf.mxu0
      %v1526 = vadd.f32 0.0, %v1525
      %1527 = vmatmul.bf16.gmra.mxu0 %v1378
      %v1528 = vpop.f32.mrf.mxu0
      %v1529 = vadd.f32 0.0, %v1528
      %v1530 = vpop.f32.mrf.mxu0
      %v1531 = vadd.f32 0.0, %v1530
      %1532 = vdwg.mxu0
      %v1533 = vadd.f32 %v1299, %v1454
      %v1534 = vadd.f32 %v1300, %v1456
      %v1535 = vadd.f32 %v1301, %v1459
      %v1536 = vadd.f32 %v1302, %v1461
      %v1537 = vadd.f32 %v1303, %v1464
      %v1538 = vadd.f32 %v1304, %v1466
      %v1539 = vadd.f32 %v1305, %v1469
      %v1540 = vadd.f32 %v1306, %v1471
      %v1541 = vadd.f32 %v1307, %v1474
      %v1542 = vadd.f32 %v1308, %v1476
      %v1543 = vadd.f32 %v1309, %v1479
      %v1544 = vadd.f32 %v1310, %v1481
      %v1545 = vadd.f32 %v1311, %v1484
      %v1546 = vadd.f32 %v1312, %v1486
      %v1547 = vadd.f32 %v1313, %v1489
      %v1548 = vadd.f32 %v1314, %v1491
      %v1549 = vadd.f32 %v1315, %v1494
      %v1550 = vadd.f32 %v1316, %v1496
      %v1551 = vadd.f32 %v1317, %v1499
      %v1552 = vadd.f32 %v1318, %v1501
      %v1553 = vadd.f32 %v1319, %v1504
      %v1554 = vadd.f32 %v1320, %v1506
      %v1555 = vadd.f32 %v1321, %v1509
      %v1556 = vadd.f32 %v1322, %v1511
      %v1557 = vadd.f32 %v1323, %v1514
      %v1558 = vadd.f32 %v1324, %v1516
      %v1559 = vadd.f32 %v1325, %v1519
      %v1560 = vadd.f32 %v1326, %v1521
      %v1561 = vadd.f32 %v1327, %v1524
      %v1562 = vadd.f32 %v1328, %v1526
      %v1563 = vadd.f32 %v1329, %v1529
      %v1564 = vadd.f32 %v1330, %v1531
      %v1565 = vld [vmem:[%s427 + $0x2] sm:$0xff]
      %v1566 = vld [vmem:[%s427 + $0xa] sm:$0xff]
      %v1567 = vld [vmem:[%s427 + $0x1a] sm:$0xff]
      %v1568 = vld [vmem:[%s427 + $0x22] sm:$0xff]
      %v1569 = vld [vmem:[%s427 + $0x32] sm:$0xff]
      %v1570 = vld [vmem:[%s427 + $0x3a] sm:$0xff]
      %v1571 = vld [vmem:[%s427 + $0x4a] sm:$0xff]
      %v1572 = vld [vmem:[%s427 + $0x52] sm:$0xff]
      %v1573 = vld [vmem:[%s427 + $0x62] sm:$0xff]
      %v1574 = vld [vmem:[%s427 + $0x6a] sm:$0xff]
      %v1575 = vld [vmem:[%s427 + $0x7a] sm:$0xff]
      %v1576 = vld [vmem:[%s427 + $0x82] sm:$0xff]
      %v1577 = vld [vmem:[%s427 + $0x92] sm:$0xff]
      %v1578 = vld [vmem:[%s427 + $0x9a] sm:$0xff]
      %v1579 = vld [vmem:[%s427 + $0xaa] sm:$0xff]
      %v1580 = vld [vmem:[%s427 + $0xb2] sm:$0xff]
      %v1581 = vld [vmem:[%s427 + $0xc2] sm:$0xff]
      %v1582 = vld [vmem:[%s427 + $0xca] sm:$0xff]
      %v1583 = vld [vmem:[%s427 + $0xda] sm:$0xff]
      %v1584 = vld [vmem:[%s427 + $0xe2] sm:$0xff]
      %v1585 = vld [vmem:[%s427 + $0xf2] sm:$0xff]
      %v1586 = vld [vmem:[%s427 + $0xfa] sm:$0xff]
      %v1587 = vld [vmem:[%s427 + $0x10a] sm:$0xff]
      %v1588 = vld [vmem:[%s427 + $0x112] sm:$0xff]
      %v1589 = vld [vmem:[%s427 + $0x122] sm:$0xff]
      %v1590 = vld [vmem:[%s427 + $0x12a] sm:$0xff]
      %v1591 = vld [vmem:[%s427 + $0x13a] sm:$0xff]
      %v1592 = vld [vmem:[%s427 + $0x142] sm:$0xff]
      %v1593 = vld [vmem:[%s427 + $0x152] sm:$0xff]
      %v1594 = vld [vmem:[%s427 + $0x15a] sm:$0xff]
      %v1595 = vld [vmem:[%s427 + $0x16a] sm:$0xff]
      %v1596 = vld [vmem:[%s427 + $0x172] sm:$0xff]
      %v1597 = vpack.c.bf16 %v1566, %v1565
      %v1598 = vpack.c.bf16 %v1568, %v1567
      %v1599 = vpack.c.bf16 %v1570, %v1569
      %v1600 = vpack.c.bf16 %v1572, %v1571
      %v1601 = vpack.c.bf16 %v1574, %v1573
      %v1602 = vpack.c.bf16 %v1576, %v1575
      %v1603 = vpack.c.bf16 %v1578, %v1577
      %v1604 = vpack.c.bf16 %v1580, %v1579
      %v1605 = vpack.c.bf16 %v1582, %v1581
      %v1606 = vpack.c.bf16 %v1584, %v1583
      %v1607 = vpack.c.bf16 %v1586, %v1585
      %v1608 = vpack.c.bf16 %v1588, %v1587
      %v1609 = vpack.c.bf16 %v1590, %v1589
      %v1610 = vpack.c.bf16 %v1592, %v1591
      %v1611 = vpack.c.bf16 %v1594, %v1593
      %v1612 = vpack.c.bf16 %v1596, %v1595
      %s1613 = scalar_lea.vmem %s2, 320
      %v1614 = vld [vmem:[%s1613] sm:$0xf]
      %v1615 = vld [vmem:[%s1613 + $0x4] sm:$0xf]
      %v1616 = vld [vmem:[%s1613 + $0x8] sm:$0xf]
      %v1617 = vld [vmem:[%s1613 + $0xc] sm:$0xf]
      %v1618 = vld [vmem:[%s1613 + $0x10] sm:$0xf]
      %v1619 = vld [vmem:[%s1613 + $0x14] sm:$0xf]
      %v1620 = vld [vmem:[%s1613 + $0x18] sm:$0xf]
      %v1621 = vld [vmem:[%s1613 + $0x1c] sm:$0xf]
      %v1622 = vld [vmem:[%s1613 + $0x20] sm:$0xf]
      %v1623 = vld [vmem:[%s1613 + $0x24] sm:$0xf]
      %v1624 = vld [vmem:[%s1613 + $0x28] sm:$0xf]
      %v1625 = vld [vmem:[%s1613 + $0x2c] sm:$0xf]
      %v1626 = vld [vmem:[%s1613 + $0x30] sm:$0xf]
      %v1627 = vld [vmem:[%s1613 + $0x34] sm:$0xf]
      %v1628 = vld [vmem:[%s1613 + $0x38] sm:$0xf]
      %v1629 = vld [vmem:[%s1613 + $0x3c] sm:$0xf]
      %v1646 = vunpack.c.l.b16 %v1614
      %v1647 = vunpack.c.l.b16 %v1615
      %v1648 = vunpack.c.l.b16 %v1616
      %v1649 = vunpack.c.l.b16 %v1617
      %v1650 = vunpack.c.l.b16 %v1618
      %v1651 = vunpack.c.l.b16 %v1619
      %v1652 = vunpack.c.l.b16 %v1620
      %v1653 = vunpack.c.l.b16 %v1621
      %v1654 = vunpack.c.l.b16 %v1622
      %v1655 = vunpack.c.l.b16 %v1623
      %v1656 = vunpack.c.l.b16 %v1624
      %v1657 = vunpack.c.l.b16 %v1625
      %v1658 = vunpack.c.l.b16 %v1626
      %v1659 = vunpack.c.l.b16 %v1627
      %v1660 = vunpack.c.l.b16 %v1628
      %v1661 = vunpack.c.l.b16 %v1629
      %v1662 = vpack.c.b16 %v1647, %v1646
      %v1663 = vpack.c.b16 %v1649, %v1648
      %v1664 = vpack.c.b16 %v1651, %v1650
      %v1665 = vpack.c.b16 %v1653, %v1652
      %v1666 = vpack.c.b16 %v1655, %v1654
      %v1667 = vpack.c.b16 %v1657, %v1656
      %v1668 = vpack.c.b16 %v1659, %v1658
      %v1669 = vpack.c.b16 %v1661, %v1660
      %1678 = vmatpush.bf16.msra.mxu0 %v1669
      %1679 = vmatpush.bf16.msra.mxu0 %v1668
      %1680 = vmatpush.bf16.msra.mxu0 %v1667
      %1681 = vmatpush.bf16.msra.mxu0 %v1666
      %1682 = vmatpush.bf16.msra.mxu0 %v1665
      %1683 = vmatpush.bf16.msra.mxu0 %v1664
      %1684 = vmatpush.bf16.msra.mxu0 %v1663
      %1685 = vmatpush.bf16.msra.mxu0 %v1662
      %1686 = vmatmul.bf16.gmra.mxu0 %v1597
      %v1687 = vpop.f32.mrf.mxu0
      %v1688 = vadd.f32 0.0, %v1687
      %v1689 = vpop.f32.mrf.mxu0
      %v1690 = vadd.f32 0.0, %v1689
      %1691 = vmatmul.bf16.gmra.mxu0 %v1598
      %v1692 = vpop.f32.mrf.mxu0
      %v1693 = vadd.f32 0.0, %v1692
      %v1694 = vpop.f32.mrf.mxu0
      %v1695 = vadd.f32 0.0, %v1694
      %1696 = vmatmul.bf16.gmra.mxu0 %v1599
      %v1697 = vpop.f32.mrf.mxu0
      %v1698 = vadd.f32 0.0, %v1697
      %v1699 = vpop.f32.mrf.mxu0
      %v1700 = vadd.f32 0.0, %v1699
      %1701 = vmatmul.bf16.gmra.mxu0 %v1600
      %v1702 = vpop.f32.mrf.mxu0
      %v1703 = vadd.f32 0.0, %v1702
      %v1704 = vpop.f32.mrf.mxu0
      %v1705 = vadd.f32 0.0, %v1704
      %1706 = vmatmul.bf16.gmra.mxu0 %v1601
      %v1707 = vpop.f32.mrf.mxu0
      %v1708 = vadd.f32 0.0, %v1707
      %v1709 = vpop.f32.mrf.mxu0
      %v1710 = vadd.f32 0.0, %v1709
      %1711 = vmatmul.bf16.gmra.mxu0 %v1602
      %v1712 = vpop.f32.mrf.mxu0
      %v1713 = vadd.f32 0.0, %v1712
      %v1714 = vpop.f32.mrf.mxu0
      %v1715 = vadd.f32 0.0, %v1714
      %1716 = vmatmul.bf16.gmra.mxu0 %v1603
      %v1717 = vpop.f32.mrf.mxu0
      %v1718 = vadd.f32 0.0, %v1717
      %v1719 = vpop.f32.mrf.mxu0
      %v1720 = vadd.f32 0.0, %v1719
      %1721 = vmatmul.bf16.gmra.mxu0 %v1604
      %v1722 = vpop.f32.mrf.mxu0
      %v1723 = vadd.f32 0.0, %v1722
      %v1724 = vpop.f32.mrf.mxu0
      %v1725 = vadd.f32 0.0, %v1724
      %1726 = vmatmul.bf16.gmra.mxu0 %v1605
      %v1727 = vpop.f32.mrf.mxu0
      %v1728 = vadd.f32 0.0, %v1727
      %v1729 = vpop.f32.mrf.mxu0
      %v1730 = vadd.f32 0.0, %v1729
      %1731 = vmatmul.bf16.gmra.mxu0 %v1606
      %v1732 = vpop.f32.mrf.mxu0
      %v1733 = vadd.f32 0.0, %v1732
      %v1734 = vpop.f32.mrf.mxu0
      %v1735 = vadd.f32 0.0, %v1734
      %1736 = vmatmul.bf16.gmra.mxu0 %v1607
      %v1737 = vpop.f32.mrf.mxu0
      %v1738 = vadd.f32 0.0, %v1737
      %v1739 = vpop.f32.mrf.mxu0
      %v1740 = vadd.f32 0.0, %v1739
      %1741 = vmatmul.bf16.gmra.mxu0 %v1608
      %v1742 = vpop.f32.mrf.mxu0
      %v1743 = vadd.f32 0.0, %v1742
      %v1744 = vpop.f32.mrf.mxu0
      %v1745 = vadd.f32 0.0, %v1744
      %1746 = vmatmul.bf16.gmra.mxu0 %v1609
      %v1747 = vpop.f32.mrf.mxu0
      %v1748 = vadd.f32 0.0, %v1747
      %v1749 = vpop.f32.mrf.mxu0
      %v1750 = vadd.f32 0.0, %v1749
      %1751 = vmatmul.bf16.gmra.mxu0 %v1610
      %v1752 = vpop.f32.mrf.mxu0
      %v1753 = vadd.f32 0.0, %v1752
      %v1754 = vpop.f32.mrf.mxu0
      %v1755 = vadd.f32 0.0, %v1754
      %1756 = vmatmul.bf16.gmra.mxu0 %v1611
      %v1757 = vpop.f32.mrf.mxu0
      %v1758 = vadd.f32 0.0, %v1757
      %v1759 = vpop.f32.mrf.mxu0
      %v1760 = vadd.f32 0.0, %v1759
      %1761 = vmatmul.bf16.gmra.mxu0 %v1612
      %v1762 = vpop.f32.mrf.mxu0
      %v1763 = vadd.f32 0.0, %v1762
      %v1764 = vpop.f32.mrf.mxu0
      %v1765 = vadd.f32 0.0, %v1764
      %1766 = vdwg.mxu0
      %v1767 = vadd.f32 %v1533, %v1688
      %v1768 = vadd.f32 %v1534, %v1690
      %v1769 = vadd.f32 %v1535, %v1693
      %v1770 = vadd.f32 %v1536, %v1695
      %v1771 = vadd.f32 %v1537, %v1698
      %v1772 = vadd.f32 %v1538, %v1700
      %v1773 = vadd.f32 %v1539, %v1703
      %v1774 = vadd.f32 %v1540, %v1705
      %v1775 = vadd.f32 %v1541, %v1708
      %v1776 = vadd.f32 %v1542, %v1710
      %v1777 = vadd.f32 %v1543, %v1713
      %v1778 = vadd.f32 %v1544, %v1715
      %v1779 = vadd.f32 %v1545, %v1718
      %v1780 = vadd.f32 %v1546, %v1720
      %v1781 = vadd.f32 %v1547, %v1723
      %v1782 = vadd.f32 %v1548, %v1725
      %v1783 = vadd.f32 %v1549, %v1728
      %v1784 = vadd.f32 %v1550, %v1730
      %v1785 = vadd.f32 %v1551, %v1733
      %v1786 = vadd.f32 %v1552, %v1735
      %v1787 = vadd.f32 %v1553, %v1738
      %v1788 = vadd.f32 %v1554, %v1740
      %v1789 = vadd.f32 %v1555, %v1743
      %v1790 = vadd.f32 %v1556, %v1745
      %v1791 = vadd.f32 %v1557, %v1748
      %v1792 = vadd.f32 %v1558, %v1750
      %v1793 = vadd.f32 %v1559, %v1753
      %v1794 = vadd.f32 %v1560, %v1755
      %v1795 = vadd.f32 %v1561, %v1758
      %v1796 = vadd.f32 %v1562, %v1760
      %v1797 = vadd.f32 %v1563, %v1763
      %v1798 = vadd.f32 %v1564, %v1765
      %s1799 = scalar_lea.vmem [#allocation2], 48
      %v1800 = vld [vmem:[%s1799] sm:$0xff]
      %v1801 = vld [vmem:[%s1799 + $0x8] sm:$0xff]
      %v1802 = vld [vmem:[%s1799 + $0x18] sm:$0xff]
      %v1803 = vld [vmem:[%s1799 + $0x20] sm:$0xff]
      %v1804 = vld [vmem:[%s1799 + $0x30] sm:$0xff]
      %v1805 = vld [vmem:[%s1799 + $0x38] sm:$0xff]
      %v1806 = vld [vmem:[%s1799 + $0x48] sm:$0xff]
      %v1807 = vld [vmem:[%s1799 + $0x50] sm:$0xff]
      %v1808 = vld [vmem:[%s1799 + $0x60] sm:$0xff]
      %v1809 = vld [vmem:[%s1799 + $0x68] sm:$0xff]
      %v1810 = vld [vmem:[%s1799 + $0x78] sm:$0xff]
      %v1811 = vld [vmem:[%s1799 + $0x80] sm:$0xff]
      %v1812 = vld [vmem:[%s1799 + $0x90] sm:$0xff]
      %v1813 = vld [vmem:[%s1799 + $0x98] sm:$0xff]
      %v1814 = vld [vmem:[%s1799 + $0xa8] sm:$0xff]
      %v1815 = vld [vmem:[%s1799 + $0xb0] sm:$0xff]
      %v1816 = vld [vmem:[%s1799 + $0xc0] sm:$0xff]
      %v1817 = vld [vmem:[%s1799 + $0xc8] sm:$0xff]
      %v1818 = vld [vmem:[%s1799 + $0xd8] sm:$0xff]
      %v1819 = vld [vmem:[%s1799 + $0xe0] sm:$0xff]
      %v1820 = vld [vmem:[%s1799 + $0xf0] sm:$0xff]
      %v1821 = vld [vmem:[%s1799 + $0xf8] sm:$0xff]
      %v1822 = vld [vmem:[%s1799 + $0x108] sm:$0xff]
      %v1823 = vld [vmem:[%s1799 + $0x110] sm:$0xff]
      %v1824 = vld [vmem:[%s1799 + $0x120] sm:$0xff]
      %v1825 = vld [vmem:[%s1799 + $0x128] sm:$0xff]
      %v1826 = vld [vmem:[%s1799 + $0x138] sm:$0xff]
      %v1827 = vld [vmem:[%s1799 + $0x140] sm:$0xff]
      %v1828 = vld [vmem:[%s1799 + $0x150] sm:$0xff]
      %v1829 = vld [vmem:[%s1799 + $0x158] sm:$0xff]
      %v1830 = vld [vmem:[%s1799 + $0x168] sm:$0xff]
      %v1831 = vld [vmem:[%s1799 + $0x170] sm:$0xff]
      %v1832 = vpack.c.bf16 %v1801, %v1800
      %v1833 = vpack.c.bf16 %v1803, %v1802
      %v1834 = vpack.c.bf16 %v1805, %v1804
      %v1835 = vpack.c.bf16 %v1807, %v1806
      %v1836 = vpack.c.bf16 %v1809, %v1808
      %v1837 = vpack.c.bf16 %v1811, %v1810
      %v1838 = vpack.c.bf16 %v1813, %v1812
      %v1839 = vpack.c.bf16 %v1815, %v1814
      %v1840 = vpack.c.bf16 %v1817, %v1816
      %v1841 = vpack.c.bf16 %v1819, %v1818
      %v1842 = vpack.c.bf16 %v1821, %v1820
      %v1843 = vpack.c.bf16 %v1823, %v1822
      %v1844 = vpack.c.bf16 %v1825, %v1824
      %v1845 = vpack.c.bf16 %v1827, %v1826
      %v1846 = vpack.c.bf16 %v1829, %v1828
      %v1847 = vpack.c.bf16 %v1831, %v1830
      %s1848 = scalar_lea.vmem %s2, 384
      %v1849 = vld [vmem:[%s1848] sm:$0xf]
      %v1850 = vld [vmem:[%s1848 + $0x4] sm:$0xf]
      %v1851 = vld [vmem:[%s1848 + $0x8] sm:$0xf]
      %v1852 = vld [vmem:[%s1848 + $0xc] sm:$0xf]
      %v1853 = vld [vmem:[%s1848 + $0x10] sm:$0xf]
      %v1854 = vld [vmem:[%s1848 + $0x14] sm:$0xf]
      %v1855 = vld [vmem:[%s1848 + $0x18] sm:$0xf]
      %v1856 = vld [vmem:[%s1848 + $0x1c] sm:$0xf]
      %v1857 = vld [vmem:[%s1848 + $0x20] sm:$0xf]
      %v1858 = vld [vmem:[%s1848 + $0x24] sm:$0xf]
      %v1859 = vld [vmem:[%s1848 + $0x28] sm:$0xf]
      %v1860 = vld [vmem:[%s1848 + $0x2c] sm:$0xf]
      %v1861 = vld [vmem:[%s1848 + $0x30] sm:$0xf]
      %v1862 = vld [vmem:[%s1848 + $0x34] sm:$0xf]
      %v1863 = vld [vmem:[%s1848 + $0x38] sm:$0xf]
      %v1864 = vld [vmem:[%s1848 + $0x3c] sm:$0xf]
      %v1881 = vunpack.c.l.b16 %v1849
      %v1882 = vunpack.c.l.b16 %v1850
      %v1883 = vunpack.c.l.b16 %v1851
      %v1884 = vunpack.c.l.b16 %v1852
      %v1885 = vunpack.c.l.b16 %v1853
      %v1886 = vunpack.c.l.b16 %v1854
      %v1887 = vunpack.c.l.b16 %v1855
      %v1888 = vunpack.c.l.b16 %v1856
      %v1889 = vunpack.c.l.b16 %v1857
      %v1890 = vunpack.c.l.b16 %v1858
      %v1891 = vunpack.c.l.b16 %v1859
      %v1892 = vunpack.c.l.b16 %v1860
      %v1893 = vunpack.c.l.b16 %v1861
      %v1894 = vunpack.c.l.b16 %v1862
      %v1895 = vunpack.c.l.b16 %v1863
      %v1896 = vunpack.c.l.b16 %v1864
      %v1897 = vpack.c.b16 %v1882, %v1881
      %v1898 = vpack.c.b16 %v1884, %v1883
      %v1899 = vpack.c.b16 %v1886, %v1885
      %v1900 = vpack.c.b16 %v1888, %v1887
      %v1901 = vpack.c.b16 %v1890, %v1889
      %v1902 = vpack.c.b16 %v1892, %v1891
      %v1903 = vpack.c.b16 %v1894, %v1893
      %v1904 = vpack.c.b16 %v1896, %v1895
      %1913 = vmatpush.bf16.msra.mxu0 %v1904
      %1914 = vmatpush.bf16.msra.mxu0 %v1903
      %1915 = vmatpush.bf16.msra.mxu0 %v1902
      %1916 = vmatpush.bf16.msra.mxu0 %v1901
      %1917 = vmatpush.bf16.msra.mxu0 %v1900
      %1918 = vmatpush.bf16.msra.mxu0 %v1899
      %1919 = vmatpush.bf16.msra.mxu0 %v1898
      %1920 = vmatpush.bf16.msra.mxu0 %v1897
      %1921 = vmatmul.bf16.gmra.mxu0 %v1832
      %v1922 = vpop.f32.mrf.mxu0
      %v1923 = vadd.f32 0.0, %v1922
      %v1924 = vpop.f32.mrf.mxu0
      %v1925 = vadd.f32 0.0, %v1924
      %1926 = vmatmul.bf16.gmra.mxu0 %v1833
      %v1927 = vpop.f32.mrf.mxu0
      %v1928 = vadd.f32 0.0, %v1927
      %v1929 = vpop.f32.mrf.mxu0
      %v1930 = vadd.f32 0.0, %v1929
      %1931 = vmatmul.bf16.gmra.mxu0 %v1834
      %v1932 = vpop.f32.mrf.mxu0
      %v1933 = vadd.f32 0.0, %v1932
      %v1934 = vpop.f32.mrf.mxu0
      %v1935 = vadd.f32 0.0, %v1934
      %1936 = vmatmul.bf16.gmra.mxu0 %v1835
      %v1937 = vpop.f32.mrf.mxu0
      %v1938 = vadd.f32 0.0, %v1937
      %v1939 = vpop.f32.mrf.mxu0
      %v1940 = vadd.f32 0.0, %v1939
      %1941 = vmatmul.bf16.gmra.mxu0 %v1836
      %v1942 = vpop.f32.mrf.mxu0
      %v1943 = vadd.f32 0.0, %v1942
      %v1944 = vpop.f32.mrf.mxu0
      %v1945 = vadd.f32 0.0, %v1944
      %1946 = vmatmul.bf16.gmra.mxu0 %v1837
      %v1947 = vpop.f32.mrf.mxu0
      %v1948 = vadd.f32 0.0, %v1947
      %v1949 = vpop.f32.mrf.mxu0
      %v1950 = vadd.f32 0.0, %v1949
      %1951 = vmatmul.bf16.gmra.mxu0 %v1838
      %v1952 = vpop.f32.mrf.mxu0
      %v1953 = vadd.f32 0.0, %v1952
      %v1954 = vpop.f32.mrf.mxu0
      %v1955 = vadd.f32 0.0, %v1954
      %1956 = vmatmul.bf16.gmra.mxu0 %v1839
      %v1957 = vpop.f32.mrf.mxu0
      %v1958 = vadd.f32 0.0, %v1957
      %v1959 = vpop.f32.mrf.mxu0
      %v1960 = vadd.f32 0.0, %v1959
      %1961 = vmatmul.bf16.gmra.mxu0 %v1840
      %v1962 = vpop.f32.mrf.mxu0
      %v1963 = vadd.f32 0.0, %v1962
      %v1964 = vpop.f32.mrf.mxu0
      %v1965 = vadd.f32 0.0, %v1964
      %1966 = vmatmul.bf16.gmra.mxu0 %v1841
      %v1967 = vpop.f32.mrf.mxu0
      %v1968 = vadd.f32 0.0, %v1967
      %v1969 = vpop.f32.mrf.mxu0
      %v1970 = vadd.f32 0.0, %v1969
      %1971 = vmatmul.bf16.gmra.mxu0 %v1842
      %v1972 = vpop.f32.mrf.mxu0
      %v1973 = vadd.f32 0.0, %v1972
      %v1974 = vpop.f32.mrf.mxu0
      %v1975 = vadd.f32 0.0, %v1974
      %1976 = vmatmul.bf16.gmra.mxu0 %v1843
      %v1977 = vpop.f32.mrf.mxu0
      %v1978 = vadd.f32 0.0, %v1977
      %v1979 = vpop.f32.mrf.mxu0
      %v1980 = vadd.f32 0.0, %v1979
      %1981 = vmatmul.bf16.gmra.mxu0 %v1844
      %v1982 = vpop.f32.mrf.mxu0
      %v1983 = vadd.f32 0.0, %v1982
      %v1984 = vpop.f32.mrf.mxu0
      %v1985 = vadd.f32 0.0, %v1984
      %1986 = vmatmul.bf16.gmra.mxu0 %v1845
      %v1987 = vpop.f32.mrf.mxu0
      %v1988 = vadd.f32 0.0, %v1987
      %v1989 = vpop.f32.mrf.mxu0
      %v1990 = vadd.f32 0.0, %v1989
      %1991 = vmatmul.bf16.gmra.mxu0 %v1846
      %v1992 = vpop.f32.mrf.mxu0
      %v1993 = vadd.f32 0.0, %v1992
      %v1994 = vpop.f32.mrf.mxu0
      %v1995 = vadd.f32 0.0, %v1994
      %1996 = vmatmul.bf16.gmra.mxu0 %v1847
      %v1997 = vpop.f32.mrf.mxu0
      %v1998 = vadd.f32 0.0, %v1997
      %v1999 = vpop.f32.mrf.mxu0
      %v2000 = vadd.f32 0.0, %v1999
      %2001 = vdwg.mxu0
      %v2002 = vadd.f32 %v1767, %v1923
      %v2003 = vadd.f32 %v1768, %v1925
      %v2004 = vadd.f32 %v1769, %v1928
      %v2005 = vadd.f32 %v1770, %v1930
      %v2006 = vadd.f32 %v1771, %v1933
      %v2007 = vadd.f32 %v1772, %v1935
      %v2008 = vadd.f32 %v1773, %v1938
      %v2009 = vadd.f32 %v1774, %v1940
      %v2010 = vadd.f32 %v1775, %v1943
      %v2011 = vadd.f32 %v1776, %v1945
      %v2012 = vadd.f32 %v1777, %v1948
      %v2013 = vadd.f32 %v1778, %v1950
      %v2014 = vadd.f32 %v1779, %v1953
      %v2015 = vadd.f32 %v1780, %v1955
      %v2016 = vadd.f32 %v1781, %v1958
      %v2017 = vadd.f32 %v1782, %v1960
      %v2018 = vadd.f32 %v1783, %v1963
      %v2019 = vadd.f32 %v1784, %v1965
      %v2020 = vadd.f32 %v1785, %v1968
      %v2021 = vadd.f32 %v1786, %v1970
      %v2022 = vadd.f32 %v1787, %v1973
      %v2023 = vadd.f32 %v1788, %v1975
      %v2024 = vadd.f32 %v1789, %v1978
      %v2025 = vadd.f32 %v1790, %v1980
      %v2026 = vadd.f32 %v1791, %v1983
      %v2027 = vadd.f32 %v1792, %v1985
      %v2028 = vadd.f32 %v1793, %v1988
      %v2029 = vadd.f32 %v1794, %v1990
      %v2030 = vadd.f32 %v1795, %v1993
      %v2031 = vadd.f32 %v1796, %v1995
      %v2032 = vadd.f32 %v1797, %v1998
      %v2033 = vadd.f32 %v1798, %v2000
      %v2034 = vld [vmem:[%s1799 + $0x1] sm:$0xff]
      %v2035 = vld [vmem:[%s1799 + $0x9] sm:$0xff]
      %v2036 = vld [vmem:[%s1799 + $0x19] sm:$0xff]
      %v2037 = vld [vmem:[%s1799 + $0x21] sm:$0xff]
      %v2038 = vld [vmem:[%s1799 + $0x31] sm:$0xff]
      %v2039 = vld [vmem:[%s1799 + $0x39] sm:$0xff]
      %v2040 = vld [vmem:[%s1799 + $0x49] sm:$0xff]
      %v2041 = vld [vmem:[%s1799 + $0x51] sm:$0xff]
      %v2042 = vld [vmem:[%s1799 + $0x61] sm:$0xff]
      %v2043 = vld [vmem:[%s1799 + $0x69] sm:$0xff]
      %v2044 = vld [vmem:[%s1799 + $0x79] sm:$0xff]
      %v2045 = vld [vmem:[%s1799 + $0x81] sm:$0xff]
      %v2046 = vld [vmem:[%s1799 + $0x91] sm:$0xff]
      %v2047 = vld [vmem:[%s1799 + $0x99] sm:$0xff]
      %v2048 = vld [vmem:[%s1799 + $0xa9] sm:$0xff]
      %v2049 = vld [vmem:[%s1799 + $0xb1] sm:$0xff]
      %v2050 = vld [vmem:[%s1799 + $0xc1] sm:$0xff]
      %v2051 = vld [vmem:[%s1799 + $0xc9] sm:$0xff]
      %v2052 = vld [vmem:[%s1799 + $0xd9] sm:$0xff]
      %v2053 = vld [vmem:[%s1799 + $0xe1] sm:$0xff]
      %v2054 = vld [vmem:[%s1799 + $0xf1] sm:$0xff]
      %v2055 = vld [vmem:[%s1799 + $0xf9] sm:$0xff]
      %v2056 = vld [vmem:[%s1799 + $0x109] sm:$0xff]
      %v2057 = vld [vmem:[%s1799 + $0x111] sm:$0xff]
      %v2058 = vld [vmem:[%s1799 + $0x121] sm:$0xff]
      %v2059 = vld [vmem:[%s1799 + $0x129] sm:$0xff]
      %v2060 = vld [vmem:[%s1799 + $0x139] sm:$0xff]
      %v2061 = vld [vmem:[%s1799 + $0x141] sm:$0xff]
      %v2062 = vld [vmem:[%s1799 + $0x151] sm:$0xff]
      %v2063 = vld [vmem:[%s1799 + $0x159] sm:$0xff]
      %v2064 = vld [vmem:[%s1799 + $0x169] sm:$0xff]
      %v2065 = vld [vmem:[%s1799 + $0x171] sm:$0xff]
      %v2066 = vpack.c.bf16 %v2035, %v2034
      %v2067 = vpack.c.bf16 %v2037, %v2036
      %v2068 = vpack.c.bf16 %v2039, %v2038
      %v2069 = vpack.c.bf16 %v2041, %v2040
      %v2070 = vpack.c.bf16 %v2043, %v2042
      %v2071 = vpack.c.bf16 %v2045, %v2044
      %v2072 = vpack.c.bf16 %v2047, %v2046
      %v2073 = vpack.c.bf16 %v2049, %v2048
      %v2074 = vpack.c.bf16 %v2051, %v2050
      %v2075 = vpack.c.bf16 %v2053, %v2052
      %v2076 = vpack.c.bf16 %v2055, %v2054
      %v2077 = vpack.c.bf16 %v2057, %v2056
      %v2078 = vpack.c.bf16 %v2059, %v2058
      %v2079 = vpack.c.bf16 %v2061, %v2060
      %v2080 = vpack.c.bf16 %v2063, %v2062
      %v2081 = vpack.c.bf16 %v2065, %v2064
      %s2082 = scalar_lea.vmem %s2, 448
      %v2083 = vld [vmem:[%s2082] sm:$0xf]
      %v2084 = vld [vmem:[%s2082 + $0x4] sm:$0xf]
      %v2085 = vld [vmem:[%s2082 + $0x8] sm:$0xf]
      %v2086 = vld [vmem:[%s2082 + $0xc] sm:$0xf]
      %v2087 = vld [vmem:[%s2082 + $0x10] sm:$0xf]
      %v2088 = vld [vmem:[%s2082 + $0x14] sm:$0xf]
      %v2089 = vld [vmem:[%s2082 + $0x18] sm:$0xf]
      %v2090 = vld [vmem:[%s2082 + $0x1c] sm:$0xf]
      %v2091 = vld [vmem:[%s2082 + $0x20] sm:$0xf]
      %v2092 = vld [vmem:[%s2082 + $0x24] sm:$0xf]
      %v2093 = vld [vmem:[%s2082 + $0x28] sm:$0xf]
      %v2094 = vld [vmem:[%s2082 + $0x2c] sm:$0xf]
      %v2095 = vld [vmem:[%s2082 + $0x30] sm:$0xf]
      %v2096 = vld [vmem:[%s2082 + $0x34] sm:$0xf]
      %v2097 = vld [vmem:[%s2082 + $0x38] sm:$0xf]
      %v2098 = vld [vmem:[%s2082 + $0x3c] sm:$0xf]
      %v2115 = vunpack.c.l.b16 %v2083
      %v2116 = vunpack.c.l.b16 %v2084
      %v2117 = vunpack.c.l.b16 %v2085
      %v2118 = vunpack.c.l.b16 %v2086
      %v2119 = vunpack.c.l.b16 %v2087
      %v2120 = vunpack.c.l.b16 %v2088
      %v2121 = vunpack.c.l.b16 %v2089
      %v2122 = vunpack.c.l.b16 %v2090
      %v2123 = vunpack.c.l.b16 %v2091
      %v2124 = vunpack.c.l.b16 %v2092
      %v2125 = vunpack.c.l.b16 %v2093
      %v2126 = vunpack.c.l.b16 %v2094
      %v2127 = vunpack.c.l.b16 %v2095
      %v2128 = vunpack.c.l.b16 %v2096
      %v2129 = vunpack.c.l.b16 %v2097
      %v2130 = vunpack.c.l.b16 %v2098
      %v2131 = vpack.c.b16 %v2116, %v2115
      %v2132 = vpack.c.b16 %v2118, %v2117
      %v2133 = vpack.c.b16 %v2120, %v2119
      %v2134 = vpack.c.b16 %v2122, %v2121
      %v2135 = vpack.c.b16 %v2124, %v2123
      %v2136 = vpack.c.b16 %v2126, %v2125
      %v2137 = vpack.c.b16 %v2128, %v2127
      %v2138 = vpack.c.b16 %v2130, %v2129
      %2147 = vmatpush.bf16.msra.mxu0 %v2138
      %2148 = vmatpush.bf16.msra.mxu0 %v2137
      %2149 = vmatpush.bf16.msra.mxu0 %v2136
      %2150 = vmatpush.bf16.msra.mxu0 %v2135
      %2151 = vmatpush.bf16.msra.mxu0 %v2134
      %2152 = vmatpush.bf16.msra.mxu0 %v2133
      %2153 = vmatpush.bf16.msra.mxu0 %v2132
      %2154 = vmatpush.bf16.msra.mxu0 %v2131
      %2155 = vmatmul.bf16.gmra.mxu0 %v2066
      %v2156 = vpop.f32.mrf.mxu0
      %v2157 = vadd.f32 0.0, %v2156
      %v2158 = vpop.f32.mrf.mxu0
      %v2159 = vadd.f32 0.0, %v2158
      %2160 = vmatmul.bf16.gmra.mxu0 %v2067
      %v2161 = vpop.f32.mrf.mxu0
      %v2162 = vadd.f32 0.0, %v2161
      %v2163 = vpop.f32.mrf.mxu0
      %v2164 = vadd.f32 0.0, %v2163
      %2165 = vmatmul.bf16.gmra.mxu0 %v2068
      %v2166 = vpop.f32.mrf.mxu0
      %v2167 = vadd.f32 0.0, %v2166
      %v2168 = vpop.f32.mrf.mxu0
      %v2169 = vadd.f32 0.0, %v2168
      %2170 = vmatmul.bf16.gmra.mxu0 %v2069
      %v2171 = vpop.f32.mrf.mxu0
      %v2172 = vadd.f32 0.0, %v2171
      %v2173 = vpop.f32.mrf.mxu0
      %v2174 = vadd.f32 0.0, %v2173
      %2175 = vmatmul.bf16.gmra.mxu0 %v2070
      %v2176 = vpop.f32.mrf.mxu0
      %v2177 = vadd.f32 0.0, %v2176
      %v2178 = vpop.f32.mrf.mxu0
      %v2179 = vadd.f32 0.0, %v2178
      %2180 = vmatmul.bf16.gmra.mxu0 %v2071
      %v2181 = vpop.f32.mrf.mxu0
      %v2182 = vadd.f32 0.0, %v2181
      %v2183 = vpop.f32.mrf.mxu0
      %v2184 = vadd.f32 0.0, %v2183
      %2185 = vmatmul.bf16.gmra.mxu0 %v2072
      %v2186 = vpop.f32.mrf.mxu0
      %v2187 = vadd.f32 0.0, %v2186
      %v2188 = vpop.f32.mrf.mxu0
      %v2189 = vadd.f32 0.0, %v2188
      %2190 = vmatmul.bf16.gmra.mxu0 %v2073
      %v2191 = vpop.f32.mrf.mxu0
      %v2192 = vadd.f32 0.0, %v2191
      %v2193 = vpop.f32.mrf.mxu0
      %v2194 = vadd.f32 0.0, %v2193
      %2195 = vmatmul.bf16.gmra.mxu0 %v2074
      %v2196 = vpop.f32.mrf.mxu0
      %v2197 = vadd.f32 0.0, %v2196
      %v2198 = vpop.f32.mrf.mxu0
      %v2199 = vadd.f32 0.0, %v2198
      %2200 = vmatmul.bf16.gmra.mxu0 %v2075
      %v2201 = vpop.f32.mrf.mxu0
      %v2202 = vadd.f32 0.0, %v2201
      %v2203 = vpop.f32.mrf.mxu0
      %v2204 = vadd.f32 0.0, %v2203
      %2205 = vmatmul.bf16.gmra.mxu0 %v2076
      %v2206 = vpop.f32.mrf.mxu0
      %v2207 = vadd.f32 0.0, %v2206
      %v2208 = vpop.f32.mrf.mxu0
      %v2209 = vadd.f32 0.0, %v2208
      %2210 = vmatmul.bf16.gmra.mxu0 %v2077
      %v2211 = vpop.f32.mrf.mxu0
      %v2212 = vadd.f32 0.0, %v2211
      %v2213 = vpop.f32.mrf.mxu0
      %v2214 = vadd.f32 0.0, %v2213
      %2215 = vmatmul.bf16.gmra.mxu0 %v2078
      %v2216 = vpop.f32.mrf.mxu0
      %v2217 = vadd.f32 0.0, %v2216
      %v2218 = vpop.f32.mrf.mxu0
      %v2219 = vadd.f32 0.0, %v2218
      %2220 = vmatmul.bf16.gmra.mxu0 %v2079
      %v2221 = vpop.f32.mrf.mxu0
      %v2222 = vadd.f32 0.0, %v2221
      %v2223 = vpop.f32.mrf.mxu0
      %v2224 = vadd.f32 0.0, %v2223
      %2225 = vmatmul.bf16.gmra.mxu0 %v2080
      %v2226 = vpop.f32.mrf.mxu0
      %v2227 = vadd.f32 0.0, %v2226
      %v2228 = vpop.f32.mrf.mxu0
      %v2229 = vadd.f32 0.0, %v2228
      %2230 = vmatmul.bf16.gmra.mxu0 %v2081
      %v2231 = vpop.f32.mrf.mxu0
      %v2232 = vadd.f32 0.0, %v2231
      %v2233 = vpop.f32.mrf.mxu0
      %v2234 = vadd.f32 0.0, %v2233
      %2235 = vdwg.mxu0
      %v2236 = vadd.f32 %v2002, %v2157
      %v2237 = vadd.f32 %v2003, %v2159
      %v2238 = vadd.f32 %v2004, %v2162
      %v2239 = vadd.f32 %v2005, %v2164
      %v2240 = vadd.f32 %v2006, %v2167
      %v2241 = vadd.f32 %v2007, %v2169
      %v2242 = vadd.f32 %v2008, %v2172
      %v2243 = vadd.f32 %v2009, %v2174
      %v2244 = vadd.f32 %v2010, %v2177
      %v2245 = vadd.f32 %v2011, %v2179
      %v2246 = vadd.f32 %v2012, %v2182
      %v2247 = vadd.f32 %v2013, %v2184
      %v2248 = vadd.f32 %v2014, %v2187
      %v2249 = vadd.f32 %v2015, %v2189
      %v2250 = vadd.f32 %v2016, %v2192
      %v2251 = vadd.f32 %v2017, %v2194
      %v2252 = vadd.f32 %v2018, %v2197
      %v2253 = vadd.f32 %v2019, %v2199
      %v2254 = vadd.f32 %v2020, %v2202
      %v2255 = vadd.f32 %v2021, %v2204
      %v2256 = vadd.f32 %v2022, %v2207
      %v2257 = vadd.f32 %v2023, %v2209
      %v2258 = vadd.f32 %v2024, %v2212
      %v2259 = vadd.f32 %v2025, %v2214
      %v2260 = vadd.f32 %v2026, %v2217
      %v2261 = vadd.f32 %v2027, %v2219
      %v2262 = vadd.f32 %v2028, %v2222
      %v2263 = vadd.f32 %v2029, %v2224
      %v2264 = vadd.f32 %v2030, %v2227
      %v2265 = vadd.f32 %v2031, %v2229
      %v2266 = vadd.f32 %v2032, %v2232
      %v2267 = vadd.f32 %v2033, %v2234
      %v2268 = vld [vmem:[%s1799 + $0x2] sm:$0xff]
      %v2269 = vld [vmem:[%s1799 + $0xa] sm:$0xff]
      %v2270 = vld [vmem:[%s1799 + $0x1a] sm:$0xff]
      %v2271 = vld [vmem:[%s1799 + $0x22] sm:$0xff]
      %v2272 = vld [vmem:[%s1799 + $0x32] sm:$0xff]
      %v2273 = vld [vmem:[%s1799 + $0x3a] sm:$0xff]
      %v2274 = vld [vmem:[%s1799 + $0x4a] sm:$0xff]
      %v2275 = vld [vmem:[%s1799 + $0x52] sm:$0xff]
      %v2276 = vld [vmem:[%s1799 + $0x62] sm:$0xff]
      %v2277 = vld [vmem:[%s1799 + $0x6a] sm:$0xff]
      %v2278 = vld [vmem:[%s1799 + $0x7a] sm:$0xff]
      %v2279 = vld [vmem:[%s1799 + $0x82] sm:$0xff]
      %v2280 = vld [vmem:[%s1799 + $0x92] sm:$0xff]
      %v2281 = vld [vmem:[%s1799 + $0x9a] sm:$0xff]
      %v2282 = vld [vmem:[%s1799 + $0xaa] sm:$0xff]
      %v2283 = vld [vmem:[%s1799 + $0xb2] sm:$0xff]
      %v2284 = vld [vmem:[%s1799 + $0xc2] sm:$0xff]
      %v2285 = vld [vmem:[%s1799 + $0xca] sm:$0xff]
      %v2286 = vld [vmem:[%s1799 + $0xda] sm:$0xff]
      %v2287 = vld [vmem:[%s1799 + $0xe2] sm:$0xff]
      %v2288 = vld [vmem:[%s1799 + $0xf2] sm:$0xff]
      %v2289 = vld [vmem:[%s1799 + $0xfa] sm:$0xff]
      %v2290 = vld [vmem:[%s1799 + $0x10a] sm:$0xff]
      %v2291 = vld [vmem:[%s1799 + $0x112] sm:$0xff]
      %v2292 = vld [vmem:[%s1799 + $0x122] sm:$0xff]
      %v2293 = vld [vmem:[%s1799 + $0x12a] sm:$0xff]
      %v2294 = vld [vmem:[%s1799 + $0x13a] sm:$0xff]
      %v2295 = vld [vmem:[%s1799 + $0x142] sm:$0xff]
      %v2296 = vld [vmem:[%s1799 + $0x152] sm:$0xff]
      %v2297 = vld [vmem:[%s1799 + $0x15a] sm:$0xff]
      %v2298 = vld [vmem:[%s1799 + $0x16a] sm:$0xff]
      %v2299 = vld [vmem:[%s1799 + $0x172] sm:$0xff]
      %v2300 = vpack.c.bf16 %v2269, %v2268
      %v2301 = vpack.c.bf16 %v2271, %v2270
      %v2302 = vpack.c.bf16 %v2273, %v2272
      %v2303 = vpack.c.bf16 %v2275, %v2274
      %v2304 = vpack.c.bf16 %v2277, %v2276
      %v2305 = vpack.c.bf16 %v2279, %v2278
      %v2306 = vpack.c.bf16 %v2281, %v2280
      %v2307 = vpack.c.bf16 %v2283, %v2282
      %v2308 = vpack.c.bf16 %v2285, %v2284
      %v2309 = vpack.c.bf16 %v2287, %v2286
      %v2310 = vpack.c.bf16 %v2289, %v2288
      %v2311 = vpack.c.bf16 %v2291, %v2290
      %v2312 = vpack.c.bf16 %v2293, %v2292
      %v2313 = vpack.c.bf16 %v2295, %v2294
      %v2314 = vpack.c.bf16 %v2297, %v2296
      %v2315 = vpack.c.bf16 %v2299, %v2298
      %s2316 = scalar_lea.vmem %s2, 512
      %v2317 = vld [vmem:[%s2316] sm:$0xf]
      %v2318 = vld [vmem:[%s2316 + $0x4] sm:$0xf]
      %v2319 = vld [vmem:[%s2316 + $0x8] sm:$0xf]
      %v2320 = vld [vmem:[%s2316 + $0xc] sm:$0xf]
      %v2321 = vld [vmem:[%s2316 + $0x10] sm:$0xf]
      %v2322 = vld [vmem:[%s2316 + $0x14] sm:$0xf]
      %v2323 = vld [vmem:[%s2316 + $0x18] sm:$0xf]
      %v2324 = vld [vmem:[%s2316 + $0x1c] sm:$0xf]
      %v2325 = vld [vmem:[%s2316 + $0x20] sm:$0xf]
      %v2326 = vld [vmem:[%s2316 + $0x24] sm:$0xf]
      %v2327 = vld [vmem:[%s2316 + $0x28] sm:$0xf]
      %v2328 = vld [vmem:[%s2316 + $0x2c] sm:$0xf]
      %v2329 = vld [vmem:[%s2316 + $0x30] sm:$0xf]
      %v2330 = vld [vmem:[%s2316 + $0x34] sm:$0xf]
      %v2331 = vld [vmem:[%s2316 + $0x38] sm:$0xf]
      %v2332 = vld [vmem:[%s2316 + $0x3c] sm:$0xf]
      %v2349 = vunpack.c.l.b16 %v2317
      %v2350 = vunpack.c.l.b16 %v2318
      %v2351 = vunpack.c.l.b16 %v2319
      %v2352 = vunpack.c.l.b16 %v2320
      %v2353 = vunpack.c.l.b16 %v2321
      %v2354 = vunpack.c.l.b16 %v2322
      %v2355 = vunpack.c.l.b16 %v2323
      %v2356 = vunpack.c.l.b16 %v2324
      %v2357 = vunpack.c.l.b16 %v2325
      %v2358 = vunpack.c.l.b16 %v2326
      %v2359 = vunpack.c.l.b16 %v2327
      %v2360 = vunpack.c.l.b16 %v2328
      %v2361 = vunpack.c.l.b16 %v2329
      %v2362 = vunpack.c.l.b16 %v2330
      %v2363 = vunpack.c.l.b16 %v2331
      %v2364 = vunpack.c.l.b16 %v2332
      %v2365 = vpack.c.b16 %v2350, %v2349
      %v2366 = vpack.c.b16 %v2352, %v2351
      %v2367 = vpack.c.b16 %v2354, %v2353
      %v2368 = vpack.c.b16 %v2356, %v2355
      %v2369 = vpack.c.b16 %v2358, %v2357
      %v2370 = vpack.c.b16 %v2360, %v2359
      %v2371 = vpack.c.b16 %v2362, %v2361
      %v2372 = vpack.c.b16 %v2364, %v2363
      %2381 = vmatpush.bf16.msra.mxu0 %v2372
      %2382 = vmatpush.bf16.msra.mxu0 %v2371
      %2383 = vmatpush.bf16.msra.mxu0 %v2370
      %2384 = vmatpush.bf16.msra.mxu0 %v2369
      %2385 = vmatpush.bf16.msra.mxu0 %v2368
      %2386 = vmatpush.bf16.msra.mxu0 %v2367
      %2387 = vmatpush.bf16.msra.mxu0 %v2366
      %2388 = vmatpush.bf16.msra.mxu0 %v2365
      %2389 = vmatmul.bf16.gmra.mxu0 %v2300
      %v2390 = vpop.f32.mrf.mxu0
      %v2391 = vadd.f32 0.0, %v2390
      %v2392 = vpop.f32.mrf.mxu0
      %v2393 = vadd.f32 0.0, %v2392
      %2394 = vmatmul.bf16.gmra.mxu0 %v2301
      %v2395 = vpop.f32.mrf.mxu0
      %v2396 = vadd.f32 0.0, %v2395
      %v2397 = vpop.f32.mrf.mxu0
      %v2398 = vadd.f32 0.0, %v2397
      %2399 = vmatmul.bf16.gmra.mxu0 %v2302
      %v2400 = vpop.f32.mrf.mxu0
      %v2401 = vadd.f32 0.0, %v2400
      %v2402 = vpop.f32.mrf.mxu0
      %v2403 = vadd.f32 0.0, %v2402
      %2404 = vmatmul.bf16.gmra.mxu0 %v2303
      %v2405 = vpop.f32.mrf.mxu0
      %v2406 = vadd.f32 0.0, %v2405
      %v2407 = vpop.f32.mrf.mxu0
      %v2408 = vadd.f32 0.0, %v2407
      %2409 = vmatmul.bf16.gmra.mxu0 %v2304
      %v2410 = vpop.f32.mrf.mxu0
      %v2411 = vadd.f32 0.0, %v2410
      %v2412 = vpop.f32.mrf.mxu0
      %v2413 = vadd.f32 0.0, %v2412
      %2414 = vmatmul.bf16.gmra.mxu0 %v2305
      %v2415 = vpop.f32.mrf.mxu0
      %v2416 = vadd.f32 0.0, %v2415
      %v2417 = vpop.f32.mrf.mxu0
      %v2418 = vadd.f32 0.0, %v2417
      %2419 = vmatmul.bf16.gmra.mxu0 %v2306
      %v2420 = vpop.f32.mrf.mxu0
      %v2421 = vadd.f32 0.0, %v2420
      %v2422 = vpop.f32.mrf.mxu0
      %v2423 = vadd.f32 0.0, %v2422
      %2424 = vmatmul.bf16.gmra.mxu0 %v2307
      %v2425 = vpop.f32.mrf.mxu0
      %v2426 = vadd.f32 0.0, %v2425
      %v2427 = vpop.f32.mrf.mxu0
      %v2428 = vadd.f32 0.0, %v2427
      %2429 = vmatmul.bf16.gmra.mxu0 %v2308
      %v2430 = vpop.f32.mrf.mxu0
      %v2431 = vadd.f32 0.0, %v2430
      %v2432 = vpop.f32.mrf.mxu0
      %v2433 = vadd.f32 0.0, %v2432
      %2434 = vmatmul.bf16.gmra.mxu0 %v2309
      %v2435 = vpop.f32.mrf.mxu0
      %v2436 = vadd.f32 0.0, %v2435
      %v2437 = vpop.f32.mrf.mxu0
      %v2438 = vadd.f32 0.0, %v2437
      %2439 = vmatmul.bf16.gmra.mxu0 %v2310
      %v2440 = vpop.f32.mrf.mxu0
      %v2441 = vadd.f32 0.0, %v2440
      %v2442 = vpop.f32.mrf.mxu0
      %v2443 = vadd.f32 0.0, %v2442
      %2444 = vmatmul.bf16.gmra.mxu0 %v2311
      %v2445 = vpop.f32.mrf.mxu0
      %v2446 = vadd.f32 0.0, %v2445
      %v2447 = vpop.f32.mrf.mxu0
      %v2448 = vadd.f32 0.0, %v2447
      %2449 = vmatmul.bf16.gmra.mxu0 %v2312
      %v2450 = vpop.f32.mrf.mxu0
      %v2451 = vadd.f32 0.0, %v2450
      %v2452 = vpop.f32.mrf.mxu0
      %v2453 = vadd.f32 0.0, %v2452
      %2454 = vmatmul.bf16.gmra.mxu0 %v2313
      %v2455 = vpop.f32.mrf.mxu0
      %v2456 = vadd.f32 0.0, %v2455
      %v2457 = vpop.f32.mrf.mxu0
      %v2458 = vadd.f32 0.0, %v2457
      %2459 = vmatmul.bf16.gmra.mxu0 %v2314
      %v2460 = vpop.f32.mrf.mxu0
      %v2461 = vadd.f32 0.0, %v2460
      %v2462 = vpop.f32.mrf.mxu0
      %v2463 = vadd.f32 0.0, %v2462
      %2464 = vmatmul.bf16.gmra.mxu0 %v2315
      %v2465 = vpop.f32.mrf.mxu0
      %v2466 = vadd.f32 0.0, %v2465
      %v2467 = vpop.f32.mrf.mxu0
      %v2468 = vadd.f32 0.0, %v2467
      %2469 = vdwg.mxu0
      %v2470 = vadd.f32 %v2236, %v2391
      %v2471 = vadd.f32 %v2237, %v2393
      %v2472 = vadd.f32 %v2238, %v2396
      %v2473 = vadd.f32 %v2239, %v2398
      %v2474 = vadd.f32 %v2240, %v2401
      %v2475 = vadd.f32 %v2241, %v2403
      %v2476 = vadd.f32 %v2242, %v2406
      %v2477 = vadd.f32 %v2243, %v2408
      %v2478 = vadd.f32 %v2244, %v2411
      %v2479 = vadd.f32 %v2245, %v2413
      %v2480 = vadd.f32 %v2246, %v2416
      %v2481 = vadd.f32 %v2247, %v2418
      %v2482 = vadd.f32 %v2248, %v2421
      %v2483 = vadd.f32 %v2249, %v2423
      %v2484 = vadd.f32 %v2250, %v2426
      %v2485 = vadd.f32 %v2251, %v2428
      %v2486 = vadd.f32 %v2252, %v2431
      %v2487 = vadd.f32 %v2253, %v2433
      %v2488 = vadd.f32 %v2254, %v2436
      %v2489 = vadd.f32 %v2255, %v2438
      %v2490 = vadd.f32 %v2256, %v2441
      %v2491 = vadd.f32 %v2257, %v2443
      %v2492 = vadd.f32 %v2258, %v2446
      %v2493 = vadd.f32 %v2259, %v2448
      %v2494 = vadd.f32 %v2260, %v2451
      %v2495 = vadd.f32 %v2261, %v2453
      %v2496 = vadd.f32 %v2262, %v2456
      %v2497 = vadd.f32 %v2263, %v2458
      %v2498 = vadd.f32 %v2264, %v2461
      %v2499 = vadd.f32 %v2265, %v2463
      %v2500 = vadd.f32 %v2266, %v2466
      %v2501 = vadd.f32 %v2267, %v2468
      %v2502 = vpack.c.bf16 %v2470, %v2470
      %v2503 = vpack.c.bf16 %v2471, %v2471
      %v2504 = vpack.c.bf16 %v2472, %v2472
      %v2505 = vpack.c.bf16 %v2473, %v2473
      %v2506 = vpack.c.bf16 %v2474, %v2474
      %v2507 = vpack.c.bf16 %v2475, %v2475
      %v2508 = vpack.c.bf16 %v2476, %v2476
      %v2509 = vpack.c.bf16 %v2477, %v2477
      %v2510 = vpack.c.bf16 %v2478, %v2478
      %v2511 = vpack.c.bf16 %v2479, %v2479
      %v2512 = vpack.c.bf16 %v2480, %v2480
      %v2513 = vpack.c.bf16 %v2481, %v2481
      %v2514 = vpack.c.bf16 %v2482, %v2482
      %v2515 = vpack.c.bf16 %v2483, %v2483
      %v2516 = vpack.c.bf16 %v2484, %v2484
      %v2517 = vpack.c.bf16 %v2485, %v2485
      %v2518 = vpack.c.bf16 %v2486, %v2486
      %v2519 = vpack.c.bf16 %v2487, %v2487
      %v2520 = vpack.c.bf16 %v2488, %v2488
      %v2521 = vpack.c.bf16 %v2489, %v2489
      %v2522 = vpack.c.bf16 %v2490, %v2490
      %v2523 = vpack.c.bf16 %v2491, %v2491
      %v2524 = vpack.c.bf16 %v2492, %v2492
      %v2525 = vpack.c.bf16 %v2493, %v2493
      %v2526 = vpack.c.bf16 %v2494, %v2494
      %v2527 = vpack.c.bf16 %v2495, %v2495
      %v2528 = vpack.c.bf16 %v2496, %v2496
      %v2529 = vpack.c.bf16 %v2497, %v2497
      %v2530 = vpack.c.bf16 %v2498, %v2498
      %v2531 = vpack.c.bf16 %v2499, %v2499
      %v2532 = vpack.c.bf16 %v2500, %v2500
      %v2533 = vpack.c.bf16 %v2501, %v2501
      %2534 = vst [vmem:[%s204] sm:$0xf] %v2502
      %2535 = vst [vmem:[%s204 + $0x4] sm:$0xf] %v2503
      %2536 = vst [vmem:[%s204 + $0x8] sm:$0xf] %v2504
      %2537 = vst [vmem:[%s204 + $0xc] sm:$0xf] %v2505
      %2538 = vst [vmem:[%s204 + $0x10] sm:$0xf] %v2506
      %2539 = vst [vmem:[%s204 + $0x14] sm:$0xf] %v2507
      %2540 = vst [vmem:[%s204 + $0x18] sm:$0xf] %v2508
      %2541 = vst [vmem:[%s204 + $0x1c] sm:$0xf] %v2509
      %2542 = vst [vmem:[%s204 + $0x20] sm:$0xf] %v2510
      %2543 = vst [vmem:[%s204 + $0x24] sm:$0xf] %v2511
      %2544 = vst [vmem:[%s204 + $0x28] sm:$0xf] %v2512
      %2545 = vst [vmem:[%s204 + $0x2c] sm:$0xf] %v2513
      %2546 = vst [vmem:[%s204 + $0x30] sm:$0xf] %v2514
      %2547 = vst [vmem:[%s204 + $0x34] sm:$0xf] %v2515
      %2548 = vst [vmem:[%s204 + $0x38] sm:$0xf] %v2516
      %2549 = vst [vmem:[%s204 + $0x3c] sm:$0xf] %v2517
      %2550 = vst [vmem:[%s204 + $0x40] sm:$0xf] %v2518
      %2551 = vst [vmem:[%s204 + $0x44] sm:$0xf] %v2519
      %2552 = vst [vmem:[%s204 + $0x48] sm:$0xf] %v2520
      %2553 = vst [vmem:[%s204 + $0x4c] sm:$0xf] %v2521
      %2554 = vst [vmem:[%s204 + $0x50] sm:$0xf] %v2522
      %2555 = vst [vmem:[%s204 + $0x54] sm:$0xf] %v2523
      %2556 = vst [vmem:[%s204 + $0x58] sm:$0xf] %v2524
      %2557 = vst [vmem:[%s204 + $0x5c] sm:$0xf] %v2525
      %2558 = vst [vmem:[%s204 + $0x60] sm:$0xf] %v2526
      %2559 = vst [vmem:[%s204 + $0x64] sm:$0xf] %v2527
      %2560 = vst [vmem:[%s204 + $0x68] sm:$0xf] %v2528
      %2561 = vst [vmem:[%s204 + $0x6c] sm:$0xf] %v2529
      %2562 = vst [vmem:[%s204 + $0x70] sm:$0xf] %v2530
      %2563 = vst [vmem:[%s204 + $0x74] sm:$0xf] %v2531
      %2564 = vst [vmem:[%s204 + $0x78] sm:$0xf] %v2532
      %2565 = vst [vmem:[%s204 + $0x7c] sm:$0xf] %v2533
      %v2566 = vadd.f32 %v2470, %v2471
      %v2567 = vadd.f32 %v2566, %v2472
      %v2568 = vadd.f32 %v2567, %v2473
      %v2569 = vadd.f32 %v2568, %v2474
      %v2570 = vadd.f32 %v2569, %v2475
      %v2571 = vadd.f32 %v2570, %v2476
      %v2572 = vadd.f32 %v2571, %v2477
      %v2573 = vadd.f32 %v2572, %v2478
      %v2574 = vadd.f32 %v2573, %v2479
      %v2575 = vadd.f32 %v2574, %v2480
      %v2576 = vadd.f32 %v2575, %v2481
      %v2577 = vadd.f32 %v2576, %v2482
      %v2578 = vadd.f32 %v2577, %v2483
      %v2579 = vadd.f32 %v2578, %v2484
      %v2580 = vadd.f32 %v2579, %v2485
      %v2581 = vadd.f32 %v2580, %v2486
      %v2582 = vadd.f32 %v2581, %v2487
      %v2583 = vadd.f32 %v2582, %v2488
      %v2584 = vadd.f32 %v2583, %v2489
      %v2585 = vadd.f32 %v2584, %v2490
      %v2586 = vadd.f32 %v2585, %v2491
      %v2587 = vadd.f32 %v2586, %v2492
      %v2588 = vadd.f32 %v2587, %v2493
      %v2589 = vadd.f32 %v2588, %v2494
      %v2590 = vadd.f32 %v2589, %v2495
      %v2591 = vadd.f32 %v2590, %v2496
      %v2592 = vadd.f32 %v2591, %v2497
      %v2593 = vadd.f32 %v2592, %v2498
      %v2594 = vadd.f32 %v2593, %v2499
      %v2595 = vadd.f32 %v2594, %v2500
      %v2596 = vadd.f32 %v2595, %v2501
      %v2597 = vrot.slane %v2596, 4
      %v2598 = vadd.f32 %v2596, %v2597
      %v2599 = vrot.slane %v2598, 2
      %v2600 = vadd.f32 %v2598, %v2599
      %v2601 = vrot.slane %v2600, 1
      %v2602 = vadd.f32 %v2600, %v2601
      %2603 = vst [vmem:[%s208] sm:$0x1] %v2602
      %v2604 = vmul.f32 %v2470, %v2470
      %v2605 = vmul.f32 %v2471, %v2471
      %v2606 = vmul.f32 %v2472, %v2472
      %v2607 = vmul.f32 %v2473, %v2473
      %v2608 = vmul.f32 %v2474, %v2474
      %v2609 = vmul.f32 %v2475, %v2475
      %v2610 = vmul.f32 %v2476, %v2476
      %v2611 = vmul.f32 %v2477, %v2477
      %v2612 = vmul.f32 %v2478, %v2478
      %v2613 = vmul.f32 %v2479, %v2479
      %v2614 = vmul.f32 %v2480, %v2480
      %v2615 = vmul.f32 %v2481, %v2481
      %v2616 = vmul.f32 %v2482, %v2482
      %v2617 = vmul.f32 %v2483, %v2483
      %v2618 = vmul.f32 %v2484, %v2484
      %v2619 = vmul.f32 %v2485, %v2485
      %v2620 = vmul.f32 %v2486, %v2486
      %v2621 = vmul.f32 %v2487, %v2487
      %v2622 = vmul.f32 %v2488, %v2488
      %v2623 = vmul.f32 %v2489, %v2489
      %v2624 = vmul.f32 %v2490, %v2490
      %v2625 = vmul.f32 %v2491, %v2491
      %v2626 = vmul.f32 %v2492, %v2492
      %v2627 = vmul.f32 %v2493, %v2493
      %v2628 = vmul.f32 %v2494, %v2494
      %v2629 = vmul.f32 %v2495, %v2495
      %v2630 = vmul.f32 %v2496, %v2496
      %v2631 = vmul.f32 %v2497, %v2497
      %v2632 = vmul.f32 %v2498, %v2498
      %v2633 = vmul.f32 %v2499, %v2499
      %v2634 = vmul.f32 %v2500, %v2500
      %v2635 = vmul.f32 %v2501, %v2501
      %v2636 = vadd.f32 %v2604, %v2605
      %v2637 = vadd.f32 %v2636, %v2606
      %v2638 = vadd.f32 %v2637, %v2607
      %v2639 = vadd.f32 %v2638, %v2608
      %v2640 = vadd.f32 %v2639, %v2609
      %v2641 = vadd.f32 %v2640, %v2610
      %v2642 = vadd.f32 %v2641, %v2611
      %v2643 = vadd.f32 %v2642, %v2612
      %v2644 = vadd.f32 %v2643, %v2613
      %v2645 = vadd.f32 %v2644, %v2614
      %v2646 = vadd.f32 %v2645, %v2615
      %v2647 = vadd.f32 %v2646, %v2616
      %v2648 = vadd.f32 %v2647, %v2617
      %v2649 = vadd.f32 %v2648, %v2618
      %v2650 = vadd.f32 %v2649, %v2619
      %v2651 = vadd.f32 %v2650, %v2620
      %v2652 = vadd.f32 %v2651, %v2621
      %v2653 = vadd.f32 %v2652, %v2622
      %v2654 = vadd.f32 %v2653, %v2623
      %v2655 = vadd.f32 %v2654, %v2624
      %v2656 = vadd.f32 %v2655, %v2625
      %v2657 = vadd.f32 %v2656, %v2626
      %v2658 = vadd.f32 %v2657, %v2627
      %v2659 = vadd.f32 %v2658, %v2628
      %v2660 = vadd.f32 %v2659, %v2629
      %v2661 = vadd.f32 %v2660, %v2630
      %v2662 = vadd.f32 %v2661, %v2631
      %v2663 = vadd.f32 %v2662, %v2632
      %v2664 = vadd.f32 %v2663, %v2633
      %v2665 = vadd.f32 %v2664, %v2634
      %v2666 = vadd.f32 %v2665, %v2635
      %v2667 = vrot.slane %v2666, 4
      %v2668 = vadd.f32 %v2666, %v2667
      %v2669 = vrot.slane %v2668, 2
      %v2670 = vadd.f32 %v2668, %v2669
      %v2671 = vrot.slane %v2670, 1
      %v2672 = vadd.f32 %v2670, %v2671
      %2673 = vst [vmem:[%s208 + $0x1] sm:$0x1] %v2672
      %p2674 = scmp.lt.s32.totalorder %s16, 1
      %s2675 = scalar_select %p2674, %s16, 1
      %s2676 = smul.addr %s2675, 32
      %s2677 = smul.addr %s2676, 4
      %s2678 = scalar_lea.vmem %s3, %s2677
      %p2679 = scmp.lt.s32.totalorder %s16, 1
      %s2680 = scalar_select %p2679, %s16, 1
      %s2681 = smul.addr %s2680, 2
      %s2682 = scalar_lea.vmem %s4, %s2681
      // Predicated region
      $region33: #{block_forward.5} parent=31 // pred_check
        %p2683 = pneg %p102
      $region34: #{block_forward.5} parent=31 // pred_check_branch
        %2685 = sbr.rel (%p2683) target = $region36
      $region35: #{block_forward.5} parent=31 // pred_region
        _
      $region36: #{block_forward.5} parent=31 // pred_fallthru
        _
      // Predicated region
      $region37: #{block_forward.5} parent=31 // pred_check
        %p2686 = pneg %p128
      $region38: #{block_forward.5} parent=31 // pred_check_branch
        %2688 = sbr.rel (%p2686) target = $region40
      $region39: #{block_forward.5} parent=31 // pred_region
        _
      $region40: #{block_forward.5} parent=31 // pred_fallthru
        _
    $region32: #{block_forward.5} parent=5 // pred_fallthru
      _
    %p2689 = scmp.le.s32.totalorder 2, %s11
    // Predicated region
    $region41: #{block_forward.5} parent=5 // pred_check
      %p2690 = pneg %p2689
    $region42: #{block_forward.5} parent=5 // pred_check_branch
      %2692 = sbr.rel (%p2690) target = $region44
    $region43: #{block_forward.5} parent=5 // pred_region
      %s2693 = ssub.s32 %s11, 2
      // Predicated region
      $region45: #{block_forward.5} parent=43 // pred_check
        %p2694 = pneg %p108
      $region46: #{block_forward.5} parent=43 // pred_check_branch
        %2696 = sbr.rel (%p2694) target = $region48
      $region47: #{block_forward.5} parent=43 // pred_region
        %p2697 = scmp.lt.s32.totalorder %s17, 1
        %s2698 = scalar_select %p2697, %s17, 1
        %s2699 = smul.addr %s2698, 32
        %s2700 = smul.addr %s2699, 4
        %s2701 = scalar_lea.vmem %s3, %s2700
      $region48: #{block_forward.5} parent=43 // pred_fallthru
        _
      // Predicated region
      $region49: #{block_forward.5} parent=43 // pred_check
        %p2702 = pneg %p134
      $region50: #{block_forward.5} parent=43 // pred_check_branch
        %2704 = sbr.rel (%p2702) target = $region52
      $region51: #{block_forward.5} parent=43 // pred_region
        %p2705 = scmp.lt.s32.totalorder %s17, 1
        %s2706 = scalar_select %p2705, %s17, 1
        %s2707 = smul.addr %s2706, 2
        %s2708 = scalar_lea.vmem %s4, %s2707
      $region52: #{block_forward.5} parent=43 // pred_fallthru
        _
    $region44: #{block_forward.5} parent=5 // pred_fallthru
      _
  $region6: #{block_forward.5} parent=0 // loop_footer
    %s15 = sadd.s32 1, %s11
  $region7: #{block_forward.5} parent=0 // loop_footer_branch
    %10 = sbr.rel target = $region3
  $region8: #{block_forward.5} parent=0 // loop_exit
    _

</llo_original>
